<compile_context>
chip_gen: v5e
topology: v5e:2x2
jax: 0.10.0
libtpu: 0.0.40
codegen_flags: <defaults>
</compile_context>

<pallas_src>
import functools

import jax
import jax.numpy as jnp
from jax.experimental import pallas as pl
from jax.experimental.pallas import tpu as pltpu


# ----------------------------------------------------------------------------
# Fused kernel: multi-layer GRU + QKV attention + projection + split softmax.
# Grid over batch; one grid step processes one batch element end-to-end.
# ----------------------------------------------------------------------------
def _fused_decoder_kernel(lens_ref, emb_ref, h0_ref, enc_ref, msk_ref, *rest,
                          v1, num_layers):
    # lens_ref : (B,) int32 in SMEM (scalar prefetch) -- target lengths
    # emb_ref  : (Td, E)   embedded target sequence
    # h0_ref   : (L, H)    initial GRU hidden per layer (enc_out)
    # enc_ref  : (Te, H)   encoder hidden states by t
    # msk_ref  : (1, Te)   source-token mask (1.0 valid / 0.0 pad), lane-dense
    # rest     : per layer (wx (in,3H), wh (H,3H), bx (1,3H), bh (1,3H)),
    #            then wq (H,H), bq (1,H), wkv (H,2H), bkv (1,2H),
    #            wp (2H,V), bp (1,V), then prob_ref (Td,V), attw_ref (Td,Te),
    #            then two VMEM (Td,H) sequence scratch buffers.
    f32 = jnp.float32
    n_w = 4 * num_layers
    gru_refs = rest[:n_w]
    wq_ref, bq_ref, wkv_ref, bkv_ref, wp_ref, bp_ref = rest[n_w:n_w + 6]
    prob_ref = rest[n_w + 6]
    attw_ref = rest[n_w + 7]
    seq_scr = rest[n_w + 8:]

    Td, H = seq_scr[0].shape
    tgt_len = lens_ref[pl.program_id(0)]

    # (Td, 1) validity column for the target sequence: 1.0 valid / 0.0 padded.
    t_iota = jax.lax.broadcasted_iota(jnp.int32, (Td, 1), 0)
    tmask = (t_iota < tgt_len).astype(f32)

    # ---------------- multi-layer GRU (recurrence fully unrolled) -----------
    x_seq = emb_ref[...]                                   # (Td, in) layer input
    for l in range(num_layers):
        wx_ref, wh_ref, bx_ref, bh_ref = gru_refs[4 * l:4 * l + 4]
        # hoisted input-gate matmul for the whole sequence -> (Td, 3H)
        xg = jnp.dot(x_seq, wx_ref[...], preferred_element_type=f32) + bx_ref[...]
        wh = wh_ref[...]                                   # (H, 3H) loaded once
        bh = bh_ref[...]                                   # (1, 3H)
        h = h0_ref[l:l + 1, :]                             # (1, H)
        out_scr = seq_scr[l % 2]
        for t in range(Td):                                # static unroll
            xg_t = xg[t:t + 1, :]                          # (1, 3H) static slice
            hg = jnp.dot(h, wh, preferred_element_type=f32) + bh   # (1, 3H)
            r = jax.nn.sigmoid(xg_t[:, 0:H] + hg[:, 0:H])
            z = jax.nn.sigmoid(xg_t[:, H:2 * H] + hg[:, H:2 * H])
            n = jnp.tanh(xg_t[:, 2 * H:3 * H] + r * hg[:, 2 * H:3 * H])
            h_new = (1.0 - z) * n + z * h
            m = tmask[t:t + 1, :]                          # (1, 1)
            # padded step: emit zeros (pad_packed_sequence), keep hidden state.
            out_scr[t:t + 1, :] = m * h_new
            h = m * h_new + (1.0 - m) * h
        x_seq = out_scr[...]                               # (Td, H) -> next layer

    dec = x_seq                                            # (Td, H) decoder hidden

    # ---------------- QKV attention -----------------------------------------
    enc = enc_ref[...]                                     # (Te, H)
    q = jnp.dot(dec, wq_ref[...], preferred_element_type=f32) + bq_ref[...]
    kv = jnp.dot(enc, wkv_ref[...], preferred_element_type=f32) + bkv_ref[...]
    k = kv[:, 0:H]
    v = kv[:, H:2 * H]

    # torch: score = bmm(key, query^T) -> (Te, Td), softmax over Te (no 1/sqrt(H)
    # scaling in the reference).  Held transposed here ((Td, Te)) so the softmax
    # is a lane reduction and the mask is lane-dense; transposed back outside.
    score = jax.lax.dot_general(q, k, (((1,), (1,)), ((), ())),
                                preferred_element_type=f32)          # (Td, Te)
    msk = msk_ref[...]                                               # (1, Te)
    score = jnp.where(msk > 0.0, score, jnp.full_like(score, -1e30))

    smax = jnp.max(score, axis=-1, keepdims=True)
    e = jnp.exp(score - smax)
    denom = jnp.sum(e, axis=-1, keepdims=True)
    attw = e * pl.reciprocal(denom, approx=True)                     # (Td, Te)
    attw_ref[...] = attw

    attn_vec = jnp.dot(attw, v, preferred_element_type=f32)          # (Td, H)

    # proj([dec ; attn_vec]) as a single (Td,2H)@(2H,V) matmul.
    cat = jnp.concatenate([dec, attn_vec], axis=-1)                  # (Td, 2H)
    logit = jnp.dot(cat, wp_ref[...], preferred_element_type=f32) + bp_ref[...]

    # split softmax: softmax over [:v1] (pitch) and [v1:] (duration) separately,
    # via a lane-group mask (avoids non-aligned lane slicing).
    col = jax.lax.broadcasted_iota(jnp.int32, logit.shape, 1)
    is_dur = col >= v1
    neg = jnp.full_like(logit, -1e30)
    m_p = jnp.max(jnp.where(is_dur, neg, logit), axis=-1, keepdims=True)
    m_d = jnp.max(jnp.where(is_dur, logit, neg), axis=-1, keepdims=True)
    e2 = jnp.exp(logit - jnp.where(is_dur, m_d, m_p))
    s_p = jnp.sum(jnp.where(is_dur, jnp.zeros_like(e2), e2), axis=-1, keepdims=True)
    s_d = jnp.sum(jnp.where(is_dur, e2, jnp.zeros_like(e2)), axis=-1, keepdims=True)
    prob_ref[...] = e2 * pl.reciprocal(jnp.where(is_dur, s_d, s_p), approx=True)


def fused_decoder(emb, h0_all, enc_h, src_mask, tgt_lens, gru_params,
                  attn_params, v1):
    """emb: (B,Td,E), h0_all: (B,L,H), enc_h: (B,Te,H), src_mask: (B,1,Te),
    tgt_lens: (B,) int32.  Returns prob (B,Td,V), attw (B,Te,Td)."""
    B, Td, E = emb.shape
    _, L, H = h0_all.shape
    Te = enc_h.shape[1]
    Vtot = attn_params["wp"].shape[1]
    num_layers = len(gru_params)

    per_b = lambda i, lens: (i, 0, 0)
    rep2 = lambda i, lens: (0, 0)

    in_specs = [
        pl.BlockSpec((None, Td, E), per_b),
        pl.BlockSpec((None, L, H), per_b),
        pl.BlockSpec((None, Te, H), per_b),
        pl.BlockSpec((None, 1, Te), per_b),
    ]
    flat_w = []
    for p in gru_params:
        for name in ("wx", "wh", "bx", "bh"):
            w = p[name]
            in_specs.append(pl.BlockSpec(w.shape, rep2))
            flat_w.append(w)
    for name in ("wq", "bq", "wkv", "bkv", "wp", "bp"):
        w = attn_params[name]
        in_specs.append(pl.BlockSpec(w.shape, rep2))
        flat_w.append(w)

    kernel = functools.partial(_fused_decoder_kernel, v1=v1,
                               num_layers=num_layers)

    prob, attw_t = pl.pallas_call(
        kernel,
        grid_spec=pltpu.PrefetchScalarGridSpec(
            num_scalar_prefetch=1,
            grid=(B,),
            in_specs=in_specs,
            out_specs=[
                pl.BlockSpec((None, Td, Vtot), per_b),
                pl.BlockSpec((None, Td, Te), per_b),
            ],
            scratch_shapes=[pltpu.VMEM((Td, H), jnp.float32),
                            pltpu.VMEM((Td, H), jnp.float32)],
        ),
        out_shape=[jax.ShapeDtypeStruct((B, Td, Vtot), jnp.float32),
                   jax.ShapeDtypeStruct((B, Td, Te), jnp.float32)],
        compiler_params=pltpu.CompilerParams(
            dimension_semantics=("parallel",)),
    )(tgt_lens, emb, h0_all, enc_h, src_mask, *flat_w)

    # kernel stores attention weights as (Td, Te); torch layout is (B, Te, Td).
    return prob, jnp.swapaxes(attw_t, 1, 2)


# ----------------------------------------------------------------------------
# Forward pass (glue in plain JAX, hot path in the single fused kernel above).
# ----------------------------------------------------------------------------
def qkv_attn_decoder_forward(params, src_tokens, tgt_tokens, tgt_lens,
                             enc_hidden_by_t, enc_out, v1):
    # MultiEmbedding: per-feature lookup, concatenated along feature dim (glue).
    embs = [tab[tgt_tokens[..., f]] for f, tab in enumerate(params["emb_tables"])]
    emb = jnp.concatenate(embs, axis=-1)                    # (B, Td, E)

    # reduce_enc is skipped: enc_out feature dim == gru_size in this module.
    h0_all = jnp.transpose(enc_out, (1, 0, 2))              # (B, L, H)

    # mask = pad_packed_sequence(src)[0][..., 1:2] != 0, stored lane-dense.
    src_mask = (src_tokens[..., 1] != 0).astype(jnp.float32)[:, None, :]  # (B,1,Te)

    prob, attw = fused_decoder(emb, h0_all, enc_hidden_by_t, src_mask,
                               tgt_lens.astype(jnp.int32),
                               params["gru"], params["attn"], v1)

    # TODO(synk): torch pack_padded_sequence has no JAX equivalent; return padded
    # probabilities together with the lengths instead of a PackedSequence.
    return prob, attw, tgt_lens


# ----------------------------------------------------------------------------
# Deterministic parameter / input construction and a single run.
# ----------------------------------------------------------------------------
if __name__ == "__main__":
    B, Te, Td = 2, 16, 12
    H = 32                       # param.gru.hidden_size == gru_size
    NUM_LAYERS = 2               # param.gru.num_layers
    vocab_size_dict = {"offset": 17, "pitch": 16, "duration": 12}
    vocab_sizes = list(vocab_size_dict.values())
    V1, V2 = vocab_sizes[1], vocab_sizes[2]
    VTOT = V1 + V2
    EMB_DIM = 8
    E = EMB_DIM * len(vocab_sizes)  # param.emb.total_size

    key = jax.random.PRNGKey(0)
    keys = list(jax.random.split(key, 64))
    ki = iter(keys)

    def rnd(shape):
        return 0.1 * jax.random.normal(next(ki), shape, dtype=jnp.float32)

    params = {}
    params["emb_tables"] = [rnd((v, EMB_DIM)) for v in vocab_sizes]

    # GRU weights pre-fused in PyTorch gate order r|z|n:
    #   wx = [Wir|Wiz|Win]^T (in,3H), wh = [Whr|Whz|Whn]^T (H,3H),
    #   bx = [b_ir|b_iz|b_in] (1,3H), bh = [b_hr|b_hz|b_hn] (1,3H).
    gru = []
    for layer in range(NUM_LAYERS):
        in_dim = E if layer == 0 else H
        gru.append({
            "wx": rnd((in_dim, 3 * H)), "wh": rnd((H, 3 * H)),
            "bx": rnd((1, 3 * H)), "bh": rnd((1, 3 * H)),
        })
    params["gru"] = gru

    # Attention / projection weights, K|V and proj pre-fused.
    params["attn"] = {
        "wq": rnd((H, H)), "bq": rnd((1, H)),
        "wkv": rnd((H, 2 * H)), "bkv": rnd((1, 2 * H)),
        "wp": rnd((2 * H, VTOT)), "bp": rnd((1, VTOT)),
    }

    # ---- inputs (padded tensors + lengths stand in for PackedSequence) ----
    src_lens = jnp.array([16, 11], dtype=jnp.int32)
    tgt_lens = jnp.array([12, 9], dtype=jnp.int32)

    src_valid = jnp.arange(Te)[None, :] < src_lens[:, None]
    tgt_valid = jnp.arange(Td)[None, :] < tgt_lens[:, None]

    src_tokens = jax.random.randint(next(ki), (B, Te, 3), 1, min(vocab_sizes),
                                    dtype=jnp.int32)
    src_tokens = src_tokens * src_valid[..., None].astype(jnp.int32)

    tgt_tokens = jax.random.randint(next(ki), (B, Td, 3), 1, min(vocab_sizes),
                                    dtype=jnp.int32)
    tgt_tokens = tgt_tokens * tgt_valid[..., None].astype(jnp.int32)

    enc_hidden_by_t = rnd((B, Te, H)) * src_valid[..., None].astype(jnp.float32)
    enc_out = 0.1 * jax.random.normal(next(ki), (NUM_LAYERS, B, H),
                                      dtype=jnp.float32)

    prob, attw, out_lens = qkv_attn_decoder_forward(
        params, src_tokens, tgt_tokens, tgt_lens, enc_hidden_by_t, enc_out, V1)

    prob, attw = jax.block_until_ready((prob, attw))

    assert prob.shape == (B, Td, VTOT)
    assert attw.shape == (B, Te, Td)
    assert not bool(jnp.isnan(prob).any())
    assert not bool(jnp.isnan(attw).any())
    # attention weights sum to ~1 over encoder time; pitch/duration splits each
    # sum to ~1 (approx=True reciprocal => loose tolerance).
    assert bool(jnp.all(jnp.abs(jnp.sum(attw, axis=1) - 1.0) < 2e-2))
    assert bool(jnp.all(jnp.abs(jnp.sum(prob[..., :V1], axis=-1) - 1.0) < 2e-2))
    assert bool(jnp.all(jnp.abs(jnp.sum(prob[..., V1:], axis=-1) - 1.0) < 2e-2))
    print("KERNEL_OK")
</pallas_src>

<mosaic_0001>
module attributes {stable_mosaic.version = 11 : i64} {
  func.func @_fused_decoder_kernel(%arg0: i32, %arg1: memref<2xi32, #tpu.memory_space<smem>>, %arg2: memref<1x12x24xf32, #tpu.memory_space<vmem>>, %arg3: memref<1x2x32xf32, #tpu.memory_space<vmem>>, %arg4: memref<1x16x32xf32, #tpu.memory_space<vmem>>, %arg5: memref<1x1x16xf32, #tpu.memory_space<vmem>>, %arg6: memref<24x96xf32, #tpu.memory_space<vmem>>, %arg7: memref<32x96xf32, #tpu.memory_space<vmem>>, %arg8: memref<1x96xf32, #tpu.memory_space<vmem>>, %arg9: memref<1x96xf32, #tpu.memory_space<vmem>>, %arg10: memref<32x96xf32, #tpu.memory_space<vmem>>, %arg11: memref<32x96xf32, #tpu.memory_space<vmem>>, %arg12: memref<1x96xf32, #tpu.memory_space<vmem>>, %arg13: memref<1x96xf32, #tpu.memory_space<vmem>>, %arg14: memref<32x32xf32, #tpu.memory_space<vmem>>, %arg15: memref<1x32xf32, #tpu.memory_space<vmem>>, %arg16: memref<32x64xf32, #tpu.memory_space<vmem>>, %arg17: memref<1x64xf32, #tpu.memory_space<vmem>>, %arg18: memref<64x28xf32, #tpu.memory_space<vmem>>, %arg19: memref<1x28xf32, #tpu.memory_space<vmem>>, %arg20: memref<1x12x28xf32, #tpu.memory_space<vmem>>, %arg21: memref<1x12x16xf32, #tpu.memory_space<vmem>>, %arg22: memref<12x32xf32, #tpu.memory_space<vmem>>, %arg23: memref<12x32xf32, #tpu.memory_space<vmem>>) attributes {dimension_semantics = [#tpu.dimension_semantics<parallel>], iteration_bounds = array<i64: 2>, scalar_prefetch = 1 : i64, scratch_operands = 2 : i64, tpu.core_type = #tpu.core_type<tc>, window_params = [{transform_indices = @transform_0, window_bounds = array<i64: 1, 12, 24>}, {transform_indices = @transform_1, window_bounds = array<i64: 1, 2, 32>}, {transform_indices = @transform_2, window_bounds = array<i64: 1, 16, 32>}, {transform_indices = @transform_3, window_bounds = array<i64: 1, 1, 16>}, {pipeline_mode = #tpu.pipeline_mode<synchronous>, transform_indices = @transform_4, window_bounds = array<i64: 24, 96>}, {pipeline_mode = #tpu.pipeline_mode<synchronous>, transform_indices = @transform_5, window_bounds = array<i64: 32, 96>}, {pipeline_mode = #tpu.pipeline_mode<synchronous>, transform_indices = @transform_6, window_bounds = array<i64: 1, 96>}, {pipeline_mode = #tpu.pipeline_mode<synchronous>, transform_indices = @transform_7, window_bounds = array<i64: 1, 96>}, {pipeline_mode = #tpu.pipeline_mode<synchronous>, transform_indices = @transform_8, window_bounds = array<i64: 32, 96>}, {pipeline_mode = #tpu.pipeline_mode<synchronous>, transform_indices = @transform_9, window_bounds = array<i64: 32, 96>}, {pipeline_mode = #tpu.pipeline_mode<synchronous>, transform_indices = @transform_10, window_bounds = array<i64: 1, 96>}, {pipeline_mode = #tpu.pipeline_mode<synchronous>, transform_indices = @transform_11, window_bounds = array<i64: 1, 96>}, {pipeline_mode = #tpu.pipeline_mode<synchronous>, transform_indices = @transform_12, window_bounds = array<i64: 32, 32>}, {pipeline_mode = #tpu.pipeline_mode<synchronous>, transform_indices = @transform_13, window_bounds = array<i64: 1, 32>}, {pipeline_mode = #tpu.pipeline_mode<synchronous>, transform_indices = @transform_14, window_bounds = array<i64: 32, 64>}, {pipeline_mode = #tpu.pipeline_mode<synchronous>, transform_indices = @transform_15, window_bounds = array<i64: 1, 64>}, {pipeline_mode = #tpu.pipeline_mode<synchronous>, transform_indices = @transform_16, window_bounds = array<i64: 64, 28>}, {pipeline_mode = #tpu.pipeline_mode<synchronous>, transform_indices = @transform_17, window_bounds = array<i64: 1, 28>}, {transform_indices = @transform_18, window_bounds = array<i64: 1, 12, 28>}, {transform_indices = @transform_19, window_bounds = array<i64: 1, 12, 16>}]} {
    %0 = arith.index_cast %arg0 : i32 to index
    %1 = memref.load %arg1[%0] : memref<2xi32, #tpu.memory_space<smem>>
    %2 = tpu.iota {dimensions = array<i32: 0>} : vector<12x1xi32>
    %3 = vector.broadcast %1 : i32 to vector<12x1xi32>
    %4 = arith.cmpi slt, %2, %3 : vector<12x1xi32>
    %5 = arith.extui %4 : vector<12x1xi1> to vector<12x1xi32>
    %6 = arith.sitofp %5 : vector<12x1xi32> to vector<12x1xf32>
    %c0 = arith.constant 0 : index
    %c0_0 = arith.constant 0 : index
    %c0_1 = arith.constant 0 : index
    %7 = vector.load %arg2[%c0, %c0_0, %c0_1] : memref<1x12x24xf32, #tpu.memory_space<vmem>>, vector<1x12x24xf32>
    %8 = vector.shape_cast %7 : vector<1x12x24xf32> to vector<12x24xf32>
    %c0_2 = arith.constant 0 : index
    %c0_3 = arith.constant 0 : index
    %9 = vector.load %arg6[%c0_2, %c0_3] : memref<24x96xf32, #tpu.memory_space<vmem>>, vector<24x96xf32>
    %cst = arith.constant dense<0.000000e+00> : vector<12x96xf32>
    %10 = tpu.matmul %8, %9, %cst {dimension_numbers = #tpu.dot_dimension_numbers<[1], [0], [0], [1], [0, 0, 1, 1], [], []>} : vector<12x24xf32>, vector<24x96xf32>, vector<12x96xf32> -> vector<12x96xf32>
    %c0_4 = arith.constant 0 : index
    %c0_5 = arith.constant 0 : index
    %11 = vector.load %arg8[%c0_4, %c0_5] : memref<1x96xf32, #tpu.memory_space<vmem>>, vector<1x96xf32>
    %12 = vector.broadcast %11 : vector<1x96xf32> to vector<12x96xf32>
    %13 = arith.addf %10, %12 : vector<12x96xf32>
    %c0_6 = arith.constant 0 : index
    %c0_7 = arith.constant 0 : index
    %14 = vector.load %arg7[%c0_6, %c0_7] : memref<32x96xf32, #tpu.memory_space<vmem>>, vector<32x96xf32>
    %c0_8 = arith.constant 0 : index
    %c0_9 = arith.constant 0 : index
    %15 = vector.load %arg9[%c0_8, %c0_9] : memref<1x96xf32, #tpu.memory_space<vmem>>, vector<1x96xf32>
    %c0_10 = arith.constant 0 : index
    %c0_11 = arith.constant 0 : index
    %c0_12 = arith.constant 0 : index
    %16 = vector.load %arg3[%c0_10, %c0_11, %c0_12] : memref<1x2x32xf32, #tpu.memory_space<vmem>>, vector<1x1x32xf32>
    %17 = vector.shape_cast %16 : vector<1x1x32xf32> to vector<1x32xf32>
    %18 = vector.extract_strided_slice %13 {offsets = [0, 0], sizes = [1, 96], strides = [1, 1]} : vector<12x96xf32> to vector<1x96xf32>
    %cst_13 = arith.constant dense<0.000000e+00> : vector<1x96xf32>
    %19 = tpu.matmul %17, %14, %cst_13 {dimension_numbers = #tpu.dot_dimension_numbers<[1], [0], [0], [1], [0, 0, 1, 1], [], []>} : vector<1x32xf32>, vector<32x96xf32>, vector<1x96xf32> -> vector<1x96xf32>
    %20 = arith.addf %19, %15 : vector<1x96xf32>
    %21 = vector.extract_strided_slice %18 {offsets = [0, 0], sizes = [1, 32], strides = [1, 1]} : vector<1x96xf32> to vector<1x32xf32>
    %22 = vector.extract_strided_slice %20 {offsets = [0, 0], sizes = [1, 32], strides = [1, 1]} : vector<1x96xf32> to vector<1x32xf32>
    %23 = arith.addf %21, %22 : vector<1x32xf32>
    %24 = arith.negf %23 : vector<1x32xf32>
    %25 = math.exp %24 : vector<1x32xf32>
    %cst_14 = arith.constant 1.000000e+00 : f32
    %26 = vector.broadcast %cst_14 : f32 to vector<1x32xf32>
    %27 = arith.addf %26, %25 : vector<1x32xf32>
    %28 = arith.divf %26, %27 : vector<1x32xf32>
    %29 = vector.extract_strided_slice %18 {offsets = [0, 32], sizes = [1, 32], strides = [1, 1]} : vector<1x96xf32> to vector<1x32xf32>
    %30 = vector.extract_strided_slice %20 {offsets = [0, 32], sizes = [1, 32], strides = [1, 1]} : vector<1x96xf32> to vector<1x32xf32>
    %31 = arith.addf %29, %30 : vector<1x32xf32>
    %32 = arith.negf %31 : vector<1x32xf32>
    %33 = math.exp %32 : vector<1x32xf32>
    %cst_15 = arith.constant 1.000000e+00 : f32
    %34 = vector.broadcast %cst_15 : f32 to vector<1x32xf32>
    %35 = arith.addf %34, %33 : vector<1x32xf32>
    %36 = arith.divf %34, %35 : vector<1x32xf32>
    %37 = vector.extract_strided_slice %18 {offsets = [0, 64], sizes = [1, 32], strides = [1, 1]} : vector<1x96xf32> to vector<1x32xf32>
    %38 = vector.extract_strided_slice %20 {offsets = [0, 64], sizes = [1, 32], strides = [1, 1]} : vector<1x96xf32> to vector<1x32xf32>
    %39 = arith.mulf %28, %38 : vector<1x32xf32>
    %40 = arith.addf %37, %39 : vector<1x32xf32>
    %41 = math.tanh %40 : vector<1x32xf32>
    %cst_16 = arith.constant 1.000000e+00 : f32
    %42 = vector.broadcast %cst_16 : f32 to vector<1x32xf32>
    %43 = arith.subf %42, %36 : vector<1x32xf32>
    %44 = arith.mulf %43, %41 : vector<1x32xf32>
    %45 = arith.mulf %36, %17 : vector<1x32xf32>
    %46 = arith.addf %44, %45 : vector<1x32xf32>
    %47 = vector.extract_strided_slice %6 {offsets = [0, 0], sizes = [1, 1], strides = [1, 1]} : vector<12x1xf32> to vector<1x1xf32>
    %48 = vector.broadcast %47 : vector<1x1xf32> to vector<1x32xf32>
    %49 = arith.mulf %48, %46 : vector<1x32xf32>
    %c0_17 = arith.constant 0 : index
    %c0_18 = arith.constant 0 : index
    %50 = vector.load %arg22[%c0_17, %c0_18] : memref<12x32xf32, #tpu.memory_space<vmem>>, vector<1x32xf32>
    tpu.vector_store %arg22[%c0_17, %c0_18], %49 {strides = array<i32>} : memref<12x32xf32, #tpu.memory_space<vmem>>, vector<1x32xf32>,
    %51 = vector.broadcast %47 : vector<1x1xf32> to vector<1x32xf32>
    %52 = arith.mulf %51, %46 : vector<1x32xf32>
    %cst_19 = arith.constant 1.000000e+00 : f32
    %53 = vector.broadcast %cst_19 : f32 to vector<1x1xf32>
    %54 = arith.subf %53, %47 : vector<1x1xf32>
    %55 = vector.broadcast %54 : vector<1x1xf32> to vector<1x32xf32>
    %56 = arith.mulf %55, %17 : vector<1x32xf32>
    %57 = arith.addf %52, %56 : vector<1x32xf32>
    %58 = vector.extract_strided_slice %13 {offsets = [1, 0], sizes = [1, 96], strides = [1, 1]} : vector<12x96xf32> to vector<1x96xf32>
    %cst_20 = arith.constant dense<0.000000e+00> : vector<1x96xf32>
    %59 = tpu.matmul %57, %14, %cst_20 {dimension_numbers = #tpu.dot_dimension_numbers<[1], [0], [0], [1], [0, 0, 1, 1], [], []>} : vector<1x32xf32>, vector<32x96xf32>, vector<1x96xf32> -> vector<1x96xf32>
    %60 = arith.addf %59, %15 : vector<1x96xf32>
    %61 = vector.extract_strided_slice %58 {offsets = [0, 0], sizes = [1, 32], strides = [1, 1]} : vector<1x96xf32> to vector<1x32xf32>
    %62 = vector.extract_strided_slice %60 {offsets = [0, 0], sizes = [1, 32], strides = [1, 1]} : vector<1x96xf32> to vector<1x32xf32>
    %63 = arith.addf %61, %62 : vector<1x32xf32>
    %64 = arith.negf %63 : vector<1x32xf32>
    %65 = math.exp %64 : vector<1x32xf32>
    %cst_21 = arith.constant 1.000000e+00 : f32
    %66 = vector.broadcast %cst_21 : f32 to vector<1x32xf32>
    %67 = arith.addf %66, %65 : vector<1x32xf32>
    %68 = arith.divf %66, %67 : vector<1x32xf32>
    %69 = vector.extract_strided_slice %58 {offsets = [0, 32], sizes = [1, 32], strides = [1, 1]} : vector<1x96xf32> to vector<1x32xf32>
    %70 = vector.extract_strided_slice %60 {offsets = [0, 32], sizes = [1, 32], strides = [1, 1]} : vector<1x96xf32> to vector<1x32xf32>
    %71 = arith.addf %69, %70 : vector<1x32xf32>
    %72 = arith.negf %71 : vector<1x32xf32>
    %73 = math.exp %72 : vector<1x32xf32>
    %cst_22 = arith.constant 1.000000e+00 : f32
    %74 = vector.broadcast %cst_22 : f32 to vector<1x32xf32>
    %75 = arith.addf %74, %73 : vector<1x32xf32>
    %76 = arith.divf %74, %75 : vector<1x32xf32>
    %77 = vector.extract_strided_slice %58 {offsets = [0, 64], sizes = [1, 32], strides = [1, 1]} : vector<1x96xf32> to vector<1x32xf32>
    %78 = vector.extract_strided_slice %60 {offsets = [0, 64], sizes = [1, 32], strides = [1, 1]} : vector<1x96xf32> to vector<1x32xf32>
    %79 = arith.mulf %68, %78 : vector<1x32xf32>
    %80 = arith.addf %77, %79 : vector<1x32xf32>
    %81 = math.tanh %80 : vector<1x32xf32>
    %cst_23 = arith.constant 1.000000e+00 : f32
    %82 = vector.broadcast %cst_23 : f32 to vector<1x32xf32>
    %83 = arith.subf %82, %76 : vector<1x32xf32>
    %84 = arith.mulf %83, %81 : vector<1x32xf32>
    %85 = arith.mulf %76, %57 : vector<1x32xf32>
    %86 = arith.addf %84, %85 : vector<1x32xf32>
    %87 = vector.extract_strided_slice %6 {offsets = [1, 0], sizes = [1, 1], strides = [1, 1]} : vector<12x1xf32> to vector<1x1xf32>
    %88 = vector.broadcast %87 : vector<1x1xf32> to vector<1x32xf32>
    %89 = arith.mulf %88, %86 : vector<1x32xf32>
    %c1 = arith.constant 1 : index
    %c0_24 = arith.constant 0 : index
    %90 = vector.load %arg22[%c1, %c0_24] : memref<12x32xf32, #tpu.memory_space<vmem>>, vector<1x32xf32>
    tpu.vector_store %arg22[%c1, %c0_24], %89 {strides = array<i32>} : memref<12x32xf32, #tpu.memory_space<vmem>>, vector<1x32xf32>,
    %91 = vector.broadcast %87 : vector<1x1xf32> to vector<1x32xf32>
    %92 = arith.mulf %91, %86 : vector<1x32xf32>
    %cst_25 = arith.constant 1.000000e+00 : f32
    %93 = vector.broadcast %cst_25 : f32 to vector<1x1xf32>
    %94 = arith.subf %93, %87 : vector<1x1xf32>
    %95 = vector.broadcast %94 : vector<1x1xf32> to vector<1x32xf32>
    %96 = arith.mulf %95, %57 : vector<1x32xf32>
    %97 = arith.addf %92, %96 : vector<1x32xf32>
    %98 = vector.extract_strided_slice %13 {offsets = [2, 0], sizes = [1, 96], strides = [1, 1]} : vector<12x96xf32> to vector<1x96xf32>
    %cst_26 = arith.constant dense<0.000000e+00> : vector<1x96xf32>
    %99 = tpu.matmul %97, %14, %cst_26 {dimension_numbers = #tpu.dot_dimension_numbers<[1], [0], [0], [1], [0, 0, 1, 1], [], []>} : vector<1x32xf32>, vector<32x96xf32>, vector<1x96xf32> -> vector<1x96xf32>
    %100 = arith.addf %99, %15 : vector<1x96xf32>
    %101 = vector.extract_strided_slice %98 {offsets = [0, 0], sizes = [1, 32], strides = [1, 1]} : vector<1x96xf32> to vector<1x32xf32>
    %102 = vector.extract_strided_slice %100 {offsets = [0, 0], sizes = [1, 32], strides = [1, 1]} : vector<1x96xf32> to vector<1x32xf32>
    %103 = arith.addf %101, %102 : vector<1x32xf32>
    %104 = arith.negf %103 : vector<1x32xf32>
    %105 = math.exp %104 : vector<1x32xf32>
    %cst_27 = arith.constant 1.000000e+00 : f32
    %106 = vector.broadcast %cst_27 : f32 to vector<1x32xf32>
    %107 = arith.addf %106, %105 : vector<1x32xf32>
    %108 = arith.divf %106, %107 : vector<1x32xf32>
    %109 = vector.extract_strided_slice %98 {offsets = [0, 32], sizes = [1, 32], strides = [1, 1]} : vector<1x96xf32> to vector<1x32xf32>
    %110 = vector.extract_strided_slice %100 {offsets = [0, 32], sizes = [1, 32], strides = [1, 1]} : vector<1x96xf32> to vector<1x32xf32>
    %111 = arith.addf %109, %110 : vector<1x32xf32>
    %112 = arith.negf %111 : vector<1x32xf32>
    %113 = math.exp %112 : vector<1x32xf32>
    %cst_28 = arith.constant 1.000000e+00 : f32
    %114 = vector.broadcast %cst_28 : f32 to vector<1x32xf32>
    %115 = arith.addf %114, %113 : vector<1x32xf32>
    %116 = arith.divf %114, %115 : vector<1x32xf32>
    %117 = vector.extract_strided_slice %98 {offsets = [0, 64], sizes = [1, 32], strides = [1, 1]} : vector<1x96xf32> to vector<1x32xf32>
    %118 = vector.extract_strided_slice %100 {offsets = [0, 64], sizes = [1, 32], strides = [1, 1]} : vector<1x96xf32> to vector<1x32xf32>
    %119 = arith.mulf %108, %118 : vector<1x32xf32>
    %120 = arith.addf %117, %119 : vector<1x32xf32>
    %121 = math.tanh %120 : vector<1x32xf32>
    %cst_29 = arith.constant 1.000000e+00 : f32
    %122 = vector.broadcast %cst_29 : f32 to vector<1x32xf32>
    %123 = arith.subf %122, %116 : vector<1x32xf32>
    %124 = arith.mulf %123, %121 : vector<1x32xf32>
    %125 = arith.mulf %116, %97 : vector<1x32xf32>
    %126 = arith.addf %124, %125 : vector<1x32xf32>
    %127 = vector.extract_strided_slice %6 {offsets = [2, 0], sizes = [1, 1], strides = [1, 1]} : vector<12x1xf32> to vector<1x1xf32>
    %128 = vector.broadcast %127 : vector<1x1xf32> to vector<1x32xf32>
    %129 = arith.mulf %128, %126 : vector<1x32xf32>
    %c2 = arith.constant 2 : index
    %c0_30 = arith.constant 0 : index
    %130 = vector.load %arg22[%c2, %c0_30] : memref<12x32xf32, #tpu.memory_space<vmem>>, vector<1x32xf32>
    tpu.vector_store %arg22[%c2, %c0_30], %129 {strides = array<i32>} : memref<12x32xf32, #tpu.memory_space<vmem>>, vector<1x32xf32>,
    %131 = vector.broadcast %127 : vector<1x1xf32> to vector<1x32xf32>
    %132 = arith.mulf %131, %126 : vector<1x32xf32>
    %cst_31 = arith.constant 1.000000e+00 : f32
    %133 = vector.broadcast %cst_31 : f32 to vector<1x1xf32>
    %134 = arith.subf %133, %127 : vector<1x1xf32>
    %135 = vector.broadcast %134 : vector<1x1xf32> to vector<1x32xf32>
    %136 = arith.mulf %135, %97 : vector<1x32xf32>
    %137 = arith.addf %132, %136 : vector<1x32xf32>
    %138 = vector.extract_strided_slice %13 {offsets = [3, 0], sizes = [1, 96], strides = [1, 1]} : vector<12x96xf32> to vector<1x96xf32>
    %cst_32 = arith.constant dense<0.000000e+00> : vector<1x96xf32>
    %139 = tpu.matmul %137, %14, %cst_32 {dimension_numbers = #tpu.dot_dimension_numbers<[1], [0], [0], [1], [0, 0, 1, 1], [], []>} : vector<1x32xf32>, vector<32x96xf32>, vector<1x96xf32> -> vector<1x96xf32>
    %140 = arith.addf %139, %15 : vector<1x96xf32>
    %141 = vector.extract_strided_slice %138 {offsets = [0, 0], sizes = [1, 32], strides = [1, 1]} : vector<1x96xf32> to vector<1x32xf32>
    %142 = vector.extract_strided_slice %140 {offsets = [0, 0], sizes = [1, 32], strides = [1, 1]} : vector<1x96xf32> to vector<1x32xf32>
    %143 = arith.addf %141, %142 : vector<1x32xf32>
    %144 = arith.negf %143 : vector<1x32xf32>
    %145 = math.exp %144 : vector<1x32xf32>
    %cst_33 = arith.constant 1.000000e+00 : f32
    %146 = vector.broadcast %cst_33 : f32 to vector<1x32xf32>
    %147 = arith.addf %146, %145 : vector<1x32xf32>
    %148 = arith.divf %146, %147 : vector<1x32xf32>
    %149 = vector.extract_strided_slice %138 {offsets = [0, 32], sizes = [1, 32], strides = [1, 1]} : vector<1x96xf32> to vector<1x32xf32>
    %150 = vector.extract_strided_slice %140 {offsets = [0, 32], sizes = [1, 32], strides = [1, 1]} : vector<1x96xf32> to vector<1x32xf32>
    %151 = arith.addf %149, %150 : vector<1x32xf32>
    %152 = arith.negf %151 : vector<1x32xf32>
    %153 = math.exp %152 : vector<1x32xf32>
    %cst_34 = arith.constant 1.000000e+00 : f32
    %154 = vector.broadcast %cst_34 : f32 to vector<1x32xf32>
    %155 = arith.addf %154, %153 : vector<1x32xf32>
    %156 = arith.divf %154, %155 : vector<1x32xf32>
    %157 = vector.extract_strided_slice %138 {offsets = [0, 64], sizes = [1, 32], strides = [1, 1]} : vector<1x96xf32> to vector<1x32xf32>
    %158 = vector.extract_strided_slice %140 {offsets = [0, 64], sizes = [1, 32], strides = [1, 1]} : vector<1x96xf32> to vector<1x32xf32>
    %159 = arith.mulf %148, %158 : vector<1x32xf32>
    %160 = arith.addf %157, %159 : vector<1x32xf32>
    %161 = math.tanh %160 : vector<1x32xf32>
    %cst_35 = arith.constant 1.000000e+00 : f32
    %162 = vector.broadcast %cst_35 : f32 to vector<1x32xf32>
    %163 = arith.subf %162, %156 : vector<1x32xf32>
    %164 = arith.mulf %163, %161 : vector<1x32xf32>
    %165 = arith.mulf %156, %137 : vector<1x32xf32>
    %166 = arith.addf %164, %165 : vector<1x32xf32>
    %167 = vector.extract_strided_slice %6 {offsets = [3, 0], sizes = [1, 1], strides = [1, 1]} : vector<12x1xf32> to vector<1x1xf32>
    %168 = vector.broadcast %167 : vector<1x1xf32> to vector<1x32xf32>
    %169 = arith.mulf %168, %166 : vector<1x32xf32>
    %c3 = arith.constant 3 : index
    %c0_36 = arith.constant 0 : index
    %170 = vector.load %arg22[%c3, %c0_36] : memref<12x32xf32, #tpu.memory_space<vmem>>, vector<1x32xf32>
    tpu.vector_store %arg22[%c3, %c0_36], %169 {strides = array<i32>} : memref<12x32xf32, #tpu.memory_space<vmem>>, vector<1x32xf32>,
    %171 = vector.broadcast %167 : vector<1x1xf32> to vector<1x32xf32>
    %172 = arith.mulf %171, %166 : vector<1x32xf32>
    %cst_37 = arith.constant 1.000000e+00 : f32
    %173 = vector.broadcast %cst_37 : f32 to vector<1x1xf32>
    %174 = arith.subf %173, %167 : vector<1x1xf32>
    %175 = vector.broadcast %174 : vector<1x1xf32> to vector<1x32xf32>
    %176 = arith.mulf %175, %137 : vector<1x32xf32>
    %177 = arith.addf %172, %176 : vector<1x32xf32>
    %178 = vector.extract_strided_slice %13 {offsets = [4, 0], sizes = [1, 96], strides = [1, 1]} : vector<12x96xf32> to vector<1x96xf32>
    %cst_38 = arith.constant dense<0.000000e+00> : vector<1x96xf32>
    %179 = tpu.matmul %177, %14, %cst_38 {dimension_numbers = #tpu.dot_dimension_numbers<[1], [0], [0], [1], [0, 0, 1, 1], [], []>} : vector<1x32xf32>, vector<32x96xf32>, vector<1x96xf32> -> vector<1x96xf32>
    %180 = arith.addf %179, %15 : vector<1x96xf32>
    %181 = vector.extract_strided_slice %178 {offsets = [0, 0], sizes = [1, 32], strides = [1, 1]} : vector<1x96xf32> to vector<1x32xf32>
    %182 = vector.extract_strided_slice %180 {offsets = [0, 0], sizes = [1, 32], strides = [1, 1]} : vector<1x96xf32> to vector<1x32xf32>
    %183 = arith.addf %181, %182 : vector<1x32xf32>
    %184 = arith.negf %183 : vector<1x32xf32>
    %185 = math.exp %184 : vector<1x32xf32>
    %cst_39 = arith.constant 1.000000e+00 : f32
    %186 = vector.broadcast %cst_39 : f32 to vector<1x32xf32>
    %187 = arith.addf %186, %185 : vector<1x32xf32>
    %188 = arith.divf %186, %187 : vector<1x32xf32>
    %189 = vector.extract_strided_slice %178 {offsets = [0, 32], sizes = [1, 32], strides = [1, 1]} : vector<1x96xf32> to vector<1x32xf32>
    %190 = vector.extract_strided_slice %180 {offsets = [0, 32], sizes = [1, 32], strides = [1, 1]} : vector<1x96xf32> to vector<1x32xf32>
    %191 = arith.addf %189, %190 : vector<1x32xf32>
    %192 = arith.negf %191 : vector<1x32xf32>
    %193 = math.exp %192 : vector<1x32xf32>
    %cst_40 = arith.constant 1.000000e+00 : f32
    %194 = vector.broadcast %cst_40 : f32 to vector<1x32xf32>
    %195 = arith.addf %194, %193 : vector<1x32xf32>
    %196 = arith.divf %194, %195 : vector<1x32xf32>
    %197 = vector.extract_strided_slice %178 {offsets = [0, 64], sizes = [1, 32], strides = [1, 1]} : vector<1x96xf32> to vector<1x32xf32>
    %198 = vector.extract_strided_slice %180 {offsets = [0, 64], sizes = [1, 32], strides = [1, 1]} : vector<1x96xf32> to vector<1x32xf32>
    %199 = arith.mulf %188, %198 : vector<1x32xf32>
    %200 = arith.addf %197, %199 : vector<1x32xf32>
    %201 = math.tanh %200 : vector<1x32xf32>
    %cst_41 = arith.constant 1.000000e+00 : f32
    %202 = vector.broadcast %cst_41 : f32 to vector<1x32xf32>
    %203 = arith.subf %202, %196 : vector<1x32xf32>
    %204 = arith.mulf %203, %201 : vector<1x32xf32>
    %205 = arith.mulf %196, %177 : vector<1x32xf32>
    %206 = arith.addf %204, %205 : vector<1x32xf32>
    %207 = vector.extract_strided_slice %6 {offsets = [4, 0], sizes = [1, 1], strides = [1, 1]} : vector<12x1xf32> to vector<1x1xf32>
    %208 = vector.broadcast %207 : vector<1x1xf32> to vector<1x32xf32>
    %209 = arith.mulf %208, %206 : vector<1x32xf32>
    %c4 = arith.constant 4 : index
    %c0_42 = arith.constant 0 : index
    %210 = vector.load %arg22[%c4, %c0_42] : memref<12x32xf32, #tpu.memory_space<vmem>>, vector<1x32xf32>
    tpu.vector_store %arg22[%c4, %c0_42], %209 {strides = array<i32>} : memref<12x32xf32, #tpu.memory_space<vmem>>, vector<1x32xf32>,
    %211 = vector.broadcast %207 : vector<1x1xf32> to vector<1x32xf32>
    %212 = arith.mulf %211, %206 : vector<1x32xf32>
    %cst_43 = arith.constant 1.000000e+00 : f32
    %213 = vector.broadcast %cst_43 : f32 to vector<1x1xf32>
    %214 = arith.subf %213, %207 : vector<1x1xf32>
    %215 = vector.broadcast %214 : vector<1x1xf32> to vector<1x32xf32>
    %216 = arith.mulf %215, %177 : vector<1x32xf32>
    %217 = arith.addf %212, %216 : vector<1x32xf32>
    %218 = vector.extract_strided_slice %13 {offsets = [5, 0], sizes = [1, 96], strides = [1, 1]} : vector<12x96xf32> to vector<1x96xf32>
    %cst_44 = arith.constant dense<0.000000e+00> : vector<1x96xf32>
    %219 = tpu.matmul %217, %14, %cst_44 {dimension_numbers = #tpu.dot_dimension_numbers<[1], [0], [0], [1], [0, 0, 1, 1], [], []>} : vector<1x32xf32>, vector<32x96xf32>, vector<1x96xf32> -> vector<1x96xf32>
    %220 = arith.addf %219, %15 : vector<1x96xf32>
    %221 = vector.extract_strided_slice %218 {offsets = [0, 0], sizes = [1, 32], strides = [1, 1]} : vector<1x96xf32> to vector<1x32xf32>
    %222 = vector.extract_strided_slice %220 {offsets = [0, 0], sizes = [1, 32], strides = [1, 1]} : vector<1x96xf32> to vector<1x32xf32>
    %223 = arith.addf %221, %222 : vector<1x32xf32>
    %224 = arith.negf %223 : vector<1x32xf32>
    %225 = math.exp %224 : vector<1x32xf32>
    %cst_45 = arith.constant 1.000000e+00 : f32
    %226 = vector.broadcast %cst_45 : f32 to vector<1x32xf32>
    %227 = arith.addf %226, %225 : vector<1x32xf32>
    %228 = arith.divf %226, %227 : vector<1x32xf32>
    %229 = vector.extract_strided_slice %218 {offsets = [0, 32], sizes = [1, 32], strides = [1, 1]} : vector<1x96xf32> to vector<1x32xf32>
    %230 = vector.extract_strided_slice %220 {offsets = [0, 32], sizes = [1, 32], strides = [1, 1]} : vector<1x96xf32> to vector<1x32xf32>
    %231 = arith.addf %229, %230 : vector<1x32xf32>
    %232 = arith.negf %231 : vector<1x32xf32>
    %233 = math.exp %232 : vector<1x32xf32>
    %cst_46 = arith.constant 1.000000e+00 : f32
    %234 = vector.broadcast %cst_46 : f32 to vector<1x32xf32>
    %235 = arith.addf %234, %233 : vector<1x32xf32>
    %236 = arith.divf %234, %235 : vector<1x32xf32>
    %237 = vector.extract_strided_slice %218 {offsets = [0, 64], sizes = [1, 32], strides = [1, 1]} : vector<1x96xf32> to vector<1x32xf32>
    %238 = vector.extract_strided_slice %220 {offsets = [0, 64], sizes = [1, 32], strides = [1, 1]} : vector<1x96xf32> to vector<1x32xf32>
    %239 = arith.mulf %228, %238 : vector<1x32xf32>
    %240 = arith.addf %237, %239 : vector<1x32xf32>
    %241 = math.tanh %240 : vector<1x32xf32>
    %cst_47 = arith.constant 1.000000e+00 : f32
    %242 = vector.broadcast %cst_47 : f32 to vector<1x32xf32>
    %243 = arith.subf %242, %236 : vector<1x32xf32>
    %244 = arith.mulf %243, %241 : vector<1x32xf32>
    %245 = arith.mulf %236, %217 : vector<1x32xf32>
    %246 = arith.addf %244, %245 : vector<1x32xf32>
    %247 = vector.extract_strided_slice %6 {offsets = [5, 0], sizes = [1, 1], strides = [1, 1]} : vector<12x1xf32> to vector<1x1xf32>
    %248 = vector.broadcast %247 : vector<1x1xf32> to vector<1x32xf32>
    %249 = arith.mulf %248, %246 : vector<1x32xf32>
    %c5 = arith.constant 5 : index
    %c0_48 = arith.constant 0 : index
    %250 = vector.load %arg22[%c5, %c0_48] : memref<12x32xf32, #tpu.memory_space<vmem>>, vector<1x32xf32>
    tpu.vector_store %arg22[%c5, %c0_48], %249 {strides = array<i32>} : memref<12x32xf32, #tpu.memory_space<vmem>>, vector<1x32xf32>,
    %251 = vector.broadcast %247 : vector<1x1xf32> to vector<1x32xf32>
    %252 = arith.mulf %251, %246 : vector<1x32xf32>
    %cst_49 = arith.constant 1.000000e+00 : f32
    %253 = vector.broadcast %cst_49 : f32 to vector<1x1xf32>
    %254 = arith.subf %253, %247 : vector<1x1xf32>
    %255 = vector.broadcast %254 : vector<1x1xf32> to vector<1x32xf32>
    %256 = arith.mulf %255, %217 : vector<1x32xf32>
    %257 = arith.addf %252, %256 : vector<1x32xf32>
    %258 = vector.extract_strided_slice %13 {offsets = [6, 0], sizes = [1, 96], strides = [1, 1]} : vector<12x96xf32> to vector<1x96xf32>
    %cst_50 = arith.constant dense<0.000000e+00> : vector<1x96xf32>
    %259 = tpu.matmul %257, %14, %cst_50 {dimension_numbers = #tpu.dot_dimension_numbers<[1], [0], [0], [1], [0, 0, 1, 1], [], []>} : vector<1x32xf32>, vector<32x96xf32>, vector<1x96xf32> -> vector<1x96xf32>
    %260 = arith.addf %259, %15 : vector<1x96xf32>
    %261 = vector.extract_strided_slice %258 {offsets = [0, 0], sizes = [1, 32], strides = [1, 1]} : vector<1x96xf32> to vector<1x32xf32>
    %262 = vector.extract_strided_slice %260 {offsets = [0, 0], sizes = [1, 32], strides = [1, 1]} : vector<1x96xf32> to vector<1x32xf32>
    %263 = arith.addf %261, %262 : vector<1x32xf32>
    %264 = arith.negf %263 : vector<1x32xf32>
    %265 = math.exp %264 : vector<1x32xf32>
    %cst_51 = arith.constant 1.000000e+00 : f32
    %266 = vector.broadcast %cst_51 : f32 to vector<1x32xf32>
    %267 = arith.addf %266, %265 : vector<1x32xf32>
    %268 = arith.divf %266, %267 : vector<1x32xf32>
    %269 = vector.extract_strided_slice %258 {offsets = [0, 32], sizes = [1, 32], strides = [1, 1]} : vector<1x96xf32> to vector<1x32xf32>
    %270 = vector.extract_strided_slice %260 {offsets = [0, 32], sizes = [1, 32], strides = [1, 1]} : vector<1x96xf32> to vector<1x32xf32>
    %271 = arith.addf %269, %270 : vector<1x32xf32>
    %272 = arith.negf %271 : vector<1x32xf32>
    %273 = math.exp %272 : vector<1x32xf32>
    %cst_52 = arith.constant 1.000000e+00 : f32
    %274 = vector.broadcast %cst_52 : f32 to vector<1x32xf32>
    %275 = arith.addf %274, %273 : vector<1x32xf32>
    %276 = arith.divf %274, %275 : vector<1x32xf32>
    %277 = vector.extract_strided_slice %258 {offsets = [0, 64], sizes = [1, 32], strides = [1, 1]} : vector<1x96xf32> to vector<1x32xf32>
    %278 = vector.extract_strided_slice %260 {offsets = [0, 64], sizes = [1, 32], strides = [1, 1]} : vector<1x96xf32> to vector<1x32xf32>
    %279 = arith.mulf %268, %278 : vector<1x32xf32>
    %280 = arith.addf %277, %279 : vector<1x32xf32>
    %281 = math.tanh %280 : vector<1x32xf32>
    %cst_53 = arith.constant 1.000000e+00 : f32
    %282 = vector.broadcast %cst_53 : f32 to vector<1x32xf32>
    %283 = arith.subf %282, %276 : vector<1x32xf32>
    %284 = arith.mulf %283, %281 : vector<1x32xf32>
    %285 = arith.mulf %276, %257 : vector<1x32xf32>
    %286 = arith.addf %284, %285 : vector<1x32xf32>
    %287 = vector.extract_strided_slice %6 {offsets = [6, 0], sizes = [1, 1], strides = [1, 1]} : vector<12x1xf32> to vector<1x1xf32>
    %288 = vector.broadcast %287 : vector<1x1xf32> to vector<1x32xf32>
    %289 = arith.mulf %288, %286 : vector<1x32xf32>
    %c6 = arith.constant 6 : index
    %c0_54 = arith.constant 0 : index
    %290 = vector.load %arg22[%c6, %c0_54] : memref<12x32xf32, #tpu.memory_space<vmem>>, vector<1x32xf32>
    tpu.vector_store %arg22[%c6, %c0_54], %289 {strides = array<i32>} : memref<12x32xf32, #tpu.memory_space<vmem>>, vector<1x32xf32>,
    %291 = vector.broadcast %287 : vector<1x1xf32> to vector<1x32xf32>
    %292 = arith.mulf %291, %286 : vector<1x32xf32>
    %cst_55 = arith.constant 1.000000e+00 : f32
    %293 = vector.broadcast %cst_55 : f32 to vector<1x1xf32>
    %294 = arith.subf %293, %287 : vector<1x1xf32>
    %295 = vector.broadcast %294 : vector<1x1xf32> to vector<1x32xf32>
    %296 = arith.mulf %295, %257 : vector<1x32xf32>
    %297 = arith.addf %292, %296 : vector<1x32xf32>
    %298 = vector.extract_strided_slice %13 {offsets = [7, 0], sizes = [1, 96], strides = [1, 1]} : vector<12x96xf32> to vector<1x96xf32>
    %cst_56 = arith.constant dense<0.000000e+00> : vector<1x96xf32>
    %299 = tpu.matmul %297, %14, %cst_56 {dimension_numbers = #tpu.dot_dimension_numbers<[1], [0], [0], [1], [0, 0, 1, 1], [], []>} : vector<1x32xf32>, vector<32x96xf32>, vector<1x96xf32> -> vector<1x96xf32>
    %300 = arith.addf %299, %15 : vector<1x96xf32>
    %301 = vector.extract_strided_slice %298 {offsets = [0, 0], sizes = [1, 32], strides = [1, 1]} : vector<1x96xf32> to vector<1x32xf32>
    %302 = vector.extract_strided_slice %300 {offsets = [0, 0], sizes = [1, 32], strides = [1, 1]} : vector<1x96xf32> to vector<1x32xf32>
    %303 = arith.addf %301, %302 : vector<1x32xf32>
    %304 = arith.negf %303 : vector<1x32xf32>
    %305 = math.exp %304 : vector<1x32xf32>
    %cst_57 = arith.constant 1.000000e+00 : f32
    %306 = vector.broadcast %cst_57 : f32 to vector<1x32xf32>
    %307 = arith.addf %306, %305 : vector<1x32xf32>
    %308 = arith.divf %306, %307 : vector<1x32xf32>
    %309 = vector.extract_strided_slice %298 {offsets = [0, 32], sizes = [1, 32], strides = [1, 1]} : vector<1x96xf32> to vector<1x32xf32>
    %310 = vector.extract_strided_slice %300 {offsets = [0, 32], sizes = [1, 32], strides = [1, 1]} : vector<1x96xf32> to vector<1x32xf32>
    %311 = arith.addf %309, %310 : vector<1x32xf32>
    %312 = arith.negf %311 : vector<1x32xf32>
    %313 = math.exp %312 : vector<1x32xf32>
    %cst_58 = arith.constant 1.000000e+00 : f32
    %314 = vector.broadcast %cst_58 : f32 to vector<1x32xf32>
    %315 = arith.addf %314, %313 : vector<1x32xf32>
    %316 = arith.divf %314, %315 : vector<1x32xf32>
    %317 = vector.extract_strided_slice %298 {offsets = [0, 64], sizes = [1, 32], strides = [1, 1]} : vector<1x96xf32> to vector<1x32xf32>
    %318 = vector.extract_strided_slice %300 {offsets = [0, 64], sizes = [1, 32], strides = [1, 1]} : vector<1x96xf32> to vector<1x32xf32>
    %319 = arith.mulf %308, %318 : vector<1x32xf32>
    %320 = arith.addf %317, %319 : vector<1x32xf32>
    %321 = math.tanh %320 : vector<1x32xf32>
    %cst_59 = arith.constant 1.000000e+00 : f32
    %322 = vector.broadcast %cst_59 : f32 to vector<1x32xf32>
    %323 = arith.subf %322, %316 : vector<1x32xf32>
    %324 = arith.mulf %323, %321 : vector<1x32xf32>
    %325 = arith.mulf %316, %297 : vector<1x32xf32>
    %326 = arith.addf %324, %325 : vector<1x32xf32>
    %327 = vector.extract_strided_slice %6 {offsets = [7, 0], sizes = [1, 1], strides = [1, 1]} : vector<12x1xf32> to vector<1x1xf32>
    %328 = vector.broadcast %327 : vector<1x1xf32> to vector<1x32xf32>
    %329 = arith.mulf %328, %326 : vector<1x32xf32>
    %c7 = arith.constant 7 : index
    %c0_60 = arith.constant 0 : index
    %330 = vector.load %arg22[%c7, %c0_60] : memref<12x32xf32, #tpu.memory_space<vmem>>, vector<1x32xf32>
    tpu.vector_store %arg22[%c7, %c0_60], %329 {strides = array<i32>} : memref<12x32xf32, #tpu.memory_space<vmem>>, vector<1x32xf32>,
    %331 = vector.broadcast %327 : vector<1x1xf32> to vector<1x32xf32>
    %332 = arith.mulf %331, %326 : vector<1x32xf32>
    %cst_61 = arith.constant 1.000000e+00 : f32
    %333 = vector.broadcast %cst_61 : f32 to vector<1x1xf32>
    %334 = arith.subf %333, %327 : vector<1x1xf32>
    %335 = vector.broadcast %334 : vector<1x1xf32> to vector<1x32xf32>
    %336 = arith.mulf %335, %297 : vector<1x32xf32>
    %337 = arith.addf %332, %336 : vector<1x32xf32>
    %338 = vector.extract_strided_slice %13 {offsets = [8, 0], sizes = [1, 96], strides = [1, 1]} : vector<12x96xf32> to vector<1x96xf32>
    %cst_62 = arith.constant dense<0.000000e+00> : vector<1x96xf32>
    %339 = tpu.matmul %337, %14, %cst_62 {dimension_numbers = #tpu.dot_dimension_numbers<[1], [0], [0], [1], [0, 0, 1, 1], [], []>} : vector<1x32xf32>, vector<32x96xf32>, vector<1x96xf32> -> vector<1x96xf32>
    %340 = arith.addf %339, %15 : vector<1x96xf32>
    %341 = vector.extract_strided_slice %338 {offsets = [0, 0], sizes = [1, 32], strides = [1, 1]} : vector<1x96xf32> to vector<1x32xf32>
    %342 = vector.extract_strided_slice %340 {offsets = [0, 0], sizes = [1, 32], strides = [1, 1]} : vector<1x96xf32> to vector<1x32xf32>
    %343 = arith.addf %341, %342 : vector<1x32xf32>
    %344 = arith.negf %343 : vector<1x32xf32>
    %345 = math.exp %344 : vector<1x32xf32>
    %cst_63 = arith.constant 1.000000e+00 : f32
    %346 = vector.broadcast %cst_63 : f32 to vector<1x32xf32>
    %347 = arith.addf %346, %345 : vector<1x32xf32>
    %348 = arith.divf %346, %347 : vector<1x32xf32>
    %349 = vector.extract_strided_slice %338 {offsets = [0, 32], sizes = [1, 32], strides = [1, 1]} : vector<1x96xf32> to vector<1x32xf32>
    %350 = vector.extract_strided_slice %340 {offsets = [0, 32], sizes = [1, 32], strides = [1, 1]} : vector<1x96xf32> to vector<1x32xf32>
    %351 = arith.addf %349, %350 : vector<1x32xf32>
    %352 = arith.negf %351 : vector<1x32xf32>
    %353 = math.exp %352 : vector<1x32xf32>
    %cst_64 = arith.constant 1.000000e+00 : f32
    %354 = vector.broadcast %cst_64 : f32 to vector<1x32xf32>
    %355 = arith.addf %354, %353 : vector<1x32xf32>
    %356 = arith.divf %354, %355 : vector<1x32xf32>
    %357 = vector.extract_strided_slice %338 {offsets = [0, 64], sizes = [1, 32], strides = [1, 1]} : vector<1x96xf32> to vector<1x32xf32>
    %358 = vector.extract_strided_slice %340 {offsets = [0, 64], sizes = [1, 32], strides = [1, 1]} : vector<1x96xf32> to vector<1x32xf32>
    %359 = arith.mulf %348, %358 : vector<1x32xf32>
    %360 = arith.addf %357, %359 : vector<1x32xf32>
    %361 = math.tanh %360 : vector<1x32xf32>
    %cst_65 = arith.constant 1.000000e+00 : f32
    %362 = vector.broadcast %cst_65 : f32 to vector<1x32xf32>
    %363 = arith.subf %362, %356 : vector<1x32xf32>
    %364 = arith.mulf %363, %361 : vector<1x32xf32>
    %365 = arith.mulf %356, %337 : vector<1x32xf32>
    %366 = arith.addf %364, %365 : vector<1x32xf32>
    %367 = vector.extract_strided_slice %6 {offsets = [8, 0], sizes = [1, 1], strides = [1, 1]} : vector<12x1xf32> to vector<1x1xf32>
    %368 = vector.broadcast %367 : vector<1x1xf32> to vector<1x32xf32>
    %369 = arith.mulf %368, %366 : vector<1x32xf32>
    %c8 = arith.constant 8 : index
    %c0_66 = arith.constant 0 : index
    %370 = vector.load %arg22[%c8, %c0_66] : memref<12x32xf32, #tpu.memory_space<vmem>>, vector<1x32xf32>
    tpu.vector_store %arg22[%c8, %c0_66], %369 {strides = array<i32>} : memref<12x32xf32, #tpu.memory_space<vmem>>, vector<1x32xf32>,
    %371 = vector.broadcast %367 : vector<1x1xf32> to vector<1x32xf32>
    %372 = arith.mulf %371, %366 : vector<1x32xf32>
    %cst_67 = arith.constant 1.000000e+00 : f32
    %373 = vector.broadcast %cst_67 : f32 to vector<1x1xf32>
    %374 = arith.subf %373, %367 : vector<1x1xf32>
    %375 = vector.broadcast %374 : vector<1x1xf32> to vector<1x32xf32>
    %376 = arith.mulf %375, %337 : vector<1x32xf32>
    %377 = arith.addf %372, %376 : vector<1x32xf32>
    %378 = vector.extract_strided_slice %13 {offsets = [9, 0], sizes = [1, 96], strides = [1, 1]} : vector<12x96xf32> to vector<1x96xf32>
    %cst_68 = arith.constant dense<0.000000e+00> : vector<1x96xf32>
    %379 = tpu.matmul %377, %14, %cst_68 {dimension_numbers = #tpu.dot_dimension_numbers<[1], [0], [0], [1], [0, 0, 1, 1], [], []>} : vector<1x32xf32>, vector<32x96xf32>, vector<1x96xf32> -> vector<1x96xf32>
    %380 = arith.addf %379, %15 : vector<1x96xf32>
    %381 = vector.extract_strided_slice %378 {offsets = [0, 0], sizes = [1, 32], strides = [1, 1]} : vector<1x96xf32> to vector<1x32xf32>
    %382 = vector.extract_strided_slice %380 {offsets = [0, 0], sizes = [1, 32], strides = [1, 1]} : vector<1x96xf32> to vector<1x32xf32>
    %383 = arith.addf %381, %382 : vector<1x32xf32>
    %384 = arith.negf %383 : vector<1x32xf32>
    %385 = math.exp %384 : vector<1x32xf32>
    %cst_69 = arith.constant 1.000000e+00 : f32
    %386 = vector.broadcast %cst_69 : f32 to vector<1x32xf32>
    %387 = arith.addf %386, %385 : vector<1x32xf32>
    %388 = arith.divf %386, %387 : vector<1x32xf32>
    %389 = vector.extract_strided_slice %378 {offsets = [0, 32], sizes = [1, 32], strides = [1, 1]} : vector<1x96xf32> to vector<1x32xf32>
    %390 = vector.extract_strided_slice %380 {offsets = [0, 32], sizes = [1, 32], strides = [1, 1]} : vector<1x96xf32> to vector<1x32xf32>
    %391 = arith.addf %389, %390 : vector<1x32xf32>
    %392 = arith.negf %391 : vector<1x32xf32>
    %393 = math.exp %392 : vector<1x32xf32>
    %cst_70 = arith.constant 1.000000e+00 : f32
    %394 = vector.broadcast %cst_70 : f32 to vector<1x32xf32>
    %395 = arith.addf %394, %393 : vector<1x32xf32>
    %396 = arith.divf %394, %395 : vector<1x32xf32>
    %397 = vector.extract_strided_slice %378 {offsets = [0, 64], sizes = [1, 32], strides = [1, 1]} : vector<1x96xf32> to vector<1x32xf32>
    %398 = vector.extract_strided_slice %380 {offsets = [0, 64], sizes = [1, 32], strides = [1, 1]} : vector<1x96xf32> to vector<1x32xf32>
    %399 = arith.mulf %388, %398 : vector<1x32xf32>
    %400 = arith.addf %397, %399 : vector<1x32xf32>
    %401 = math.tanh %400 : vector<1x32xf32>
    %cst_71 = arith.constant 1.000000e+00 : f32
    %402 = vector.broadcast %cst_71 : f32 to vector<1x32xf32>
    %403 = arith.subf %402, %396 : vector<1x32xf32>
    %404 = arith.mulf %403, %401 : vector<1x32xf32>
    %405 = arith.mulf %396, %377 : vector<1x32xf32>
    %406 = arith.addf %404, %405 : vector<1x32xf32>
    %407 = vector.extract_strided_slice %6 {offsets = [9, 0], sizes = [1, 1], strides = [1, 1]} : vector<12x1xf32> to vector<1x1xf32>
    %408 = vector.broadcast %407 : vector<1x1xf32> to vector<1x32xf32>
    %409 = arith.mulf %408, %406 : vector<1x32xf32>
    %c9 = arith.constant 9 : index
    %c0_72 = arith.constant 0 : index
    %410 = vector.load %arg22[%c9, %c0_72] : memref<12x32xf32, #tpu.memory_space<vmem>>, vector<1x32xf32>
    tpu.vector_store %arg22[%c9, %c0_72], %409 {strides = array<i32>} : memref<12x32xf32, #tpu.memory_space<vmem>>, vector<1x32xf32>,
    %411 = vector.broadcast %407 : vector<1x1xf32> to vector<1x32xf32>
    %412 = arith.mulf %411, %406 : vector<1x32xf32>
    %cst_73 = arith.constant 1.000000e+00 : f32
    %413 = vector.broadcast %cst_73 : f32 to vector<1x1xf32>
    %414 = arith.subf %413, %407 : vector<1x1xf32>
    %415 = vector.broadcast %414 : vector<1x1xf32> to vector<1x32xf32>
    %416 = arith.mulf %415, %377 : vector<1x32xf32>
    %417 = arith.addf %412, %416 : vector<1x32xf32>
    %418 = vector.extract_strided_slice %13 {offsets = [10, 0], sizes = [1, 96], strides = [1, 1]} : vector<12x96xf32> to vector<1x96xf32>
    %cst_74 = arith.constant dense<0.000000e+00> : vector<1x96xf32>
    %419 = tpu.matmul %417, %14, %cst_74 {dimension_numbers = #tpu.dot_dimension_numbers<[1], [0], [0], [1], [0, 0, 1, 1], [], []>} : vector<1x32xf32>, vector<32x96xf32>, vector<1x96xf32> -> vector<1x96xf32>
    %420 = arith.addf %419, %15 : vector<1x96xf32>
    %421 = vector.extract_strided_slice %418 {offsets = [0, 0], sizes = [1, 32], strides = [1, 1]} : vector<1x96xf32> to vector<1x32xf32>
    %422 = vector.extract_strided_slice %420 {offsets = [0, 0], sizes = [1, 32], strides = [1, 1]} : vector<1x96xf32> to vector<1x32xf32>
    %423 = arith.addf %421, %422 : vector<1x32xf32>
    %424 = arith.negf %423 : vector<1x32xf32>
    %425 = math.exp %424 : vector<1x32xf32>
    %cst_75 = arith.constant 1.000000e+00 : f32
    %426 = vector.broadcast %cst_75 : f32 to vector<1x32xf32>
    %427 = arith.addf %426, %425 : vector<1x32xf32>
    %428 = arith.divf %426, %427 : vector<1x32xf32>
    %429 = vector.extract_strided_slice %418 {offsets = [0, 32], sizes = [1, 32], strides = [1, 1]} : vector<1x96xf32> to vector<1x32xf32>
    %430 = vector.extract_strided_slice %420 {offsets = [0, 32], sizes = [1, 32], strides = [1, 1]} : vector<1x96xf32> to vector<1x32xf32>
    %431 = arith.addf %429, %430 : vector<1x32xf32>
    %432 = arith.negf %431 : vector<1x32xf32>
    %433 = math.exp %432 : vector<1x32xf32>
    %cst_76 = arith.constant 1.000000e+00 : f32
    %434 = vector.broadcast %cst_76 : f32 to vector<1x32xf32>
    %435 = arith.addf %434, %433 : vector<1x32xf32>
    %436 = arith.divf %434, %435 : vector<1x32xf32>
    %437 = vector.extract_strided_slice %418 {offsets = [0, 64], sizes = [1, 32], strides = [1, 1]} : vector<1x96xf32> to vector<1x32xf32>
    %438 = vector.extract_strided_slice %420 {offsets = [0, 64], sizes = [1, 32], strides = [1, 1]} : vector<1x96xf32> to vector<1x32xf32>
    %439 = arith.mulf %428, %438 : vector<1x32xf32>
    %440 = arith.addf %437, %439 : vector<1x32xf32>
    %441 = math.tanh %440 : vector<1x32xf32>
    %cst_77 = arith.constant 1.000000e+00 : f32
    %442 = vector.broadcast %cst_77 : f32 to vector<1x32xf32>
    %443 = arith.subf %442, %436 : vector<1x32xf32>
    %444 = arith.mulf %443, %441 : vector<1x32xf32>
    %445 = arith.mulf %436, %417 : vector<1x32xf32>
    %446 = arith.addf %444, %445 : vector<1x32xf32>
    %447 = vector.extract_strided_slice %6 {offsets = [10, 0], sizes = [1, 1], strides = [1, 1]} : vector<12x1xf32> to vector<1x1xf32>
    %448 = vector.broadcast %447 : vector<1x1xf32> to vector<1x32xf32>
    %449 = arith.mulf %448, %446 : vector<1x32xf32>
    %c10 = arith.constant 10 : index
    %c0_78 = arith.constant 0 : index
    %450 = vector.load %arg22[%c10, %c0_78] : memref<12x32xf32, #tpu.memory_space<vmem>>, vector<1x32xf32>
    tpu.vector_store %arg22[%c10, %c0_78], %449 {strides = array<i32>} : memref<12x32xf32, #tpu.memory_space<vmem>>, vector<1x32xf32>,
    %451 = vector.broadcast %447 : vector<1x1xf32> to vector<1x32xf32>
    %452 = arith.mulf %451, %446 : vector<1x32xf32>
    %cst_79 = arith.constant 1.000000e+00 : f32
    %453 = vector.broadcast %cst_79 : f32 to vector<1x1xf32>
    %454 = arith.subf %453, %447 : vector<1x1xf32>
    %455 = vector.broadcast %454 : vector<1x1xf32> to vector<1x32xf32>
    %456 = arith.mulf %455, %417 : vector<1x32xf32>
    %457 = arith.addf %452, %456 : vector<1x32xf32>
    %458 = vector.extract_strided_slice %13 {offsets = [11, 0], sizes = [1, 96], strides = [1, 1]} : vector<12x96xf32> to vector<1x96xf32>
    %cst_80 = arith.constant dense<0.000000e+00> : vector<1x96xf32>
    %459 = tpu.matmul %457, %14, %cst_80 {dimension_numbers = #tpu.dot_dimension_numbers<[1], [0], [0], [1], [0, 0, 1, 1], [], []>} : vector<1x32xf32>, vector<32x96xf32>, vector<1x96xf32> -> vector<1x96xf32>
    %460 = arith.addf %459, %15 : vector<1x96xf32>
    %461 = vector.extract_strided_slice %458 {offsets = [0, 0], sizes = [1, 32], strides = [1, 1]} : vector<1x96xf32> to vector<1x32xf32>
    %462 = vector.extract_strided_slice %460 {offsets = [0, 0], sizes = [1, 32], strides = [1, 1]} : vector<1x96xf32> to vector<1x32xf32>
    %463 = arith.addf %461, %462 : vector<1x32xf32>
    %464 = arith.negf %463 : vector<1x32xf32>
    %465 = math.exp %464 : vector<1x32xf32>
    %cst_81 = arith.constant 1.000000e+00 : f32
    %466 = vector.broadcast %cst_81 : f32 to vector<1x32xf32>
    %467 = arith.addf %466, %465 : vector<1x32xf32>
    %468 = arith.divf %466, %467 : vector<1x32xf32>
    %469 = vector.extract_strided_slice %458 {offsets = [0, 32], sizes = [1, 32], strides = [1, 1]} : vector<1x96xf32> to vector<1x32xf32>
    %470 = vector.extract_strided_slice %460 {offsets = [0, 32], sizes = [1, 32], strides = [1, 1]} : vector<1x96xf32> to vector<1x32xf32>
    %471 = arith.addf %469, %470 : vector<1x32xf32>
    %472 = arith.negf %471 : vector<1x32xf32>
    %473 = math.exp %472 : vector<1x32xf32>
    %cst_82 = arith.constant 1.000000e+00 : f32
    %474 = vector.broadcast %cst_82 : f32 to vector<1x32xf32>
    %475 = arith.addf %474, %473 : vector<1x32xf32>
    %476 = arith.divf %474, %475 : vector<1x32xf32>
    %477 = vector.extract_strided_slice %458 {offsets = [0, 64], sizes = [1, 32], strides = [1, 1]} : vector<1x96xf32> to vector<1x32xf32>
    %478 = vector.extract_strided_slice %460 {offsets = [0, 64], sizes = [1, 32], strides = [1, 1]} : vector<1x96xf32> to vector<1x32xf32>
    %479 = arith.mulf %468, %478 : vector<1x32xf32>
    %480 = arith.addf %477, %479 : vector<1x32xf32>
    %481 = math.tanh %480 : vector<1x32xf32>
    %cst_83 = arith.constant 1.000000e+00 : f32
    %482 = vector.broadcast %cst_83 : f32 to vector<1x32xf32>
    %483 = arith.subf %482, %476 : vector<1x32xf32>
    %484 = arith.mulf %483, %481 : vector<1x32xf32>
    %485 = arith.mulf %476, %457 : vector<1x32xf32>
    %486 = arith.addf %484, %485 : vector<1x32xf32>
    %487 = vector.extract_strided_slice %6 {offsets = [11, 0], sizes = [1, 1], strides = [1, 1]} : vector<12x1xf32> to vector<1x1xf32>
    %488 = vector.broadcast %487 : vector<1x1xf32> to vector<1x32xf32>
    %489 = arith.mulf %488, %486 : vector<1x32xf32>
    %c11 = arith.constant 11 : index
    %c0_84 = arith.constant 0 : index
    %490 = vector.load %arg22[%c11, %c0_84] : memref<12x32xf32, #tpu.memory_space<vmem>>, vector<1x32xf32>
    tpu.vector_store %arg22[%c11, %c0_84], %489 {strides = array<i32>} : memref<12x32xf32, #tpu.memory_space<vmem>>, vector<1x32xf32>,
    %c0_85 = arith.constant 0 : index
    %c0_86 = arith.constant 0 : index
    %491 = vector.load %arg22[%c0_85, %c0_86] : memref<12x32xf32, #tpu.memory_space<vmem>>, vector<12x32xf32>
    %c0_87 = arith.constant 0 : index
    %c0_88 = arith.constant 0 : index
    %492 = vector.load %arg10[%c0_87, %c0_88] : memref<32x96xf32, #tpu.memory_space<vmem>>, vector<32x96xf32>
    %cst_89 = arith.constant dense<0.000000e+00> : vector<12x96xf32>
    %493 = tpu.matmul %491, %492, %cst_89 {dimension_numbers = #tpu.dot_dimension_numbers<[1], [0], [0], [1], [0, 0, 1, 1], [], []>} : vector<12x32xf32>, vector<32x96xf32>, vector<12x96xf32> -> vector<12x96xf32>
    %c0_90 = arith.constant 0 : index
    %c0_91 = arith.constant 0 : index
    %494 = vector.load %arg12[%c0_90, %c0_91] : memref<1x96xf32, #tpu.memory_space<vmem>>, vector<1x96xf32>
    %495 = vector.broadcast %494 : vector<1x96xf32> to vector<12x96xf32>
    %496 = arith.addf %493, %495 : vector<12x96xf32>
    %c0_92 = arith.constant 0 : index
    %c0_93 = arith.constant 0 : index
    %497 = vector.load %arg11[%c0_92, %c0_93] : memref<32x96xf32, #tpu.memory_space<vmem>>, vector<32x96xf32>
    %c0_94 = arith.constant 0 : index
    %c0_95 = arith.constant 0 : index
    %498 = vector.load %arg13[%c0_94, %c0_95] : memref<1x96xf32, #tpu.memory_space<vmem>>, vector<1x96xf32>
    %c0_96 = arith.constant 0 : index
    %c1_97 = arith.constant 1 : index
    %c0_98 = arith.constant 0 : index
    %499 = vector.load %arg3[%c0_96, %c1_97, %c0_98] : memref<1x2x32xf32, #tpu.memory_space<vmem>>, vector<1x1x32xf32>
    %500 = vector.shape_cast %499 : vector<1x1x32xf32> to vector<1x32xf32>
    %501 = vector.extract_strided_slice %496 {offsets = [0, 0], sizes = [1, 96], strides = [1, 1]} : vector<12x96xf32> to vector<1x96xf32>
    %cst_99 = arith.constant dense<0.000000e+00> : vector<1x96xf32>
    %502 = tpu.matmul %500, %497, %cst_99 {dimension_numbers = #tpu.dot_dimension_numbers<[1], [0], [0], [1], [0, 0, 1, 1], [], []>} : vector<1x32xf32>, vector<32x96xf32>, vector<1x96xf32> -> vector<1x96xf32>
    %503 = arith.addf %502, %498 : vector<1x96xf32>
    %504 = vector.extract_strided_slice %501 {offsets = [0, 0], sizes = [1, 32], strides = [1, 1]} : vector<1x96xf32> to vector<1x32xf32>
    %505 = vector.extract_strided_slice %503 {offsets = [0, 0], sizes = [1, 32], strides = [1, 1]} : vector<1x96xf32> to vector<1x32xf32>
    %506 = arith.addf %504, %505 : vector<1x32xf32>
    %507 = arith.negf %506 : vector<1x32xf32>
    %508 = math.exp %507 : vector<1x32xf32>
    %cst_100 = arith.constant 1.000000e+00 : f32
    %509 = vector.broadcast %cst_100 : f32 to vector<1x32xf32>
    %510 = arith.addf %509, %508 : vector<1x32xf32>
    %511 = arith.divf %509, %510 : vector<1x32xf32>
    %512 = vector.extract_strided_slice %501 {offsets = [0, 32], sizes = [1, 32], strides = [1, 1]} : vector<1x96xf32> to vector<1x32xf32>
    %513 = vector.extract_strided_slice %503 {offsets = [0, 32], sizes = [1, 32], strides = [1, 1]} : vector<1x96xf32> to vector<1x32xf32>
    %514 = arith.addf %512, %513 : vector<1x32xf32>
    %515 = arith.negf %514 : vector<1x32xf32>
    %516 = math.exp %515 : vector<1x32xf32>
    %cst_101 = arith.constant 1.000000e+00 : f32
    %517 = vector.broadcast %cst_101 : f32 to vector<1x32xf32>
    %518 = arith.addf %517, %516 : vector<1x32xf32>
    %519 = arith.divf %517, %518 : vector<1x32xf32>
    %520 = vector.extract_strided_slice %501 {offsets = [0, 64], sizes = [1, 32], strides = [1, 1]} : vector<1x96xf32> to vector<1x32xf32>
    %521 = vector.extract_strided_slice %503 {offsets = [0, 64], sizes = [1, 32], strides = [1, 1]} : vector<1x96xf32> to vector<1x32xf32>
    %522 = arith.mulf %511, %521 : vector<1x32xf32>
    %523 = arith.addf %520, %522 : vector<1x32xf32>
    %524 = math.tanh %523 : vector<1x32xf32>
    %cst_102 = arith.constant 1.000000e+00 : f32
    %525 = vector.broadcast %cst_102 : f32 to vector<1x32xf32>
    %526 = arith.subf %525, %519 : vector<1x32xf32>
    %527 = arith.mulf %526, %524 : vector<1x32xf32>
    %528 = arith.mulf %519, %500 : vector<1x32xf32>
    %529 = arith.addf %527, %528 : vector<1x32xf32>
    %530 = vector.extract_strided_slice %6 {offsets = [0, 0], sizes = [1, 1], strides = [1, 1]} : vector<12x1xf32> to vector<1x1xf32>
    %531 = vector.broadcast %530 : vector<1x1xf32> to vector<1x32xf32>
    %532 = arith.mulf %531, %529 : vector<1x32xf32>
    %c0_103 = arith.constant 0 : index
    %c0_104 = arith.constant 0 : index
    %533 = vector.load %arg23[%c0_103, %c0_104] : memref<12x32xf32, #tpu.memory_space<vmem>>, vector<1x32xf32>
    tpu.vector_store %arg23[%c0_103, %c0_104], %532 {strides = array<i32>} : memref<12x32xf32, #tpu.memory_space<vmem>>, vector<1x32xf32>,
    %534 = vector.broadcast %530 : vector<1x1xf32> to vector<1x32xf32>
    %535 = arith.mulf %534, %529 : vector<1x32xf32>
    %cst_105 = arith.constant 1.000000e+00 : f32
    %536 = vector.broadcast %cst_105 : f32 to vector<1x1xf32>
    %537 = arith.subf %536, %530 : vector<1x1xf32>
    %538 = vector.broadcast %537 : vector<1x1xf32> to vector<1x32xf32>
    %539 = arith.mulf %538, %500 : vector<1x32xf32>
    %540 = arith.addf %535, %539 : vector<1x32xf32>
    %541 = vector.extract_strided_slice %496 {offsets = [1, 0], sizes = [1, 96], strides = [1, 1]} : vector<12x96xf32> to vector<1x96xf32>
    %cst_106 = arith.constant dense<0.000000e+00> : vector<1x96xf32>
    %542 = tpu.matmul %540, %497, %cst_106 {dimension_numbers = #tpu.dot_dimension_numbers<[1], [0], [0], [1], [0, 0, 1, 1], [], []>} : vector<1x32xf32>, vector<32x96xf32>, vector<1x96xf32> -> vector<1x96xf32>
    %543 = arith.addf %542, %498 : vector<1x96xf32>
    %544 = vector.extract_strided_slice %541 {offsets = [0, 0], sizes = [1, 32], strides = [1, 1]} : vector<1x96xf32> to vector<1x32xf32>
    %545 = vector.extract_strided_slice %543 {offsets = [0, 0], sizes = [1, 32], strides = [1, 1]} : vector<1x96xf32> to vector<1x32xf32>
    %546 = arith.addf %544, %545 : vector<1x32xf32>
    %547 = arith.negf %546 : vector<1x32xf32>
    %548 = math.exp %547 : vector<1x32xf32>
    %cst_107 = arith.constant 1.000000e+00 : f32
    %549 = vector.broadcast %cst_107 : f32 to vector<1x32xf32>
    %550 = arith.addf %549, %548 : vector<1x32xf32>
    %551 = arith.divf %549, %550 : vector<1x32xf32>
    %552 = vector.extract_strided_slice %541 {offsets = [0, 32], sizes = [1, 32], strides = [1, 1]} : vector<1x96xf32> to vector<1x32xf32>
    %553 = vector.extract_strided_slice %543 {offsets = [0, 32], sizes = [1, 32], strides = [1, 1]} : vector<1x96xf32> to vector<1x32xf32>
    %554 = arith.addf %552, %553 : vector<1x32xf32>
    %555 = arith.negf %554 : vector<1x32xf32>
    %556 = math.exp %555 : vector<1x32xf32>
    %cst_108 = arith.constant 1.000000e+00 : f32
    %557 = vector.broadcast %cst_108 : f32 to vector<1x32xf32>
    %558 = arith.addf %557, %556 : vector<1x32xf32>
    %559 = arith.divf %557, %558 : vector<1x32xf32>
    %560 = vector.extract_strided_slice %541 {offsets = [0, 64], sizes = [1, 32], strides = [1, 1]} : vector<1x96xf32> to vector<1x32xf32>
    %561 = vector.extract_strided_slice %543 {offsets = [0, 64], sizes = [1, 32], strides = [1, 1]} : vector<1x96xf32> to vector<1x32xf32>
    %562 = arith.mulf %551, %561 : vector<1x32xf32>
    %563 = arith.addf %560, %562 : vector<1x32xf32>
    %564 = math.tanh %563 : vector<1x32xf32>
    %cst_109 = arith.constant 1.000000e+00 : f32
    %565 = vector.broadcast %cst_109 : f32 to vector<1x32xf32>
    %566 = arith.subf %565, %559 : vector<1x32xf32>
    %567 = arith.mulf %566, %564 : vector<1x32xf32>
    %568 = arith.mulf %559, %540 : vector<1x32xf32>
    %569 = arith.addf %567, %568 : vector<1x32xf32>
    %570 = vector.extract_strided_slice %6 {offsets = [1, 0], sizes = [1, 1], strides = [1, 1]} : vector<12x1xf32> to vector<1x1xf32>
    %571 = vector.broadcast %570 : vector<1x1xf32> to vector<1x32xf32>
    %572 = arith.mulf %571, %569 : vector<1x32xf32>
    %c1_110 = arith.constant 1 : index
    %c0_111 = arith.constant 0 : index
    %573 = vector.load %arg23[%c1_110, %c0_111] : memref<12x32xf32, #tpu.memory_space<vmem>>, vector<1x32xf32>
    tpu.vector_store %arg23[%c1_110, %c0_111], %572 {strides = array<i32>} : memref<12x32xf32, #tpu.memory_space<vmem>>, vector<1x32xf32>,
    %574 = vector.broadcast %570 : vector<1x1xf32> to vector<1x32xf32>
    %575 = arith.mulf %574, %569 : vector<1x32xf32>
    %cst_112 = arith.constant 1.000000e+00 : f32
    %576 = vector.broadcast %cst_112 : f32 to vector<1x1xf32>
    %577 = arith.subf %576, %570 : vector<1x1xf32>
    %578 = vector.broadcast %577 : vector<1x1xf32> to vector<1x32xf32>
    %579 = arith.mulf %578, %540 : vector<1x32xf32>
    %580 = arith.addf %575, %579 : vector<1x32xf32>
    %581 = vector.extract_strided_slice %496 {offsets = [2, 0], sizes = [1, 96], strides = [1, 1]} : vector<12x96xf32> to vector<1x96xf32>
    %cst_113 = arith.constant dense<0.000000e+00> : vector<1x96xf32>
    %582 = tpu.matmul %580, %497, %cst_113 {dimension_numbers = #tpu.dot_dimension_numbers<[1], [0], [0], [1], [0, 0, 1, 1], [], []>} : vector<1x32xf32>, vector<32x96xf32>, vector<1x96xf32> -> vector<1x96xf32>
    %583 = arith.addf %582, %498 : vector<1x96xf32>
    %584 = vector.extract_strided_slice %581 {offsets = [0, 0], sizes = [1, 32], strides = [1, 1]} : vector<1x96xf32> to vector<1x32xf32>
    %585 = vector.extract_strided_slice %583 {offsets = [0, 0], sizes = [1, 32], strides = [1, 1]} : vector<1x96xf32> to vector<1x32xf32>
    %586 = arith.addf %584, %585 : vector<1x32xf32>
    %587 = arith.negf %586 : vector<1x32xf32>
    %588 = math.exp %587 : vector<1x32xf32>
    %cst_114 = arith.constant 1.000000e+00 : f32
    %589 = vector.broadcast %cst_114 : f32 to vector<1x32xf32>
    %590 = arith.addf %589, %588 : vector<1x32xf32>
    %591 = arith.divf %589, %590 : vector<1x32xf32>
    %592 = vector.extract_strided_slice %581 {offsets = [0, 32], sizes = [1, 32], strides = [1, 1]} : vector<1x96xf32> to vector<1x32xf32>
    %593 = vector.extract_strided_slice %583 {offsets = [0, 32], sizes = [1, 32], strides = [1, 1]} : vector<1x96xf32> to vector<1x32xf32>
    %594 = arith.addf %592, %593 : vector<1x32xf32>
    %595 = arith.negf %594 : vector<1x32xf32>
    %596 = math.exp %595 : vector<1x32xf32>
    %cst_115 = arith.constant 1.000000e+00 : f32
    %597 = vector.broadcast %cst_115 : f32 to vector<1x32xf32>
    %598 = arith.addf %597, %596 : vector<1x32xf32>
    %599 = arith.divf %597, %598 : vector<1x32xf32>
    %600 = vector.extract_strided_slice %581 {offsets = [0, 64], sizes = [1, 32], strides = [1, 1]} : vector<1x96xf32> to vector<1x32xf32>
    %601 = vector.extract_strided_slice %583 {offsets = [0, 64], sizes = [1, 32], strides = [1, 1]} : vector<1x96xf32> to vector<1x32xf32>
    %602 = arith.mulf %591, %601 : vector<1x32xf32>
    %603 = arith.addf %600, %602 : vector<1x32xf32>
    %604 = math.tanh %603 : vector<1x32xf32>
    %cst_116 = arith.constant 1.000000e+00 : f32
    %605 = vector.broadcast %cst_116 : f32 to vector<1x32xf32>
    %606 = arith.subf %605, %599 : vector<1x32xf32>
    %607 = arith.mulf %606, %604 : vector<1x32xf32>
    %608 = arith.mulf %599, %580 : vector<1x32xf32>
    %609 = arith.addf %607, %608 : vector<1x32xf32>
    %610 = vector.extract_strided_slice %6 {offsets = [2, 0], sizes = [1, 1], strides = [1, 1]} : vector<12x1xf32> to vector<1x1xf32>
    %611 = vector.broadcast %610 : vector<1x1xf32> to vector<1x32xf32>
    %612 = arith.mulf %611, %609 : vector<1x32xf32>
    %c2_117 = arith.constant 2 : index
    %c0_118 = arith.constant 0 : index
    %613 = vector.load %arg23[%c2_117, %c0_118] : memref<12x32xf32, #tpu.memory_space<vmem>>, vector<1x32xf32>
    tpu.vector_store %arg23[%c2_117, %c0_118], %612 {strides = array<i32>} : memref<12x32xf32, #tpu.memory_space<vmem>>, vector<1x32xf32>,
    %614 = vector.broadcast %610 : vector<1x1xf32> to vector<1x32xf32>
    %615 = arith.mulf %614, %609 : vector<1x32xf32>
    %cst_119 = arith.constant 1.000000e+00 : f32
    %616 = vector.broadcast %cst_119 : f32 to vector<1x1xf32>
    %617 = arith.subf %616, %610 : vector<1x1xf32>
    %618 = vector.broadcast %617 : vector<1x1xf32> to vector<1x32xf32>
    %619 = arith.mulf %618, %580 : vector<1x32xf32>
    %620 = arith.addf %615, %619 : vector<1x32xf32>
    %621 = vector.extract_strided_slice %496 {offsets = [3, 0], sizes = [1, 96], strides = [1, 1]} : vector<12x96xf32> to vector<1x96xf32>
    %cst_120 = arith.constant dense<0.000000e+00> : vector<1x96xf32>
    %622 = tpu.matmul %620, %497, %cst_120 {dimension_numbers = #tpu.dot_dimension_numbers<[1], [0], [0], [1], [0, 0, 1, 1], [], []>} : vector<1x32xf32>, vector<32x96xf32>, vector<1x96xf32> -> vector<1x96xf32>
    %623 = arith.addf %622, %498 : vector<1x96xf32>
    %624 = vector.extract_strided_slice %621 {offsets = [0, 0], sizes = [1, 32], strides = [1, 1]} : vector<1x96xf32> to vector<1x32xf32>
    %625 = vector.extract_strided_slice %623 {offsets = [0, 0], sizes = [1, 32], strides = [1, 1]} : vector<1x96xf32> to vector<1x32xf32>
    %626 = arith.addf %624, %625 : vector<1x32xf32>
    %627 = arith.negf %626 : vector<1x32xf32>
    %628 = math.exp %627 : vector<1x32xf32>
    %cst_121 = arith.constant 1.000000e+00 : f32
    %629 = vector.broadcast %cst_121 : f32 to vector<1x32xf32>
    %630 = arith.addf %629, %628 : vector<1x32xf32>
    %631 = arith.divf %629, %630 : vector<1x32xf32>
    %632 = vector.extract_strided_slice %621 {offsets = [0, 32], sizes = [1, 32], strides = [1, 1]} : vector<1x96xf32> to vector<1x32xf32>
    %633 = vector.extract_strided_slice %623 {offsets = [0, 32], sizes = [1, 32], strides = [1, 1]} : vector<1x96xf32> to vector<1x32xf32>
    %634 = arith.addf %632, %633 : vector<1x32xf32>
    %635 = arith.negf %634 : vector<1x32xf32>
    %636 = math.exp %635 : vector<1x32xf32>
    %cst_122 = arith.constant 1.000000e+00 : f32
    %637 = vector.broadcast %cst_122 : f32 to vector<1x32xf32>
    %638 = arith.addf %637, %636 : vector<1x32xf32>
    %639 = arith.divf %637, %638 : vector<1x32xf32>
    %640 = vector.extract_strided_slice %621 {offsets = [0, 64], sizes = [1, 32], strides = [1, 1]} : vector<1x96xf32> to vector<1x32xf32>
    %641 = vector.extract_strided_slice %623 {offsets = [0, 64], sizes = [1, 32], strides = [1, 1]} : vector<1x96xf32> to vector<1x32xf32>
    %642 = arith.mulf %631, %641 : vector<1x32xf32>
    %643 = arith.addf %640, %642 : vector<1x32xf32>
    %644 = math.tanh %643 : vector<1x32xf32>
    %cst_123 = arith.constant 1.000000e+00 : f32
    %645 = vector.broadcast %cst_123 : f32 to vector<1x32xf32>
    %646 = arith.subf %645, %639 : vector<1x32xf32>
    %647 = arith.mulf %646, %644 : vector<1x32xf32>
    %648 = arith.mulf %639, %620 : vector<1x32xf32>
    %649 = arith.addf %647, %648 : vector<1x32xf32>
    %650 = vector.extract_strided_slice %6 {offsets = [3, 0], sizes = [1, 1], strides = [1, 1]} : vector<12x1xf32> to vector<1x1xf32>
    %651 = vector.broadcast %650 : vector<1x1xf32> to vector<1x32xf32>
    %652 = arith.mulf %651, %649 : vector<1x32xf32>
    %c3_124 = arith.constant 3 : index
    %c0_125 = arith.constant 0 : index
    %653 = vector.load %arg23[%c3_124, %c0_125] : memref<12x32xf32, #tpu.memory_space<vmem>>, vector<1x32xf32>
    tpu.vector_store %arg23[%c3_124, %c0_125], %652 {strides = array<i32>} : memref<12x32xf32, #tpu.memory_space<vmem>>, vector<1x32xf32>,
    %654 = vector.broadcast %650 : vector<1x1xf32> to vector<1x32xf32>
    %655 = arith.mulf %654, %649 : vector<1x32xf32>
    %cst_126 = arith.constant 1.000000e+00 : f32
    %656 = vector.broadcast %cst_126 : f32 to vector<1x1xf32>
    %657 = arith.subf %656, %650 : vector<1x1xf32>
    %658 = vector.broadcast %657 : vector<1x1xf32> to vector<1x32xf32>
    %659 = arith.mulf %658, %620 : vector<1x32xf32>
    %660 = arith.addf %655, %659 : vector<1x32xf32>
    %661 = vector.extract_strided_slice %496 {offsets = [4, 0], sizes = [1, 96], strides = [1, 1]} : vector<12x96xf32> to vector<1x96xf32>
    %cst_127 = arith.constant dense<0.000000e+00> : vector<1x96xf32>
    %662 = tpu.matmul %660, %497, %cst_127 {dimension_numbers = #tpu.dot_dimension_numbers<[1], [0], [0], [1], [0, 0, 1, 1], [], []>} : vector<1x32xf32>, vector<32x96xf32>, vector<1x96xf32> -> vector<1x96xf32>
    %663 = arith.addf %662, %498 : vector<1x96xf32>
    %664 = vector.extract_strided_slice %661 {offsets = [0, 0], sizes = [1, 32], strides = [1, 1]} : vector<1x96xf32> to vector<1x32xf32>
    %665 = vector.extract_strided_slice %663 {offsets = [0, 0], sizes = [1, 32], strides = [1, 1]} : vector<1x96xf32> to vector<1x32xf32>
    %666 = arith.addf %664, %665 : vector<1x32xf32>
    %667 = arith.negf %666 : vector<1x32xf32>
    %668 = math.exp %667 : vector<1x32xf32>
    %cst_128 = arith.constant 1.000000e+00 : f32
    %669 = vector.broadcast %cst_128 : f32 to vector<1x32xf32>
    %670 = arith.addf %669, %668 : vector<1x32xf32>
    %671 = arith.divf %669, %670 : vector<1x32xf32>
    %672 = vector.extract_strided_slice %661 {offsets = [0, 32], sizes = [1, 32], strides = [1, 1]} : vector<1x96xf32> to vector<1x32xf32>
    %673 = vector.extract_strided_slice %663 {offsets = [0, 32], sizes = [1, 32], strides = [1, 1]} : vector<1x96xf32> to vector<1x32xf32>
    %674 = arith.addf %672, %673 : vector<1x32xf32>
    %675 = arith.negf %674 : vector<1x32xf32>
    %676 = math.exp %675 : vector<1x32xf32>
    %cst_129 = arith.constant 1.000000e+00 : f32
    %677 = vector.broadcast %cst_129 : f32 to vector<1x32xf32>
    %678 = arith.addf %677, %676 : vector<1x32xf32>
    %679 = arith.divf %677, %678 : vector<1x32xf32>
    %680 = vector.extract_strided_slice %661 {offsets = [0, 64], sizes = [1, 32], strides = [1, 1]} : vector<1x96xf32> to vector<1x32xf32>
    %681 = vector.extract_strided_slice %663 {offsets = [0, 64], sizes = [1, 32], strides = [1, 1]} : vector<1x96xf32> to vector<1x32xf32>
    %682 = arith.mulf %671, %681 : vector<1x32xf32>
    %683 = arith.addf %680, %682 : vector<1x32xf32>
    %684 = math.tanh %683 : vector<1x32xf32>
    %cst_130 = arith.constant 1.000000e+00 : f32
    %685 = vector.broadcast %cst_130 : f32 to vector<1x32xf32>
    %686 = arith.subf %685, %679 : vector<1x32xf32>
    %687 = arith.mulf %686, %684 : vector<1x32xf32>
    %688 = arith.mulf %679, %660 : vector<1x32xf32>
    %689 = arith.addf %687, %688 : vector<1x32xf32>
    %690 = vector.extract_strided_slice %6 {offsets = [4, 0], sizes = [1, 1], strides = [1, 1]} : vector<12x1xf32> to vector<1x1xf32>
    %691 = vector.broadcast %690 : vector<1x1xf32> to vector<1x32xf32>
    %692 = arith.mulf %691, %689 : vector<1x32xf32>
    %c4_131 = arith.constant 4 : index
    %c0_132 = arith.constant 0 : index
    %693 = vector.load %arg23[%c4_131, %c0_132] : memref<12x32xf32, #tpu.memory_space<vmem>>, vector<1x32xf32>
    tpu.vector_store %arg23[%c4_131, %c0_132], %692 {strides = array<i32>} : memref<12x32xf32, #tpu.memory_space<vmem>>, vector<1x32xf32>,
    %694 = vector.broadcast %690 : vector<1x1xf32> to vector<1x32xf32>
    %695 = arith.mulf %694, %689 : vector<1x32xf32>
    %cst_133 = arith.constant 1.000000e+00 : f32
    %696 = vector.broadcast %cst_133 : f32 to vector<1x1xf32>
    %697 = arith.subf %696, %690 : vector<1x1xf32>
    %698 = vector.broadcast %697 : vector<1x1xf32> to vector<1x32xf32>
    %699 = arith.mulf %698, %660 : vector<1x32xf32>
    %700 = arith.addf %695, %699 : vector<1x32xf32>
    %701 = vector.extract_strided_slice %496 {offsets = [5, 0], sizes = [1, 96], strides = [1, 1]} : vector<12x96xf32> to vector<1x96xf32>
    %cst_134 = arith.constant dense<0.000000e+00> : vector<1x96xf32>
    %702 = tpu.matmul %700, %497, %cst_134 {dimension_numbers = #tpu.dot_dimension_numbers<[1], [0], [0], [1], [0, 0, 1, 1], [], []>} : vector<1x32xf32>, vector<32x96xf32>, vector<1x96xf32> -> vector<1x96xf32>
    %703 = arith.addf %702, %498 : vector<1x96xf32>
    %704 = vector.extract_strided_slice %701 {offsets = [0, 0], sizes = [1, 32], strides = [1, 1]} : vector<1x96xf32> to vector<1x32xf32>
    %705 = vector.extract_strided_slice %703 {offsets = [0, 0], sizes = [1, 32], strides = [1, 1]} : vector<1x96xf32> to vector<1x32xf32>
    %706 = arith.addf %704, %705 : vector<1x32xf32>
    %707 = arith.negf %706 : vector<1x32xf32>
    %708 = math.exp %707 : vector<1x32xf32>
    %cst_135 = arith.constant 1.000000e+00 : f32
    %709 = vector.broadcast %cst_135 : f32 to vector<1x32xf32>
    %710 = arith.addf %709, %708 : vector<1x32xf32>
    %711 = arith.divf %709, %710 : vector<1x32xf32>
    %712 = vector.extract_strided_slice %701 {offsets = [0, 32], sizes = [1, 32], strides = [1, 1]} : vector<1x96xf32> to vector<1x32xf32>
    %713 = vector.extract_strided_slice %703 {offsets = [0, 32], sizes = [1, 32], strides = [1, 1]} : vector<1x96xf32> to vector<1x32xf32>
    %714 = arith.addf %712, %713 : vector<1x32xf32>
    %715 = arith.negf %714 : vector<1x32xf32>
    %716 = math.exp %715 : vector<1x32xf32>
    %cst_136 = arith.constant 1.000000e+00 : f32
    %717 = vector.broadcast %cst_136 : f32 to vector<1x32xf32>
    %718 = arith.addf %717, %716 : vector<1x32xf32>
    %719 = arith.divf %717, %718 : vector<1x32xf32>
    %720 = vector.extract_strided_slice %701 {offsets = [0, 64], sizes = [1, 32], strides = [1, 1]} : vector<1x96xf32> to vector<1x32xf32>
    %721 = vector.extract_strided_slice %703 {offsets = [0, 64], sizes = [1, 32], strides = [1, 1]} : vector<1x96xf32> to vector<1x32xf32>
    %722 = arith.mulf %711, %721 : vector<1x32xf32>
    %723 = arith.addf %720, %722 : vector<1x32xf32>
    %724 = math.tanh %723 : vector<1x32xf32>
    %cst_137 = arith.constant 1.000000e+00 : f32
    %725 = vector.broadcast %cst_137 : f32 to vector<1x32xf32>
    %726 = arith.subf %725, %719 : vector<1x32xf32>
    %727 = arith.mulf %726, %724 : vector<1x32xf32>
    %728 = arith.mulf %719, %700 : vector<1x32xf32>
    %729 = arith.addf %727, %728 : vector<1x32xf32>
    %730 = vector.extract_strided_slice %6 {offsets = [5, 0], sizes = [1, 1], strides = [1, 1]} : vector<12x1xf32> to vector<1x1xf32>
    %731 = vector.broadcast %730 : vector<1x1xf32> to vector<1x32xf32>
    %732 = arith.mulf %731, %729 : vector<1x32xf32>
    %c5_138 = arith.constant 5 : index
    %c0_139 = arith.constant 0 : index
    %733 = vector.load %arg23[%c5_138, %c0_139] : memref<12x32xf32, #tpu.memory_space<vmem>>, vector<1x32xf32>
    tpu.vector_store %arg23[%c5_138, %c0_139], %732 {strides = array<i32>} : memref<12x32xf32, #tpu.memory_space<vmem>>, vector<1x32xf32>,
    %734 = vector.broadcast %730 : vector<1x1xf32> to vector<1x32xf32>
    %735 = arith.mulf %734, %729 : vector<1x32xf32>
    %cst_140 = arith.constant 1.000000e+00 : f32
    %736 = vector.broadcast %cst_140 : f32 to vector<1x1xf32>
    %737 = arith.subf %736, %730 : vector<1x1xf32>
    %738 = vector.broadcast %737 : vector<1x1xf32> to vector<1x32xf32>
    %739 = arith.mulf %738, %700 : vector<1x32xf32>
    %740 = arith.addf %735, %739 : vector<1x32xf32>
    %741 = vector.extract_strided_slice %496 {offsets = [6, 0], sizes = [1, 96], strides = [1, 1]} : vector<12x96xf32> to vector<1x96xf32>
    %cst_141 = arith.constant dense<0.000000e+00> : vector<1x96xf32>
    %742 = tpu.matmul %740, %497, %cst_141 {dimension_numbers = #tpu.dot_dimension_numbers<[1], [0], [0], [1], [0, 0, 1, 1], [], []>} : vector<1x32xf32>, vector<32x96xf32>, vector<1x96xf32> -> vector<1x96xf32>
    %743 = arith.addf %742, %498 : vector<1x96xf32>
    %744 = vector.extract_strided_slice %741 {offsets = [0, 0], sizes = [1, 32], strides = [1, 1]} : vector<1x96xf32> to vector<1x32xf32>
    %745 = vector.extract_strided_slice %743 {offsets = [0, 0], sizes = [1, 32], strides = [1, 1]} : vector<1x96xf32> to vector<1x32xf32>
    %746 = arith.addf %744, %745 : vector<1x32xf32>
    %747 = arith.negf %746 : vector<1x32xf32>
    %748 = math.exp %747 : vector<1x32xf32>
    %cst_142 = arith.constant 1.000000e+00 : f32
    %749 = vector.broadcast %cst_142 : f32 to vector<1x32xf32>
    %750 = arith.addf %749, %748 : vector<1x32xf32>
    %751 = arith.divf %749, %750 : vector<1x32xf32>
    %752 = vector.extract_strided_slice %741 {offsets = [0, 32], sizes = [1, 32], strides = [1, 1]} : vector<1x96xf32> to vector<1x32xf32>
    %753 = vector.extract_strided_slice %743 {offsets = [0, 32], sizes = [1, 32], strides = [1, 1]} : vector<1x96xf32> to vector<1x32xf32>
    %754 = arith.addf %752, %753 : vector<1x32xf32>
    %755 = arith.negf %754 : vector<1x32xf32>
    %756 = math.exp %755 : vector<1x32xf32>
    %cst_143 = arith.constant 1.000000e+00 : f32
    %757 = vector.broadcast %cst_143 : f32 to vector<1x32xf32>
    %758 = arith.addf %757, %756 : vector<1x32xf32>
    %759 = arith.divf %757, %758 : vector<1x32xf32>
    %760 = vector.extract_strided_slice %741 {offsets = [0, 64], sizes = [1, 32], strides = [1, 1]} : vector<1x96xf32> to vector<1x32xf32>
    %761 = vector.extract_strided_slice %743 {offsets = [0, 64], sizes = [1, 32], strides = [1, 1]} : vector<1x96xf32> to vector<1x32xf32>
    %762 = arith.mulf %751, %761 : vector<1x32xf32>
    %763 = arith.addf %760, %762 : vector<1x32xf32>
    %764 = math.tanh %763 : vector<1x32xf32>
    %cst_144 = arith.constant 1.000000e+00 : f32
    %765 = vector.broadcast %cst_144 : f32 to vector<1x32xf32>
    %766 = arith.subf %765, %759 : vector<1x32xf32>
    %767 = arith.mulf %766, %764 : vector<1x32xf32>
    %768 = arith.mulf %759, %740 : vector<1x32xf32>
    %769 = arith.addf %767, %768 : vector<1x32xf32>
    %770 = vector.extract_strided_slice %6 {offsets = [6, 0], sizes = [1, 1], strides = [1, 1]} : vector<12x1xf32> to vector<1x1xf32>
    %771 = vector.broadcast %770 : vector<1x1xf32> to vector<1x32xf32>
    %772 = arith.mulf %771, %769 : vector<1x32xf32>
    %c6_145 = arith.constant 6 : index
    %c0_146 = arith.constant 0 : index
    %773 = vector.load %arg23[%c6_145, %c0_146] : memref<12x32xf32, #tpu.memory_space<vmem>>, vector<1x32xf32>
    tpu.vector_store %arg23[%c6_145, %c0_146], %772 {strides = array<i32>} : memref<12x32xf32, #tpu.memory_space<vmem>>, vector<1x32xf32>,
    %774 = vector.broadcast %770 : vector<1x1xf32> to vector<1x32xf32>
    %775 = arith.mulf %774, %769 : vector<1x32xf32>
    %cst_147 = arith.constant 1.000000e+00 : f32
    %776 = vector.broadcast %cst_147 : f32 to vector<1x1xf32>
    %777 = arith.subf %776, %770 : vector<1x1xf32>
    %778 = vector.broadcast %777 : vector<1x1xf32> to vector<1x32xf32>
    %779 = arith.mulf %778, %740 : vector<1x32xf32>
    %780 = arith.addf %775, %779 : vector<1x32xf32>
    %781 = vector.extract_strided_slice %496 {offsets = [7, 0], sizes = [1, 96], strides = [1, 1]} : vector<12x96xf32> to vector<1x96xf32>
    %cst_148 = arith.constant dense<0.000000e+00> : vector<1x96xf32>
    %782 = tpu.matmul %780, %497, %cst_148 {dimension_numbers = #tpu.dot_dimension_numbers<[1], [0], [0], [1], [0, 0, 1, 1], [], []>} : vector<1x32xf32>, vector<32x96xf32>, vector<1x96xf32> -> vector<1x96xf32>
    %783 = arith.addf %782, %498 : vector<1x96xf32>
    %784 = vector.extract_strided_slice %781 {offsets = [0, 0], sizes = [1, 32], strides = [1, 1]} : vector<1x96xf32> to vector<1x32xf32>
    %785 = vector.extract_strided_slice %783 {offsets = [0, 0], sizes = [1, 32], strides = [1, 1]} : vector<1x96xf32> to vector<1x32xf32>
    %786 = arith.addf %784, %785 : vector<1x32xf32>
    %787 = arith.negf %786 : vector<1x32xf32>
    %788 = math.exp %787 : vector<1x32xf32>
    %cst_149 = arith.constant 1.000000e+00 : f32
    %789 = vector.broadcast %cst_149 : f32 to vector<1x32xf32>
    %790 = arith.addf %789, %788 : vector<1x32xf32>
    %791 = arith.divf %789, %790 : vector<1x32xf32>
    %792 = vector.extract_strided_slice %781 {offsets = [0, 32], sizes = [1, 32], strides = [1, 1]} : vector<1x96xf32> to vector<1x32xf32>
    %793 = vector.extract_strided_slice %783 {offsets = [0, 32], sizes = [1, 32], strides = [1, 1]} : vector<1x96xf32> to vector<1x32xf32>
    %794 = arith.addf %792, %793 : vector<1x32xf32>
    %795 = arith.negf %794 : vector<1x32xf32>
    %796 = math.exp %795 : vector<1x32xf32>
    %cst_150 = arith.constant 1.000000e+00 : f32
    %797 = vector.broadcast %cst_150 : f32 to vector<1x32xf32>
    %798 = arith.addf %797, %796 : vector<1x32xf32>
    %799 = arith.divf %797, %798 : vector<1x32xf32>
    %800 = vector.extract_strided_slice %781 {offsets = [0, 64], sizes = [1, 32], strides = [1, 1]} : vector<1x96xf32> to vector<1x32xf32>
    %801 = vector.extract_strided_slice %783 {offsets = [0, 64], sizes = [1, 32], strides = [1, 1]} : vector<1x96xf32> to vector<1x32xf32>
    %802 = arith.mulf %791, %801 : vector<1x32xf32>
    %803 = arith.addf %800, %802 : vector<1x32xf32>
    %804 = math.tanh %803 : vector<1x32xf32>
    %cst_151 = arith.constant 1.000000e+00 : f32
    %805 = vector.broadcast %cst_151 : f32 to vector<1x32xf32>
    %806 = arith.subf %805, %799 : vector<1x32xf32>
    %807 = arith.mulf %806, %804 : vector<1x32xf32>
    %808 = arith.mulf %799, %780 : vector<1x32xf32>
    %809 = arith.addf %807, %808 : vector<1x32xf32>
    %810 = vector.extract_strided_slice %6 {offsets = [7, 0], sizes = [1, 1], strides = [1, 1]} : vector<12x1xf32> to vector<1x1xf32>
    %811 = vector.broadcast %810 : vector<1x1xf32> to vector<1x32xf32>
    %812 = arith.mulf %811, %809 : vector<1x32xf32>
    %c7_152 = arith.constant 7 : index
    %c0_153 = arith.constant 0 : index
    %813 = vector.load %arg23[%c7_152, %c0_153] : memref<12x32xf32, #tpu.memory_space<vmem>>, vector<1x32xf32>
    tpu.vector_store %arg23[%c7_152, %c0_153], %812 {strides = array<i32>} : memref<12x32xf32, #tpu.memory_space<vmem>>, vector<1x32xf32>,
    %814 = vector.broadcast %810 : vector<1x1xf32> to vector<1x32xf32>
    %815 = arith.mulf %814, %809 : vector<1x32xf32>
    %cst_154 = arith.constant 1.000000e+00 : f32
    %816 = vector.broadcast %cst_154 : f32 to vector<1x1xf32>
    %817 = arith.subf %816, %810 : vector<1x1xf32>
    %818 = vector.broadcast %817 : vector<1x1xf32> to vector<1x32xf32>
    %819 = arith.mulf %818, %780 : vector<1x32xf32>
    %820 = arith.addf %815, %819 : vector<1x32xf32>
    %821 = vector.extract_strided_slice %496 {offsets = [8, 0], sizes = [1, 96], strides = [1, 1]} : vector<12x96xf32> to vector<1x96xf32>
    %cst_155 = arith.constant dense<0.000000e+00> : vector<1x96xf32>
    %822 = tpu.matmul %820, %497, %cst_155 {dimension_numbers = #tpu.dot_dimension_numbers<[1], [0], [0], [1], [0, 0, 1, 1], [], []>} : vector<1x32xf32>, vector<32x96xf32>, vector<1x96xf32> -> vector<1x96xf32>
    %823 = arith.addf %822, %498 : vector<1x96xf32>
    %824 = vector.extract_strided_slice %821 {offsets = [0, 0], sizes = [1, 32], strides = [1, 1]} : vector<1x96xf32> to vector<1x32xf32>
    %825 = vector.extract_strided_slice %823 {offsets = [0, 0], sizes = [1, 32], strides = [1, 1]} : vector<1x96xf32> to vector<1x32xf32>
    %826 = arith.addf %824, %825 : vector<1x32xf32>
    %827 = arith.negf %826 : vector<1x32xf32>
    %828 = math.exp %827 : vector<1x32xf32>
    %cst_156 = arith.constant 1.000000e+00 : f32
    %829 = vector.broadcast %cst_156 : f32 to vector<1x32xf32>
    %830 = arith.addf %829, %828 : vector<1x32xf32>
    %831 = arith.divf %829, %830 : vector<1x32xf32>
    %832 = vector.extract_strided_slice %821 {offsets = [0, 32], sizes = [1, 32], strides = [1, 1]} : vector<1x96xf32> to vector<1x32xf32>
    %833 = vector.extract_strided_slice %823 {offsets = [0, 32], sizes = [1, 32], strides = [1, 1]} : vector<1x96xf32> to vector<1x32xf32>
    %834 = arith.addf %832, %833 : vector<1x32xf32>
    %835 = arith.negf %834 : vector<1x32xf32>
    %836 = math.exp %835 : vector<1x32xf32>
    %cst_157 = arith.constant 1.000000e+00 : f32
    %837 = vector.broadcast %cst_157 : f32 to vector<1x32xf32>
    %838 = arith.addf %837, %836 : vector<1x32xf32>
    %839 = arith.divf %837, %838 : vector<1x32xf32>
    %840 = vector.extract_strided_slice %821 {offsets = [0, 64], sizes = [1, 32], strides = [1, 1]} : vector<1x96xf32> to vector<1x32xf32>
    %841 = vector.extract_strided_slice %823 {offsets = [0, 64], sizes = [1, 32], strides = [1, 1]} : vector<1x96xf32> to vector<1x32xf32>
    %842 = arith.mulf %831, %841 : vector<1x32xf32>
    %843 = arith.addf %840, %842 : vector<1x32xf32>
    %844 = math.tanh %843 : vector<1x32xf32>
    %cst_158 = arith.constant 1.000000e+00 : f32
    %845 = vector.broadcast %cst_158 : f32 to vector<1x32xf32>
    %846 = arith.subf %845, %839 : vector<1x32xf32>
    %847 = arith.mulf %846, %844 : vector<1x32xf32>
    %848 = arith.mulf %839, %820 : vector<1x32xf32>
    %849 = arith.addf %847, %848 : vector<1x32xf32>
    %850 = vector.extract_strided_slice %6 {offsets = [8, 0], sizes = [1, 1], strides = [1, 1]} : vector<12x1xf32> to vector<1x1xf32>
    %851 = vector.broadcast %850 : vector<1x1xf32> to vector<1x32xf32>
    %852 = arith.mulf %851, %849 : vector<1x32xf32>
    %c8_159 = arith.constant 8 : index
    %c0_160 = arith.constant 0 : index
    %853 = vector.load %arg23[%c8_159, %c0_160] : memref<12x32xf32, #tpu.memory_space<vmem>>, vector<1x32xf32>
    tpu.vector_store %arg23[%c8_159, %c0_160], %852 {strides = array<i32>} : memref<12x32xf32, #tpu.memory_space<vmem>>, vector<1x32xf32>,
    %854 = vector.broadcast %850 : vector<1x1xf32> to vector<1x32xf32>
    %855 = arith.mulf %854, %849 : vector<1x32xf32>
    %cst_161 = arith.constant 1.000000e+00 : f32
    %856 = vector.broadcast %cst_161 : f32 to vector<1x1xf32>
    %857 = arith.subf %856, %850 : vector<1x1xf32>
    %858 = vector.broadcast %857 : vector<1x1xf32> to vector<1x32xf32>
    %859 = arith.mulf %858, %820 : vector<1x32xf32>
    %860 = arith.addf %855, %859 : vector<1x32xf32>
    %861 = vector.extract_strided_slice %496 {offsets = [9, 0], sizes = [1, 96], strides = [1, 1]} : vector<12x96xf32> to vector<1x96xf32>
    %cst_162 = arith.constant dense<0.000000e+00> : vector<1x96xf32>
    %862 = tpu.matmul %860, %497, %cst_162 {dimension_numbers = #tpu.dot_dimension_numbers<[1], [0], [0], [1], [0, 0, 1, 1], [], []>} : vector<1x32xf32>, vector<32x96xf32>, vector<1x96xf32> -> vector<1x96xf32>
    %863 = arith.addf %862, %498 : vector<1x96xf32>
    %864 = vector.extract_strided_slice %861 {offsets = [0, 0], sizes = [1, 32], strides = [1, 1]} : vector<1x96xf32> to vector<1x32xf32>
    %865 = vector.extract_strided_slice %863 {offsets = [0, 0], sizes = [1, 32], strides = [1, 1]} : vector<1x96xf32> to vector<1x32xf32>
    %866 = arith.addf %864, %865 : vector<1x32xf32>
    %867 = arith.negf %866 : vector<1x32xf32>
    %868 = math.exp %867 : vector<1x32xf32>
    %cst_163 = arith.constant 1.000000e+00 : f32
    %869 = vector.broadcast %cst_163 : f32 to vector<1x32xf32>
    %870 = arith.addf %869, %868 : vector<1x32xf32>
    %871 = arith.divf %869, %870 : vector<1x32xf32>
    %872 = vector.extract_strided_slice %861 {offsets = [0, 32], sizes = [1, 32], strides = [1, 1]} : vector<1x96xf32> to vector<1x32xf32>
    %873 = vector.extract_strided_slice %863 {offsets = [0, 32], sizes = [1, 32], strides = [1, 1]} : vector<1x96xf32> to vector<1x32xf32>
    %874 = arith.addf %872, %873 : vector<1x32xf32>
    %875 = arith.negf %874 : vector<1x32xf32>
    %876 = math.exp %875 : vector<1x32xf32>
    %cst_164 = arith.constant 1.000000e+00 : f32
    %877 = vector.broadcast %cst_164 : f32 to vector<1x32xf32>
    %878 = arith.addf %877, %876 : vector<1x32xf32>
    %879 = arith.divf %877, %878 : vector<1x32xf32>
    %880 = vector.extract_strided_slice %861 {offsets = [0, 64], sizes = [1, 32], strides = [1, 1]} : vector<1x96xf32> to vector<1x32xf32>
    %881 = vector.extract_strided_slice %863 {offsets = [0, 64], sizes = [1, 32], strides = [1, 1]} : vector<1x96xf32> to vector<1x32xf32>
    %882 = arith.mulf %871, %881 : vector<1x32xf32>
    %883 = arith.addf %880, %882 : vector<1x32xf32>
    %884 = math.tanh %883 : vector<1x32xf32>
    %cst_165 = arith.constant 1.000000e+00 : f32
    %885 = vector.broadcast %cst_165 : f32 to vector<1x32xf32>
    %886 = arith.subf %885, %879 : vector<1x32xf32>
    %887 = arith.mulf %886, %884 : vector<1x32xf32>
    %888 = arith.mulf %879, %860 : vector<1x32xf32>
    %889 = arith.addf %887, %888 : vector<1x32xf32>
    %890 = vector.extract_strided_slice %6 {offsets = [9, 0], sizes = [1, 1], strides = [1, 1]} : vector<12x1xf32> to vector<1x1xf32>
    %891 = vector.broadcast %890 : vector<1x1xf32> to vector<1x32xf32>
    %892 = arith.mulf %891, %889 : vector<1x32xf32>
    %c9_166 = arith.constant 9 : index
    %c0_167 = arith.constant 0 : index
    %893 = vector.load %arg23[%c9_166, %c0_167] : memref<12x32xf32, #tpu.memory_space<vmem>>, vector<1x32xf32>
    tpu.vector_store %arg23[%c9_166, %c0_167], %892 {strides = array<i32>} : memref<12x32xf32, #tpu.memory_space<vmem>>, vector<1x32xf32>,
    %894 = vector.broadcast %890 : vector<1x1xf32> to vector<1x32xf32>
    %895 = arith.mulf %894, %889 : vector<1x32xf32>
    %cst_168 = arith.constant 1.000000e+00 : f32
    %896 = vector.broadcast %cst_168 : f32 to vector<1x1xf32>
    %897 = arith.subf %896, %890 : vector<1x1xf32>
    %898 = vector.broadcast %897 : vector<1x1xf32> to vector<1x32xf32>
    %899 = arith.mulf %898, %860 : vector<1x32xf32>
    %900 = arith.addf %895, %899 : vector<1x32xf32>
    %901 = vector.extract_strided_slice %496 {offsets = [10, 0], sizes = [1, 96], strides = [1, 1]} : vector<12x96xf32> to vector<1x96xf32>
    %cst_169 = arith.constant dense<0.000000e+00> : vector<1x96xf32>
    %902 = tpu.matmul %900, %497, %cst_169 {dimension_numbers = #tpu.dot_dimension_numbers<[1], [0], [0], [1], [0, 0, 1, 1], [], []>} : vector<1x32xf32>, vector<32x96xf32>, vector<1x96xf32> -> vector<1x96xf32>
    %903 = arith.addf %902, %498 : vector<1x96xf32>
    %904 = vector.extract_strided_slice %901 {offsets = [0, 0], sizes = [1, 32], strides = [1, 1]} : vector<1x96xf32> to vector<1x32xf32>
    %905 = vector.extract_strided_slice %903 {offsets = [0, 0], sizes = [1, 32], strides = [1, 1]} : vector<1x96xf32> to vector<1x32xf32>
    %906 = arith.addf %904, %905 : vector<1x32xf32>
    %907 = arith.negf %906 : vector<1x32xf32>
    %908 = math.exp %907 : vector<1x32xf32>
    %cst_170 = arith.constant 1.000000e+00 : f32
    %909 = vector.broadcast %cst_170 : f32 to vector<1x32xf32>
    %910 = arith.addf %909, %908 : vector<1x32xf32>
    %911 = arith.divf %909, %910 : vector<1x32xf32>
    %912 = vector.extract_strided_slice %901 {offsets = [0, 32], sizes = [1, 32], strides = [1, 1]} : vector<1x96xf32> to vector<1x32xf32>
    %913 = vector.extract_strided_slice %903 {offsets = [0, 32], sizes = [1, 32], strides = [1, 1]} : vector<1x96xf32> to vector<1x32xf32>
    %914 = arith.addf %912, %913 : vector<1x32xf32>
    %915 = arith.negf %914 : vector<1x32xf32>
    %916 = math.exp %915 : vector<1x32xf32>
    %cst_171 = arith.constant 1.000000e+00 : f32
    %917 = vector.broadcast %cst_171 : f32 to vector<1x32xf32>
    %918 = arith.addf %917, %916 : vector<1x32xf32>
    %919 = arith.divf %917, %918 : vector<1x32xf32>
    %920 = vector.extract_strided_slice %901 {offsets = [0, 64], sizes = [1, 32], strides = [1, 1]} : vector<1x96xf32> to vector<1x32xf32>
    %921 = vector.extract_strided_slice %903 {offsets = [0, 64], sizes = [1, 32], strides = [1, 1]} : vector<1x96xf32> to vector<1x32xf32>
    %922 = arith.mulf %911, %921 : vector<1x32xf32>
    %923 = arith.addf %920, %922 : vector<1x32xf32>
    %924 = math.tanh %923 : vector<1x32xf32>
    %cst_172 = arith.constant 1.000000e+00 : f32
    %925 = vector.broadcast %cst_172 : f32 to vector<1x32xf32>
    %926 = arith.subf %925, %919 : vector<1x32xf32>
    %927 = arith.mulf %926, %924 : vector<1x32xf32>
    %928 = arith.mulf %919, %900 : vector<1x32xf32>
    %929 = arith.addf %927, %928 : vector<1x32xf32>
    %930 = vector.extract_strided_slice %6 {offsets = [10, 0], sizes = [1, 1], strides = [1, 1]} : vector<12x1xf32> to vector<1x1xf32>
    %931 = vector.broadcast %930 : vector<1x1xf32> to vector<1x32xf32>
    %932 = arith.mulf %931, %929 : vector<1x32xf32>
    %c10_173 = arith.constant 10 : index
    %c0_174 = arith.constant 0 : index
    %933 = vector.load %arg23[%c10_173, %c0_174] : memref<12x32xf32, #tpu.memory_space<vmem>>, vector<1x32xf32>
    tpu.vector_store %arg23[%c10_173, %c0_174], %932 {strides = array<i32>} : memref<12x32xf32, #tpu.memory_space<vmem>>, vector<1x32xf32>,
    %934 = vector.broadcast %930 : vector<1x1xf32> to vector<1x32xf32>
    %935 = arith.mulf %934, %929 : vector<1x32xf32>
    %cst_175 = arith.constant 1.000000e+00 : f32
    %936 = vector.broadcast %cst_175 : f32 to vector<1x1xf32>
    %937 = arith.subf %936, %930 : vector<1x1xf32>
    %938 = vector.broadcast %937 : vector<1x1xf32> to vector<1x32xf32>
    %939 = arith.mulf %938, %900 : vector<1x32xf32>
    %940 = arith.addf %935, %939 : vector<1x32xf32>
    %941 = vector.extract_strided_slice %496 {offsets = [11, 0], sizes = [1, 96], strides = [1, 1]} : vector<12x96xf32> to vector<1x96xf32>
    %cst_176 = arith.constant dense<0.000000e+00> : vector<1x96xf32>
    %942 = tpu.matmul %940, %497, %cst_176 {dimension_numbers = #tpu.dot_dimension_numbers<[1], [0], [0], [1], [0, 0, 1, 1], [], []>} : vector<1x32xf32>, vector<32x96xf32>, vector<1x96xf32> -> vector<1x96xf32>
    %943 = arith.addf %942, %498 : vector<1x96xf32>
    %944 = vector.extract_strided_slice %941 {offsets = [0, 0], sizes = [1, 32], strides = [1, 1]} : vector<1x96xf32> to vector<1x32xf32>
    %945 = vector.extract_strided_slice %943 {offsets = [0, 0], sizes = [1, 32], strides = [1, 1]} : vector<1x96xf32> to vector<1x32xf32>
    %946 = arith.addf %944, %945 : vector<1x32xf32>
    %947 = arith.negf %946 : vector<1x32xf32>
    %948 = math.exp %947 : vector<1x32xf32>
    %cst_177 = arith.constant 1.000000e+00 : f32
    %949 = vector.broadcast %cst_177 : f32 to vector<1x32xf32>
    %950 = arith.addf %949, %948 : vector<1x32xf32>
    %951 = arith.divf %949, %950 : vector<1x32xf32>
    %952 = vector.extract_strided_slice %941 {offsets = [0, 32], sizes = [1, 32], strides = [1, 1]} : vector<1x96xf32> to vector<1x32xf32>
    %953 = vector.extract_strided_slice %943 {offsets = [0, 32], sizes = [1, 32], strides = [1, 1]} : vector<1x96xf32> to vector<1x32xf32>
    %954 = arith.addf %952, %953 : vector<1x32xf32>
    %955 = arith.negf %954 : vector<1x32xf32>
    %956 = math.exp %955 : vector<1x32xf32>
    %cst_178 = arith.constant 1.000000e+00 : f32
    %957 = vector.broadcast %cst_178 : f32 to vector<1x32xf32>
    %958 = arith.addf %957, %956 : vector<1x32xf32>
    %959 = arith.divf %957, %958 : vector<1x32xf32>
    %960 = vector.extract_strided_slice %941 {offsets = [0, 64], sizes = [1, 32], strides = [1, 1]} : vector<1x96xf32> to vector<1x32xf32>
    %961 = vector.extract_strided_slice %943 {offsets = [0, 64], sizes = [1, 32], strides = [1, 1]} : vector<1x96xf32> to vector<1x32xf32>
    %962 = arith.mulf %951, %961 : vector<1x32xf32>
    %963 = arith.addf %960, %962 : vector<1x32xf32>
    %964 = math.tanh %963 : vector<1x32xf32>
    %cst_179 = arith.constant 1.000000e+00 : f32
    %965 = vector.broadcast %cst_179 : f32 to vector<1x32xf32>
    %966 = arith.subf %965, %959 : vector<1x32xf32>
    %967 = arith.mulf %966, %964 : vector<1x32xf32>
    %968 = arith.mulf %959, %940 : vector<1x32xf32>
    %969 = arith.addf %967, %968 : vector<1x32xf32>
    %970 = vector.extract_strided_slice %6 {offsets = [11, 0], sizes = [1, 1], strides = [1, 1]} : vector<12x1xf32> to vector<1x1xf32>
    %971 = vector.broadcast %970 : vector<1x1xf32> to vector<1x32xf32>
    %972 = arith.mulf %971, %969 : vector<1x32xf32>
    %c11_180 = arith.constant 11 : index
    %c0_181 = arith.constant 0 : index
    %973 = vector.load %arg23[%c11_180, %c0_181] : memref<12x32xf32, #tpu.memory_space<vmem>>, vector<1x32xf32>
    tpu.vector_store %arg23[%c11_180, %c0_181], %972 {strides = array<i32>} : memref<12x32xf32, #tpu.memory_space<vmem>>, vector<1x32xf32>,
    %c0_182 = arith.constant 0 : index
    %c0_183 = arith.constant 0 : index
    %974 = vector.load %arg23[%c0_182, %c0_183] : memref<12x32xf32, #tpu.memory_space<vmem>>, vector<12x32xf32>
    %c0_184 = arith.constant 0 : index
    %c0_185 = arith.constant 0 : index
    %c0_186 = arith.constant 0 : index
    %975 = vector.load %arg4[%c0_184, %c0_185, %c0_186] : memref<1x16x32xf32, #tpu.memory_space<vmem>>, vector<1x16x32xf32>
    %976 = vector.shape_cast %975 : vector<1x16x32xf32> to vector<16x32xf32>
    %c0_187 = arith.constant 0 : index
    %c0_188 = arith.constant 0 : index
    %977 = vector.load %arg14[%c0_187, %c0_188] : memref<32x32xf32, #tpu.memory_space<vmem>>, vector<32x32xf32>
    %cst_189 = arith.constant dense<0.000000e+00> : vector<12x32xf32>
    %978 = tpu.matmul %974, %977, %cst_189 {dimension_numbers = #tpu.dot_dimension_numbers<[1], [0], [0], [1], [0, 0, 1, 1], [], []>} : vector<12x32xf32>, vector<32x32xf32>, vector<12x32xf32> -> vector<12x32xf32>
    %c0_190 = arith.constant 0 : index
    %c0_191 = arith.constant 0 : index
    %979 = vector.load %arg15[%c0_190, %c0_191] : memref<1x32xf32, #tpu.memory_space<vmem>>, vector<1x32xf32>
    %980 = vector.broadcast %979 : vector<1x32xf32> to vector<12x32xf32>
    %981 = arith.addf %978, %980 : vector<12x32xf32>
    %c0_192 = arith.constant 0 : index
    %c0_193 = arith.constant 0 : index
    %982 = vector.load %arg16[%c0_192, %c0_193] : memref<32x64xf32, #tpu.memory_space<vmem>>, vector<32x64xf32>
    %cst_194 = arith.constant dense<0.000000e+00> : vector<16x64xf32>
    %983 = tpu.matmul %976, %982, %cst_194 {dimension_numbers = #tpu.dot_dimension_numbers<[1], [0], [0], [1], [0, 0, 1, 1], [], []>} : vector<16x32xf32>, vector<32x64xf32>, vector<16x64xf32> -> vector<16x64xf32>
    %c0_195 = arith.constant 0 : index
    %c0_196 = arith.constant 0 : index
    %984 = vector.load %arg17[%c0_195, %c0_196] : memref<1x64xf32, #tpu.memory_space<vmem>>, vector<1x64xf32>
    %985 = vector.broadcast %984 : vector<1x64xf32> to vector<16x64xf32>
    %986 = arith.addf %983, %985 : vector<16x64xf32>
    %987 = vector.extract_strided_slice %986 {offsets = [0, 0], sizes = [16, 32], strides = [1, 1]} : vector<16x64xf32> to vector<16x32xf32>
    %988 = vector.extract_strided_slice %986 {offsets = [0, 32], sizes = [16, 32], strides = [1, 1]} : vector<16x64xf32> to vector<16x32xf32>
    %cst_197 = arith.constant dense<0.000000e+00> : vector<12x16xf32>
    %989 = tpu.matmul %981, %987, %cst_197 {dimension_numbers = #tpu.dot_dimension_numbers<[1], [1], [0], [0], [0, 0, 1, 0], [], []>} : vector<12x32xf32>, vector<16x32xf32>, vector<12x16xf32> -> vector<12x16xf32>
    %c0_198 = arith.constant 0 : index
    %c0_199 = arith.constant 0 : index
    %c0_200 = arith.constant 0 : index
    %990 = vector.load %arg5[%c0_198, %c0_199, %c0_200] : memref<1x1x16xf32, #tpu.memory_space<vmem>>, vector<1x1x16xf32>
    %991 = vector.shape_cast %990 : vector<1x1x16xf32> to vector<1x16xf32>
    %cst_201 = arith.constant 0.000000e+00 : f32
    %992 = vector.broadcast %cst_201 : f32 to vector<1x16xf32>
    %993 = arith.cmpf ogt, %991, %992 : vector<1x16xf32>
    %cst_202 = arith.constant -1.000000e+30 : f32
    %994 = vector.broadcast %cst_202 : f32 to vector<12x16xf32>
    %995 = vector.shape_cast %993 : vector<1x16xi1> to vector<1x16xi1>
    %996 = vector.broadcast %995 : vector<1x16xi1> to vector<12x16xi1>
    %997 = arith.select %996, %989, %994 : vector<12x16xi1>, vector<12x16xf32>
    %cst_203 = arith.constant dense<0xFF800000> : vector<12xf32>
    %998 = vector.multi_reduction <maximumf>, %997, %cst_203 [1] : vector<12x16xf32> to vector<12xf32>
    %999 = vector.shape_cast %998 : vector<12xf32> to vector<12x1xf32>
    %1000 = vector.broadcast %999 : vector<12x1xf32> to vector<12x16xf32>
    %1001 = arith.subf %997, %1000 : vector<12x16xf32>
    %1002 = math.exp %1001 : vector<12x16xf32>
    %cst_204 = arith.constant dense<0.000000e+00> : vector<12xf32>
    %1003 = vector.multi_reduction <add>, %1002, %cst_204 [1] : vector<12x16xf32> to vector<12xf32>
    %1004 = vector.shape_cast %1003 : vector<12xf32> to vector<12x1xf32>
    %1005 = tpu.reciprocal %1004 {approx = true} : vector<12x1xf32> -> vector<12x1xf32>
    %1006 = vector.broadcast %1005 : vector<12x1xf32> to vector<12x16xf32>
    %1007 = arith.mulf %1002, %1006 : vector<12x16xf32>
    %c0_205 = arith.constant 0 : index
    %c0_206 = arith.constant 0 : index
    %c0_207 = arith.constant 0 : index
    %1008 = vector.load %arg21[%c0_205, %c0_206, %c0_207] : memref<1x12x16xf32, #tpu.memory_space<vmem>>, vector<1x12x16xf32>
    %1009 = vector.shape_cast %1008 : vector<1x12x16xf32> to vector<12x16xf32>
    %1010 = vector.shape_cast %1007 : vector<12x16xf32> to vector<1x12x16xf32>
    tpu.vector_store %arg21[%c0_205, %c0_206, %c0_207], %1010 {strides = array<i32>} : memref<1x12x16xf32, #tpu.memory_space<vmem>>, vector<1x12x16xf32>,
    %cst_208 = arith.constant dense<0.000000e+00> : vector<12x32xf32>
    %1011 = tpu.matmul %1007, %988, %cst_208 {dimension_numbers = #tpu.dot_dimension_numbers<[1], [0], [0], [1], [0, 0, 1, 1], [], []>} : vector<12x16xf32>, vector<16x32xf32>, vector<12x32xf32> -> vector<12x32xf32>
    %1012 = tpu.concatenate %974, %1011 in 1 : vector<12x32xf32>, vector<12x32xf32> -> vector<12x64xf32>
    %c0_209 = arith.constant 0 : index
    %c0_210 = arith.constant 0 : index
    %1013 = vector.load %arg18[%c0_209, %c0_210] : memref<64x28xf32, #tpu.memory_space<vmem>>, vector<64x28xf32>
    %cst_211 = arith.constant dense<0.000000e+00> : vector<12x28xf32>
    %1014 = tpu.matmul %1012, %1013, %cst_211 {dimension_numbers = #tpu.dot_dimension_numbers<[1], [0], [0], [1], [0, 0, 1, 1], [], []>} : vector<12x64xf32>, vector<64x28xf32>, vector<12x28xf32> -> vector<12x28xf32>
    %c0_212 = arith.constant 0 : index
    %c0_213 = arith.constant 0 : index
    %1015 = vector.load %arg19[%c0_212, %c0_213] : memref<1x28xf32, #tpu.memory_space<vmem>>, vector<1x28xf32>
    %1016 = vector.broadcast %1015 : vector<1x28xf32> to vector<12x28xf32>
    %1017 = arith.addf %1014, %1016 : vector<12x28xf32>
    %1018 = tpu.iota {dimensions = array<i32: 1>} : vector<12x28xi32>
    %c16_i32 = arith.constant 16 : i32
    %1019 = vector.broadcast %c16_i32 : i32 to vector<12x28xi32>
    %1020 = arith.cmpi sge, %1018, %1019 : vector<12x28xi32>
    %cst_214 = arith.constant -1.000000e+30 : f32
    %1021 = vector.broadcast %cst_214 : f32 to vector<12x28xf32>
    %1022 = arith.select %1020, %1021, %1017 : vector<12x28xi1>, vector<12x28xf32>
    %cst_215 = arith.constant dense<0xFF800000> : vector<12xf32>
    %1023 = vector.multi_reduction <maximumf>, %1022, %cst_215 [1] : vector<12x28xf32> to vector<12xf32>
    %1024 = vector.shape_cast %1023 : vector<12xf32> to vector<12x1xf32>
    %1025 = arith.select %1020, %1017, %1021 : vector<12x28xi1>, vector<12x28xf32>
    %cst_216 = arith.constant dense<0xFF800000> : vector<12xf32>
    %1026 = vector.multi_reduction <maximumf>, %1025, %cst_216 [1] : vector<12x28xf32> to vector<12xf32>
    %1027 = vector.shape_cast %1026 : vector<12xf32> to vector<12x1xf32>
    %1028 = vector.shape_cast %1027 : vector<12x1xf32> to vector<12x1xf32>
    %1029 = vector.broadcast %1028 : vector<12x1xf32> to vector<12x28xf32>
    %1030 = vector.shape_cast %1024 : vector<12x1xf32> to vector<12x1xf32>
    %1031 = vector.broadcast %1030 : vector<12x1xf32> to vector<12x28xf32>
    %1032 = arith.select %1020, %1029, %1031 : vector<12x28xi1>, vector<12x28xf32>
    %1033 = arith.subf %1017, %1032 : vector<12x28xf32>
    %1034 = math.exp %1033 : vector<12x28xf32>
    %cst_217 = arith.constant 0.000000e+00 : f32
    %1035 = vector.broadcast %cst_217 : f32 to vector<12x28xf32>
    %1036 = arith.select %1020, %1035, %1034 : vector<12x28xi1>, vector<12x28xf32>
    %cst_218 = arith.constant dense<0.000000e+00> : vector<12xf32>
    %1037 = vector.multi_reduction <add>, %1036, %cst_218 [1] : vector<12x28xf32> to vector<12xf32>
    %1038 = vector.shape_cast %1037 : vector<12xf32> to vector<12x1xf32>
    %cst_219 = arith.constant 0.000000e+00 : f32
    %1039 = vector.broadcast %cst_219 : f32 to vector<12x28xf32>
    %1040 = arith.select %1020, %1034, %1039 : vector<12x28xi1>, vector<12x28xf32>
    %cst_220 = arith.constant dense<0.000000e+00> : vector<12xf32>
    %1041 = vector.multi_reduction <add>, %1040, %cst_220 [1] : vector<12x28xf32> to vector<12xf32>
    %1042 = vector.shape_cast %1041 : vector<12xf32> to vector<12x1xf32>
    %1043 = vector.shape_cast %1042 : vector<12x1xf32> to vector<12x1xf32>
    %1044 = vector.broadcast %1043 : vector<12x1xf32> to vector<12x28xf32>
    %1045 = vector.shape_cast %1038 : vector<12x1xf32> to vector<12x1xf32>
    %1046 = vector.broadcast %1045 : vector<12x1xf32> to vector<12x28xf32>
    %1047 = arith.select %1020, %1044, %1046 : vector<12x28xi1>, vector<12x28xf32>
    %1048 = tpu.reciprocal %1047 {approx = true} : vector<12x28xf32> -> vector<12x28xf32>
    %1049 = arith.mulf %1034, %1048 : vector<12x28xf32>
    %c0_221 = arith.constant 0 : index
    %c0_222 = arith.constant 0 : index
    %c0_223 = arith.constant 0 : index
    %1050 = vector.load %arg20[%c0_221, %c0_222, %c0_223] : memref<1x12x28xf32, #tpu.memory_space<vmem>>, vector<1x12x28xf32>
    %1051 = vector.shape_cast %1050 : vector<1x12x28xf32> to vector<12x28xf32>
    %1052 = vector.shape_cast %1049 : vector<12x28xf32> to vector<1x12x28xf32>
    tpu.vector_store %arg20[%c0_221, %c0_222, %c0_223], %1052 {strides = array<i32>} : memref<1x12x28xf32, #tpu.memory_space<vmem>>, vector<1x12x28xf32>,
    return
  }
  func.func @transform_0(%arg0: i32, %arg1: memref<2xi32, #tpu.memory_space<smem>>) -> (i32, i32, i32) {
    %c0_i32 = arith.constant 0 : i32
    %c0_i32_0 = arith.constant 0 : i32
    %c0_i32_1 = arith.constant 0 : i32
    return %arg0, %c0_i32, %c0_i32_0 : i32, i32, i32
  }
  func.func @transform_1(%arg0: i32, %arg1: memref<2xi32, #tpu.memory_space<smem>>) -> (i32, i32, i32) {
    %c0_i32 = arith.constant 0 : i32
    %c0_i32_0 = arith.constant 0 : i32
    %c0_i32_1 = arith.constant 0 : i32
    return %arg0, %c0_i32, %c0_i32_0 : i32, i32, i32
  }
  func.func @transform_2(%arg0: i32, %arg1: memref<2xi32, #tpu.memory_space<smem>>) -> (i32, i32, i32) {
    %c0_i32 = arith.constant 0 : i32
    %c0_i32_0 = arith.constant 0 : i32
    %c0_i32_1 = arith.constant 0 : i32
    return %arg0, %c0_i32, %c0_i32_0 : i32, i32, i32
  }
  func.func @transform_3(%arg0: i32, %arg1: memref<2xi32, #tpu.memory_space<smem>>) -> (i32, i32, i32) {
    %c0_i32 = arith.constant 0 : i32
    %c0_i32_0 = arith.constant 0 : i32
    %c0_i32_1 = arith.constant 0 : i32
    return %arg0, %c0_i32, %c0_i32_0 : i32, i32, i32
  }
  func.func @transform_4(%arg0: i32, %arg1: memref<2xi32, #tpu.memory_space<smem>>) -> (i32, i32) {
    %c0_i32 = arith.constant 0 : i32
    %c0_i32_0 = arith.constant 0 : i32
    %c0_i32_1 = arith.constant 0 : i32
    return %c0_i32, %c0_i32_0 : i32, i32
  }
  func.func @transform_5(%arg0: i32, %arg1: memref<2xi32, #tpu.memory_space<smem>>) -> (i32, i32) {
    %c0_i32 = arith.constant 0 : i32
    %c0_i32_0 = arith.constant 0 : i32
    %c0_i32_1 = arith.constant 0 : i32
    return %c0_i32, %c0_i32_0 : i32, i32
  }
  func.func @transform_6(%arg0: i32, %arg1: memref<2xi32, #tpu.memory_space<smem>>) -> (i32, i32) {
    %c0_i32 = arith.constant 0 : i32
    %c0_i32_0 = arith.constant 0 : i32
    %c0_i32_1 = arith.constant 0 : i32
    return %c0_i32, %c0_i32_0 : i32, i32
  }
  func.func @transform_7(%arg0: i32, %arg1: memref<2xi32, #tpu.memory_space<smem>>) -> (i32, i32) {
    %c0_i32 = arith.constant 0 : i32
    %c0_i32_0 = arith.constant 0 : i32
    %c0_i32_1 = arith.constant 0 : i32
    return %c0_i32, %c0_i32_0 : i32, i32
  }
  func.func @transform_8(%arg0: i32, %arg1: memref<2xi32, #tpu.memory_space<smem>>) -> (i32, i32) {
    %c0_i32 = arith.constant 0 : i32
    %c0_i32_0 = arith.constant 0 : i32
    %c0_i32_1 = arith.constant 0 : i32
    return %c0_i32, %c0_i32_0 : i32, i32
  }
  func.func @transform_9(%arg0: i32, %arg1: memref<2xi32, #tpu.memory_space<smem>>) -> (i32, i32) {
    %c0_i32 = arith.constant 0 : i32
    %c0_i32_0 = arith.constant 0 : i32
    %c0_i32_1 = arith.constant 0 : i32
    return %c0_i32, %c0_i32_0 : i32, i32
  }
  func.func @transform_10(%arg0: i32, %arg1: memref<2xi32, #tpu.memory_space<smem>>) -> (i32, i32) {
    %c0_i32 = arith.constant 0 : i32
    %c0_i32_0 = arith.constant 0 : i32
    %c0_i32_1 = arith.constant 0 : i32
    return %c0_i32, %c0_i32_0 : i32, i32
  }
  func.func @transform_11(%arg0: i32, %arg1: memref<2xi32, #tpu.memory_space<smem>>) -> (i32, i32) {
    %c0_i32 = arith.constant 0 : i32
    %c0_i32_0 = arith.constant 0 : i32
    %c0_i32_1 = arith.constant 0 : i32
    return %c0_i32, %c0_i32_0 : i32, i32
  }
  func.func @transform_12(%arg0: i32, %arg1: memref<2xi32, #tpu.memory_space<smem>>) -> (i32, i32) {
    %c0_i32 = arith.constant 0 : i32
    %c0_i32_0 = arith.constant 0 : i32
    %c0_i32_1 = arith.constant 0 : i32
    return %c0_i32, %c0_i32_0 : i32, i32
  }
  func.func @transform_13(%arg0: i32, %arg1: memref<2xi32, #tpu.memory_space<smem>>) -> (i32, i32) {
    %c0_i32 = arith.constant 0 : i32
    %c0_i32_0 = arith.constant 0 : i32
    %c0_i32_1 = arith.constant 0 : i32
    return %c0_i32, %c0_i32_0 : i32, i32
  }
  func.func @transform_14(%arg0: i32, %arg1: memref<2xi32, #tpu.memory_space<smem>>) -> (i32, i32) {
    %c0_i32 = arith.constant 0 : i32
    %c0_i32_0 = arith.constant 0 : i32
    %c0_i32_1 = arith.constant 0 : i32
    return %c0_i32, %c0_i32_0 : i32, i32
  }
  func.func @transform_15(%arg0: i32, %arg1: memref<2xi32, #tpu.memory_space<smem>>) -> (i32, i32) {
    %c0_i32 = arith.constant 0 : i32
    %c0_i32_0 = arith.constant 0 : i32
    %c0_i32_1 = arith.constant 0 : i32
    return %c0_i32, %c0_i32_0 : i32, i32
  }
  func.func @transform_16(%arg0: i32, %arg1: memref<2xi32, #tpu.memory_space<smem>>) -> (i32, i32) {
    %c0_i32 = arith.constant 0 : i32
    %c0_i32_0 = arith.constant 0 : i32
    %c0_i32_1 = arith.constant 0 : i32
    return %c0_i32, %c0_i32_0 : i32, i32
  }
  func.func @transform_17(%arg0: i32, %arg1: memref<2xi32, #tpu.memory_space<smem>>) -> (i32, i32) {
    %c0_i32 = arith.constant 0 : i32
    %c0_i32_0 = arith.constant 0 : i32
    %c0_i32_1 = arith.constant 0 : i32
    return %c0_i32, %c0_i32_0 : i32, i32
  }
  func.func @transform_18(%arg0: i32, %arg1: memref<2xi32, #tpu.memory_space<smem>>) -> (i32, i32, i32) {
    %c0_i32 = arith.constant 0 : i32
    %c0_i32_0 = arith.constant 0 : i32
    %c0_i32_1 = arith.constant 0 : i32
    return %arg0, %c0_i32, %c0_i32_0 : i32, i32, i32
  }
  func.func @transform_19(%arg0: i32, %arg1: memref<2xi32, #tpu.memory_space<smem>>) -> (i32, i32, i32) {
    %c0_i32 = arith.constant 0 : i32
    %c0_i32_0 = arith.constant 0 : i32
    %c0_i32_1 = arith.constant 0 : i32
    return %arg0, %c0_i32, %c0_i32_0 : i32, i32, i32
  }
}

</mosaic_0001>

<llo_original>
// kernel: tpu_custom_call.1
$region0: #{tpu_custom_call.1}
  #allocation0 [shape = 'u32[]', space=smem, size = 0x4, offset = 0x4, fixed_abs, tag = 'smem constant byte address 0x4 - core index']
  #allocation1 [shape = 'u32[72,128]{1,0:T(1,128)}', space=vmem, size = 0x9000, scoped, tag = 'internal scratch']
  #allocation2 [shape = 'f32[12,32]{1,0:T(8,128)}', space=vmem, size = 0x2000, scoped, tag = 'scratch operand']
  #allocation3 [shape = 'f32[12,32]{1,0:T(8,128)}', space=vmem, size = 0x2000, scoped, tag = 'scratch operand']
  #allocation4 [shape = 's32[1]{0}', space=sflag, size = 0x4, scoped, tag = 'scoped memory for tpu_custom_call.1']
  #allocation5 [shape = 'u8[512]{0}', space=smem, size = 0x200, scoped, tag = 'prefetched SMEM operand 0']
  %s0 = inlined_call_operand.vmem [shape: s32[2], index: 0, kind: input, shape index: {}]
  %s1 = inlined_call_operand.vmem [shape: f32[2,12,24], index: 1, kind: input, shape index: {}]
  %s2 = inlined_call_operand.hbm [shape: f32[2,2,32], index: 2, kind: input, shape index: {}]
  %s3 = inlined_call_operand.vmem [shape: f32[2,16,32], index: 3, kind: input, shape index: {}]
  %s4 = inlined_call_operand.hbm [shape: f32[2,1,16], index: 4, kind: input, shape index: {}]
  %s5 = inlined_call_operand.hbm [shape: f32[24,96], index: 5, kind: input, shape index: {}]
  %s6 = inlined_call_operand.vmem [shape: f32[32,96], index: 6, kind: input, shape index: {}]
  %s7 = inlined_call_operand.hbm [shape: f32[1,96], index: 7, kind: input, shape index: {}]
  %s8 = inlined_call_operand.hbm [shape: f32[1,96], index: 8, kind: input, shape index: {}]
  %s9 = inlined_call_operand.vmem [shape: f32[32,96], index: 9, kind: input, shape index: {}]
  %s10 = inlined_call_operand.vmem [shape: f32[32,96], index: 10, kind: input, shape index: {}]
  %s11 = inlined_call_operand.hbm [shape: f32[1,96], index: 11, kind: input, shape index: {}]
  %s12 = inlined_call_operand.vmem [shape: f32[1,96], index: 12, kind: input, shape index: {}]
  %s13 = inlined_call_operand.hbm [shape: f32[32,32], index: 13, kind: input, shape index: {}]
  %s14 = inlined_call_operand.vmem [shape: f32[1,32], index: 14, kind: input, shape index: {}]
  %s15 = inlined_call_operand.hbm [shape: f32[32,64], index: 15, kind: input, shape index: {}]
  %s16 = inlined_call_operand.vmem [shape: f32[1,64], index: 16, kind: input, shape index: {}]
  %s17 = inlined_call_operand.vmem [shape: f32[64,28], index: 17, kind: input, shape index: {}]
  %s18 = inlined_call_operand.vmem [shape: f32[1,28], index: 18, kind: input, shape index: {}]
  %s19 = inlined_call_operand.vmem [shape: f32[2,12,28], index: 19, kind: output, shape index: {0}]
  %s20 = inlined_call_operand.vmem [shape: f32[2,12,16], index: 20, kind: output, shape index: {1}]
  %21 = xla_tuple %s19, %s20
  %s22 = sld [smem:[#allocation0]]
  $region145: #{tpu_custom_call.1} parent=0
    _
  %s24 = ssub.s32 1, %s22
  %s25 = scalar_select 0, %s24, %s22
  %s27 = sshll.u32 %s0, 4
  %s28 = int_to_ptr.vmem [resolvable:$true] %s27
  %30 = dma.vmem_to_smem %s28, 16, [#allocation5], [#allocation4]
  %32 = dma.done [#allocation4], 16
  %33 = sfence
  $region1: #{tpu_custom_call.1} parent=0
    #allocation6 [shape = 'u8[2048]{0}', space=vmem, size = 0x800, scoped, tag = 'input window, operand 2']
    #allocation7 [shape = 's32[2]{0}', space=sflag, size = 0x8, scoped, tag = 'scoped memory for tpu_custom_call.1']
    #allocation8 [shape = 'u8[1024]{0}', space=vmem, size = 0x400, scoped, tag = 'input window, operand 4']
    #allocation9 [shape = 's32[2]{0}', space=sflag, size = 0x8, scoped, tag = 'scoped memory for tpu_custom_call.1']
    #allocation10 [shape = 'u8[12288]{0}', space=vmem, size = 0x3000, scoped, tag = 'input window, operand 5, single buffered']
    #allocation11 [shape = 'u8[512]{0}', space=vmem, size = 0x400, scoped, tag = 'input window, operand 7, single buffered']
    #allocation12 [shape = 's32[1]{0}', space=sflag, size = 0x4, scoped, tag = 'scoped memory for tpu_custom_call.1']
    #allocation13 [shape = 'u8[512]{0}', space=vmem, size = 0x400, scoped, tag = 'input window, operand 8, single buffered']
    #allocation14 [shape = 'u8[512]{0}', space=vmem, size = 0x400, scoped, tag = 'input window, operand 11, single buffered']
    #allocation15 [shape = 's32[1]{0}', space=sflag, size = 0x4, scoped, tag = 'scoped memory for tpu_custom_call.1']
    #allocation16 [shape = 'u8[16384]{0}', space=vmem, size = 0x4000, scoped, tag = 'input window, operand 13, single buffered']
    #allocation17 [shape = 'u8[16384]{0}', space=vmem, size = 0x4000, scoped, tag = 'input window, operand 15, single buffered']
    #allocation18 [shape = 's32[1]{0}', space=sflag, size = 0x4, scoped, tag = 'scoped memory for tpu_custom_call.1']
    %34 = vsyncpa [#allocation7], 0
    %s35 = scalar_lea.sflag [#allocation7], 1
    %36 = vsyncpa %s35, 0
    %37 = vsyncpa [#allocation9], 0
    %s38 = scalar_lea.sflag [#allocation9], 1
    %39 = vsyncpa %s38, 0
    %40 = vsyncpa [#allocation12], 0
    %41 = vsyncpa [#allocation15], 0
    %42 = vsyncpa [#allocation18], 0
    loop: start=0, step=1, limit=4
    $region2: #{tpu_custom_call.1} parent=1 // loop_pre_header
      _
    $region3: #{tpu_custom_call.1} parent=1 // loop_header
      %s44 = sphi 0, %s48
      %p45 = scmp.ge.s32.totalorder %s44, 4
      %s54 = sphi 0, %s56
      %s57 = sphi 0, %s54
      %s58 = sphi 0, %s57
      %s74 = sphi 0, %s58
      %s80 = sphi 0, %s82
      %s83 = sphi 0, %s80
      %s84 = sphi 0, %s83
      %s100 = sphi 0, %s84
      %s106 = sphi 0, %s108
      %s109 = sphi 0, %s106
      %s110 = sphi 0, %s109
      %s126 = sphi 0, %s110
      %s132 = sphi 0, %s134
      %s135 = sphi 0, %s132
      %s136 = sphi 0, %s135
      %s152 = sphi 0, %s136
      %s156 = sphi 0, %s156
      %s158 = sphi 0, %s156
      %s159 = sphi 0, %s158
      %s173 = sphi 0, %s159
      %s177 = sphi 0, %s177
      %s179 = sphi 0, %s177
      %s180 = sphi 0, %s179
      %s194 = sphi 0, %s180
      %s198 = sphi 0, %s198
      %s200 = sphi 0, %s198
      %s201 = sphi 0, %s200
      %s215 = sphi 0, %s201
      %s219 = sphi 0, %s219
      %s221 = sphi 0, %s219
      %s222 = sphi 0, %s221
      %s236 = sphi 0, %s222
      %s240 = sphi 0, %s240
      %s242 = sphi 0, %s240
      %s243 = sphi 0, %s242
      %s257 = sphi 0, %s243
      %s261 = sphi 0, %s261
      %s263 = sphi 0, %s261
      %s264 = sphi 0, %s263
      %s278 = sphi 0, %s264
      %s282 = sphi 0, %s282
      %s284 = sphi 0, %s282
      %s285 = sphi 0, %s284
      %s299 = sphi 0, %s285
      %s303 = sphi 0, %s303
      %s305 = sphi 0, %s303
      %s306 = sphi 0, %s305
      %s320 = sphi 0, %s306
      %s324 = sphi 0, %s324
      %s326 = sphi 0, %s324
      %s327 = sphi 0, %s326
      %s341 = sphi 0, %s327
      %s345 = sphi 0, %s345
      %s347 = sphi 0, %s345
      %s348 = sphi 0, %s347
      %s362 = sphi 0, %s348
      %s366 = sphi 0, %s366
      %s368 = sphi 0, %s366
      %s369 = sphi 0, %s368
      %s383 = sphi 0, %s369
      %s387 = sphi 0, %s387
      %s389 = sphi 0, %s387
      %s390 = sphi 0, %s389
      %s404 = sphi 0, %s390
      %s408 = sphi 0, %s408
      %s410 = sphi 0, %s408
      %s411 = sphi 0, %s410
      %s425 = sphi 0, %s411
      %s429 = sphi 0, %s429
      %s431 = sphi 0, %s429
      %s432 = sphi 0, %s431
      %s446 = sphi 0, %s432
      %s452 = sphi 0, %s454
      %s455 = sphi 0, %s452
      %s456 = sphi 0, %s455
      %s472 = sphi 0, %s456
      %s478 = sphi 0, %s480
      %s481 = sphi 0, %s478
      %s482 = sphi 0, %s481
      %s498 = sphi 0, %s482
    $region4: #{tpu_custom_call.1} parent=1 // loop_header_branch
      %47 = sbr.rel (%p45) target = $region8
    $region5: #{tpu_custom_call.1} parent=1 // loop_body
      %s49 = ssub.s32 %s44, 1
      %s50 = ssub.s32 %s44, 2
      %s51 = sadd.s32 %s44, 1
      %s52 = ssub.s32 %s44, %s51
      %p53 = scmp.eq.s32.totalorder %s52, 0
      %s55 = sadd.s32 %s54, 1
      %s56 = scalar_select %p53, %s54, %s55
      %p59 = pneg %p53
      %p60 = scmp.eq.s32.totalorder %s44, 1
      %p61 = por %p59, %p60
      %p62 = scmp.ne.s32.totalorder %s54, %s57
      %p63 = scmp.eq.s32.totalorder %s44, 0
      %p64 = por %p62, %p63
      %p65 = scmp.ne.s32.totalorder %s54, %s57
      %p66 = scmp.eq.s32.totalorder %s49, 1
      %p67 = por %p65, %p66
      %p68 = scmp.ne.s32.totalorder %s57, %s58
      %p69 = scmp.eq.s32.totalorder %s49, 0
      %p70 = por %p68, %p69
      %p71 = scmp.ne.s32.totalorder %s57, %s58
      %p72 = scmp.eq.s32.totalorder %s50, 1
      %p73 = por %p71, %p72
      %p75 = scmp.ne.s32.totalorder %s58, %s74
      %p76 = scmp.eq.s32.totalorder %s50, 0
      %p77 = por %p75, %p76
      %s78 = ssub.s32 %s44, %s51
      %p79 = scmp.eq.s32.totalorder %s78, 0
      %s81 = sadd.s32 %s80, 1
      %s82 = scalar_select %p79, %s80, %s81
      %p85 = pneg %p79
      %p86 = scmp.eq.s32.totalorder %s44, 1
      %p87 = por %p85, %p86
      %p88 = scmp.ne.s32.totalorder %s80, %s83
      %p89 = scmp.eq.s32.totalorder %s44, 0
      %p90 = por %p88, %p89
      %p91 = scmp.ne.s32.totalorder %s80, %s83
      %p92 = scmp.eq.s32.totalorder %s49, 1
      %p93 = por %p91, %p92
      %p94 = scmp.ne.s32.totalorder %s83, %s84
      %p95 = scmp.eq.s32.totalorder %s49, 0
      %p96 = por %p94, %p95
      %p97 = scmp.ne.s32.totalorder %s83, %s84
      %p98 = scmp.eq.s32.totalorder %s50, 1
      %p99 = por %p97, %p98
      %p101 = scmp.ne.s32.totalorder %s84, %s100
      %p102 = scmp.eq.s32.totalorder %s50, 0
      %p103 = por %p101, %p102
      %s104 = ssub.s32 %s44, %s51
      %p105 = scmp.eq.s32.totalorder %s104, 0
      %s107 = sadd.s32 %s106, 1
      %s108 = scalar_select %p105, %s106, %s107
      %p111 = pneg %p105
      %p112 = scmp.eq.s32.totalorder %s44, 1
      %p113 = por %p111, %p112
      %p114 = scmp.ne.s32.totalorder %s106, %s109
      %p115 = scmp.eq.s32.totalorder %s44, 0
      %p116 = por %p114, %p115
      %p117 = scmp.ne.s32.totalorder %s106, %s109
      %p118 = scmp.eq.s32.totalorder %s49, 1
      %p119 = por %p117, %p118
      %p120 = scmp.ne.s32.totalorder %s109, %s110
      %p121 = scmp.eq.s32.totalorder %s49, 0
      %p122 = por %p120, %p121
      %p123 = scmp.ne.s32.totalorder %s109, %s110
      %p124 = scmp.eq.s32.totalorder %s50, 1
      %p125 = por %p123, %p124
      %p127 = scmp.ne.s32.totalorder %s110, %s126
      %p128 = scmp.eq.s32.totalorder %s50, 0
      %p129 = por %p127, %p128
      %s130 = ssub.s32 %s44, %s51
      %p131 = scmp.eq.s32.totalorder %s130, 0
      %s133 = sadd.s32 %s132, 1
      %s134 = scalar_select %p131, %s132, %s133
      %p137 = pneg %p131
      %p138 = scmp.eq.s32.totalorder %s44, 1
      %p139 = por %p137, %p138
      %p140 = scmp.ne.s32.totalorder %s132, %s135
      %p141 = scmp.eq.s32.totalorder %s44, 0
      %p142 = por %p140, %p141
      %p143 = scmp.ne.s32.totalorder %s132, %s135
      %p144 = scmp.eq.s32.totalorder %s49, 1
      %p145 = por %p143, %p144
      %p146 = scmp.ne.s32.totalorder %s135, %s136
      %p147 = scmp.eq.s32.totalorder %s49, 0
      %p148 = por %p146, %p147
      %p149 = scmp.ne.s32.totalorder %s135, %s136
      %p150 = scmp.eq.s32.totalorder %s50, 1
      %p151 = por %p149, %p150
      %p153 = scmp.ne.s32.totalorder %s136, %s152
      %p154 = scmp.eq.s32.totalorder %s50, 0
      %p155 = por %p153, %p154
      %s157 = sadd.s32 %s156, 1
      %p160 = scmp.eq.s32.totalorder %s44, 1
      %p161 = scmp.ne.s32.totalorder %s156, %s158
      %p162 = scmp.eq.s32.totalorder %s44, 0
      %p163 = por %p161, %p162
      %p164 = scmp.ne.s32.totalorder %s156, %s158
      %p165 = scmp.eq.s32.totalorder %s49, 1
      %p166 = por %p164, %p165
      %p167 = scmp.ne.s32.totalorder %s158, %s159
      %p168 = scmp.eq.s32.totalorder %s49, 0
      %p169 = por %p167, %p168
      %p170 = scmp.ne.s32.totalorder %s158, %s159
      %p171 = scmp.eq.s32.totalorder %s50, 1
      %p172 = por %p170, %p171
      %p174 = scmp.ne.s32.totalorder %s159, %s173
      %p175 = scmp.eq.s32.totalorder %s50, 0
      %p176 = por %p174, %p175
      %s178 = sadd.s32 %s177, 1
      %p181 = scmp.eq.s32.totalorder %s44, 1
      %p182 = scmp.ne.s32.totalorder %s177, %s179
      %p183 = scmp.eq.s32.totalorder %s44, 0
      %p184 = por %p182, %p183
      %p185 = scmp.ne.s32.totalorder %s177, %s179
      %p186 = scmp.eq.s32.totalorder %s49, 1
      %p187 = por %p185, %p186
      %p188 = scmp.ne.s32.totalorder %s179, %s180
      %p189 = scmp.eq.s32.totalorder %s49, 0
      %p190 = por %p188, %p189
      %p191 = scmp.ne.s32.totalorder %s179, %s180
      %p192 = scmp.eq.s32.totalorder %s50, 1
      %p193 = por %p191, %p192
      %p195 = scmp.ne.s32.totalorder %s180, %s194
      %p196 = scmp.eq.s32.totalorder %s50, 0
      %p197 = por %p195, %p196
      %s199 = sadd.s32 %s198, 1
      %p202 = scmp.eq.s32.totalorder %s44, 1
      %p203 = scmp.ne.s32.totalorder %s198, %s200
      %p204 = scmp.eq.s32.totalorder %s44, 0
      %p205 = por %p203, %p204
      %p206 = scmp.ne.s32.totalorder %s198, %s200
      %p207 = scmp.eq.s32.totalorder %s49, 1
      %p208 = por %p206, %p207
      %p209 = scmp.ne.s32.totalorder %s200, %s201
      %p210 = scmp.eq.s32.totalorder %s49, 0
      %p211 = por %p209, %p210
      %p212 = scmp.ne.s32.totalorder %s200, %s201
      %p213 = scmp.eq.s32.totalorder %s50, 1
      %p214 = por %p212, %p213
      %p216 = scmp.ne.s32.totalorder %s201, %s215
      %p217 = scmp.eq.s32.totalorder %s50, 0
      %p218 = por %p216, %p217
      %s220 = sadd.s32 %s219, 1
      %p223 = scmp.eq.s32.totalorder %s44, 1
      %p224 = scmp.ne.s32.totalorder %s219, %s221
      %p225 = scmp.eq.s32.totalorder %s44, 0
      %p226 = por %p224, %p225
      %p227 = scmp.ne.s32.totalorder %s219, %s221
      %p228 = scmp.eq.s32.totalorder %s49, 1
      %p229 = por %p227, %p228
      %p230 = scmp.ne.s32.totalorder %s221, %s222
      %p231 = scmp.eq.s32.totalorder %s49, 0
      %p232 = por %p230, %p231
      %p233 = scmp.ne.s32.totalorder %s221, %s222
      %p234 = scmp.eq.s32.totalorder %s50, 1
      %p235 = por %p233, %p234
      %p237 = scmp.ne.s32.totalorder %s222, %s236
      %p238 = scmp.eq.s32.totalorder %s50, 0
      %p239 = por %p237, %p238
      %s241 = sadd.s32 %s240, 1
      %p244 = scmp.eq.s32.totalorder %s44, 1
      %p245 = scmp.ne.s32.totalorder %s240, %s242
      %p246 = scmp.eq.s32.totalorder %s44, 0
      %p247 = por %p245, %p246
      %p248 = scmp.ne.s32.totalorder %s240, %s242
      %p249 = scmp.eq.s32.totalorder %s49, 1
      %p250 = por %p248, %p249
      %p251 = scmp.ne.s32.totalorder %s242, %s243
      %p252 = scmp.eq.s32.totalorder %s49, 0
      %p253 = por %p251, %p252
      %p254 = scmp.ne.s32.totalorder %s242, %s243
      %p255 = scmp.eq.s32.totalorder %s50, 1
      %p256 = por %p254, %p255
      %p258 = scmp.ne.s32.totalorder %s243, %s257
      %p259 = scmp.eq.s32.totalorder %s50, 0
      %p260 = por %p258, %p259
      %s262 = sadd.s32 %s261, 1
      %p265 = scmp.eq.s32.totalorder %s44, 1
      %p266 = scmp.ne.s32.totalorder %s261, %s263
      %p267 = scmp.eq.s32.totalorder %s44, 0
      %p268 = por %p266, %p267
      %p269 = scmp.ne.s32.totalorder %s261, %s263
      %p270 = scmp.eq.s32.totalorder %s49, 1
      %p271 = por %p269, %p270
      %p272 = scmp.ne.s32.totalorder %s263, %s264
      %p273 = scmp.eq.s32.totalorder %s49, 0
      %p274 = por %p272, %p273
      %p275 = scmp.ne.s32.totalorder %s263, %s264
      %p276 = scmp.eq.s32.totalorder %s50, 1
      %p277 = por %p275, %p276
      %p279 = scmp.ne.s32.totalorder %s264, %s278
      %p280 = scmp.eq.s32.totalorder %s50, 0
      %p281 = por %p279, %p280
      %s283 = sadd.s32 %s282, 1
      %p286 = scmp.eq.s32.totalorder %s44, 1
      %p287 = scmp.ne.s32.totalorder %s282, %s284
      %p288 = scmp.eq.s32.totalorder %s44, 0
      %p289 = por %p287, %p288
      %p290 = scmp.ne.s32.totalorder %s282, %s284
      %p291 = scmp.eq.s32.totalorder %s49, 1
      %p292 = por %p290, %p291
      %p293 = scmp.ne.s32.totalorder %s284, %s285
      %p294 = scmp.eq.s32.totalorder %s49, 0
      %p295 = por %p293, %p294
      %p296 = scmp.ne.s32.totalorder %s284, %s285
      %p297 = scmp.eq.s32.totalorder %s50, 1
      %p298 = por %p296, %p297
      %p300 = scmp.ne.s32.totalorder %s285, %s299
      %p301 = scmp.eq.s32.totalorder %s50, 0
      %p302 = por %p300, %p301
      %s304 = sadd.s32 %s303, 1
      %p307 = scmp.eq.s32.totalorder %s44, 1
      %p308 = scmp.ne.s32.totalorder %s303, %s305
      %p309 = scmp.eq.s32.totalorder %s44, 0
      %p310 = por %p308, %p309
      %p311 = scmp.ne.s32.totalorder %s303, %s305
      %p312 = scmp.eq.s32.totalorder %s49, 1
      %p313 = por %p311, %p312
      %p314 = scmp.ne.s32.totalorder %s305, %s306
      %p315 = scmp.eq.s32.totalorder %s49, 0
      %p316 = por %p314, %p315
      %p317 = scmp.ne.s32.totalorder %s305, %s306
      %p318 = scmp.eq.s32.totalorder %s50, 1
      %p319 = por %p317, %p318
      %p321 = scmp.ne.s32.totalorder %s306, %s320
      %p322 = scmp.eq.s32.totalorder %s50, 0
      %p323 = por %p321, %p322
      %s325 = sadd.s32 %s324, 1
      %p328 = scmp.eq.s32.totalorder %s44, 1
      %p329 = scmp.ne.s32.totalorder %s324, %s326
      %p330 = scmp.eq.s32.totalorder %s44, 0
      %p331 = por %p329, %p330
      %p332 = scmp.ne.s32.totalorder %s324, %s326
      %p333 = scmp.eq.s32.totalorder %s49, 1
      %p334 = por %p332, %p333
      %p335 = scmp.ne.s32.totalorder %s326, %s327
      %p336 = scmp.eq.s32.totalorder %s49, 0
      %p337 = por %p335, %p336
      %p338 = scmp.ne.s32.totalorder %s326, %s327
      %p339 = scmp.eq.s32.totalorder %s50, 1
      %p340 = por %p338, %p339
      %p342 = scmp.ne.s32.totalorder %s327, %s341
      %p343 = scmp.eq.s32.totalorder %s50, 0
      %p344 = por %p342, %p343
      %s346 = sadd.s32 %s345, 1
      %p349 = scmp.eq.s32.totalorder %s44, 1
      %p350 = scmp.ne.s32.totalorder %s345, %s347
      %p351 = scmp.eq.s32.totalorder %s44, 0
      %p352 = por %p350, %p351
      %p353 = scmp.ne.s32.totalorder %s345, %s347
      %p354 = scmp.eq.s32.totalorder %s49, 1
      %p355 = por %p353, %p354
      %p356 = scmp.ne.s32.totalorder %s347, %s348
      %p357 = scmp.eq.s32.totalorder %s49, 0
      %p358 = por %p356, %p357
      %p359 = scmp.ne.s32.totalorder %s347, %s348
      %p360 = scmp.eq.s32.totalorder %s50, 1
      %p361 = por %p359, %p360
      %p363 = scmp.ne.s32.totalorder %s348, %s362
      %p364 = scmp.eq.s32.totalorder %s50, 0
      %p365 = por %p363, %p364
      %s367 = sadd.s32 %s366, 1
      %p370 = scmp.eq.s32.totalorder %s44, 1
      %p371 = scmp.ne.s32.totalorder %s366, %s368
      %p372 = scmp.eq.s32.totalorder %s44, 0
      %p373 = por %p371, %p372
      %p374 = scmp.ne.s32.totalorder %s366, %s368
      %p375 = scmp.eq.s32.totalorder %s49, 1
      %p376 = por %p374, %p375
      %p377 = scmp.ne.s32.totalorder %s368, %s369
      %p378 = scmp.eq.s32.totalorder %s49, 0
      %p379 = por %p377, %p378
      %p380 = scmp.ne.s32.totalorder %s368, %s369
      %p381 = scmp.eq.s32.totalorder %s50, 1
      %p382 = por %p380, %p381
      %p384 = scmp.ne.s32.totalorder %s369, %s383
      %p385 = scmp.eq.s32.totalorder %s50, 0
      %p386 = por %p384, %p385
      %s388 = sadd.s32 %s387, 1
      %p391 = scmp.eq.s32.totalorder %s44, 1
      %p392 = scmp.ne.s32.totalorder %s387, %s389
      %p393 = scmp.eq.s32.totalorder %s44, 0
      %p394 = por %p392, %p393
      %p395 = scmp.ne.s32.totalorder %s387, %s389
      %p396 = scmp.eq.s32.totalorder %s49, 1
      %p397 = por %p395, %p396
      %p398 = scmp.ne.s32.totalorder %s389, %s390
      %p399 = scmp.eq.s32.totalorder %s49, 0
      %p400 = por %p398, %p399
      %p401 = scmp.ne.s32.totalorder %s389, %s390
      %p402 = scmp.eq.s32.totalorder %s50, 1
      %p403 = por %p401, %p402
      %p405 = scmp.ne.s32.totalorder %s390, %s404
      %p406 = scmp.eq.s32.totalorder %s50, 0
      %p407 = por %p405, %p406
      %s409 = sadd.s32 %s408, 1
      %p412 = scmp.eq.s32.totalorder %s44, 1
      %p413 = scmp.ne.s32.totalorder %s408, %s410
      %p414 = scmp.eq.s32.totalorder %s44, 0
      %p415 = por %p413, %p414
      %p416 = scmp.ne.s32.totalorder %s408, %s410
      %p417 = scmp.eq.s32.totalorder %s49, 1
      %p418 = por %p416, %p417
      %p419 = scmp.ne.s32.totalorder %s410, %s411
      %p420 = scmp.eq.s32.totalorder %s49, 0
      %p421 = por %p419, %p420
      %p422 = scmp.ne.s32.totalorder %s410, %s411
      %p423 = scmp.eq.s32.totalorder %s50, 1
      %p424 = por %p422, %p423
      %p426 = scmp.ne.s32.totalorder %s411, %s425
      %p427 = scmp.eq.s32.totalorder %s50, 0
      %p428 = por %p426, %p427
      %s430 = sadd.s32 %s429, 1
      %p433 = scmp.eq.s32.totalorder %s44, 1
      %p434 = scmp.ne.s32.totalorder %s429, %s431
      %p435 = scmp.eq.s32.totalorder %s44, 0
      %p436 = por %p434, %p435
      %p437 = scmp.ne.s32.totalorder %s429, %s431
      %p438 = scmp.eq.s32.totalorder %s49, 1
      %p439 = por %p437, %p438
      %p440 = scmp.ne.s32.totalorder %s431, %s432
      %p441 = scmp.eq.s32.totalorder %s49, 0
      %p442 = por %p440, %p441
      %p443 = scmp.ne.s32.totalorder %s431, %s432
      %p444 = scmp.eq.s32.totalorder %s50, 1
      %p445 = por %p443, %p444
      %p447 = scmp.ne.s32.totalorder %s432, %s446
      %p448 = scmp.eq.s32.totalorder %s50, 0
      %p449 = por %p447, %p448
      %s450 = ssub.s32 %s44, %s51
      %p451 = scmp.eq.s32.totalorder %s450, 0
      %s453 = sadd.s32 %s452, 1
      %s454 = scalar_select %p451, %s452, %s453
      %p457 = pneg %p451
      %p458 = scmp.eq.s32.totalorder %s44, 1
      %p459 = por %p457, %p458
      %p460 = scmp.ne.s32.totalorder %s452, %s455
      %p461 = scmp.eq.s32.totalorder %s44, 0
      %p462 = por %p460, %p461
      %p463 = scmp.ne.s32.totalorder %s452, %s455
      %p464 = scmp.eq.s32.totalorder %s49, 1
      %p465 = por %p463, %p464
      %p466 = scmp.ne.s32.totalorder %s455, %s456
      %p467 = scmp.eq.s32.totalorder %s49, 0
      %p468 = por %p466, %p467
      %p469 = scmp.ne.s32.totalorder %s455, %s456
      %p470 = scmp.eq.s32.totalorder %s50, 1
      %p471 = por %p469, %p470
      %p473 = scmp.ne.s32.totalorder %s456, %s472
      %p474 = scmp.eq.s32.totalorder %s50, 0
      %p475 = por %p473, %p474
      %s476 = ssub.s32 %s44, %s51
      %p477 = scmp.eq.s32.totalorder %s476, 0
      %s479 = sadd.s32 %s478, 1
      %s480 = scalar_select %p477, %s478, %s479
      %p483 = pneg %p477
      %p484 = scmp.eq.s32.totalorder %s44, 1
      %p485 = por %p483, %p484
      %p486 = scmp.ne.s32.totalorder %s478, %s481
      %p487 = scmp.eq.s32.totalorder %s44, 0
      %p488 = por %p486, %p487
      %p489 = scmp.ne.s32.totalorder %s478, %s481
      %p490 = scmp.eq.s32.totalorder %s49, 1
      %p491 = por %p489, %p490
      %p492 = scmp.ne.s32.totalorder %s481, %s482
      %p493 = scmp.eq.s32.totalorder %s49, 0
      %p494 = por %p492, %p493
      %p495 = scmp.ne.s32.totalorder %s481, %s482
      %p496 = scmp.eq.s32.totalorder %s50, 1
      %p497 = por %p495, %p496
      %p499 = scmp.ne.s32.totalorder %s482, %s498
      %p500 = scmp.eq.s32.totalorder %s50, 0
      %p501 = por %p499, %p500
      %p502 = scmp.le.s32.totalorder 1, %s44
      %p503 = scmp.lt.s32.totalorder %s44, 3
      %p504 = pnand %p502, %p503
      %p505 = pneg %p504
      // Predicated region
      $region9: #{tpu_custom_call.1} parent=5 // pred_check
        _
      $region10: #{tpu_custom_call.1} parent=5 // pred_check_branch
        %507 = sbr.rel (%p504) target = $region12
      $region11: #{tpu_custom_call.1} parent=5 // pred_region
        %s508 = ssub.s32 %s44, 1
        // Predicated region
        $region13: #{tpu_custom_call.1} parent=11 // pred_check
          %p509 = pneg %p169
        $region14: #{tpu_custom_call.1} parent=11 // pred_check_branch
          %511 = sbr.rel (%p509) target = $region16
        $region15: #{tpu_custom_call.1} parent=11 // pred_region
          %513 = vsyncadd [#allocation9], 0
          %s514 = sshll.u32 %s5, 4
          %s515 = int_to_ptr.hbm [resolvable:$true] %s514
          %s516 = sshll.u32 [#allocation10], 4
          %s517 = int_to_ptr.vmem [resolvable:$true] %s516
          %522 = dma.hbm_to_vmem [thread:$0]  %s515, 384, %s517, [#allocation9], 128, 128, 8
        $region16: #{tpu_custom_call.1} parent=11 // pred_fallthru
          _
        // Predicated region
        $region17: #{tpu_custom_call.1} parent=11 // pred_check
          %p523 = pneg %p190
        $region18: #{tpu_custom_call.1} parent=11 // pred_check_branch
          %525 = sbr.rel (%p523) target = $region20
        $region19: #{tpu_custom_call.1} parent=11 // pred_region
          _
        $region20: #{tpu_custom_call.1} parent=11 // pred_fallthru
          _
        // Predicated region
        $region21: #{tpu_custom_call.1} parent=11 // pred_check
          %p526 = pneg %p211
        $region22: #{tpu_custom_call.1} parent=11 // pred_check_branch
          %528 = sbr.rel (%p526) target = $region24
        $region23: #{tpu_custom_call.1} parent=11 // pred_region
          %530 = vsyncadd [#allocation12], 0
          %s532 = sshll.u32 %s7, 4
          %s533 = int_to_ptr.hbm [resolvable:$true] %s532
          %s534 = sshll.u32 [#allocation11], 4
          %s535 = int_to_ptr.vmem [resolvable:$true] %s534
          %537 = dma.hbm_to_vmem [thread:$0]  %s533, 16, %s535, [#allocation12]
        $region24: #{tpu_custom_call.1} parent=11 // pred_fallthru
          _
        // Predicated region
        $region25: #{tpu_custom_call.1} parent=11 // pred_check
          %p538 = pneg %p232
        $region26: #{tpu_custom_call.1} parent=11 // pred_check_branch
          %540 = sbr.rel (%p538) target = $region28
        $region27: #{tpu_custom_call.1} parent=11 // pred_region
          %542 = vsyncadd [#allocation12], 0
          %s544 = sshll.u32 %s8, 4
          %s545 = int_to_ptr.hbm [resolvable:$true] %s544
          %s546 = sshll.u32 [#allocation13], 4
          %s547 = int_to_ptr.vmem [resolvable:$true] %s546
          %549 = dma.hbm_to_vmem [thread:$0]  %s545, 16, %s547, [#allocation12]
        $region28: #{tpu_custom_call.1} parent=11 // pred_fallthru
          _
        // Predicated region
        $region29: #{tpu_custom_call.1} parent=11 // pred_check
          %p550 = pneg %p253
        $region30: #{tpu_custom_call.1} parent=11 // pred_check_branch
          %552 = sbr.rel (%p550) target = $region32
        $region31: #{tpu_custom_call.1} parent=11 // pred_region
          _
        $region32: #{tpu_custom_call.1} parent=11 // pred_fallthru
          _
        // Predicated region
        $region33: #{tpu_custom_call.1} parent=11 // pred_check
          %p553 = pneg %p274
        $region34: #{tpu_custom_call.1} parent=11 // pred_check_branch
          %555 = sbr.rel (%p553) target = $region36
        $region35: #{tpu_custom_call.1} parent=11 // pred_region
          _
        $region36: #{tpu_custom_call.1} parent=11 // pred_fallthru
          _
        // Predicated region
        $region37: #{tpu_custom_call.1} parent=11 // pred_check
          %p556 = pneg %p295
        $region38: #{tpu_custom_call.1} parent=11 // pred_check_branch
          %558 = sbr.rel (%p556) target = $region40
        $region39: #{tpu_custom_call.1} parent=11 // pred_region
          %560 = vsyncadd [#allocation15], 0
          %s562 = sshll.u32 %s11, 4
          %s563 = int_to_ptr.hbm [resolvable:$true] %s562
          %s564 = sshll.u32 [#allocation14], 4
          %s565 = int_to_ptr.vmem [resolvable:$true] %s564
          %567 = dma.hbm_to_vmem [thread:$0]  %s563, 16, %s565, [#allocation15]
        $region40: #{tpu_custom_call.1} parent=11 // pred_fallthru
          _
        // Predicated region
        $region41: #{tpu_custom_call.1} parent=11 // pred_check
          %p568 = pneg %p316
        $region42: #{tpu_custom_call.1} parent=11 // pred_check_branch
          %570 = sbr.rel (%p568) target = $region44
        $region43: #{tpu_custom_call.1} parent=11 // pred_region
          _
        $region44: #{tpu_custom_call.1} parent=11 // pred_fallthru
          _
        // Predicated region
        $region45: #{tpu_custom_call.1} parent=11 // pred_check
          %p571 = pneg %p337
        $region46: #{tpu_custom_call.1} parent=11 // pred_check_branch
          %573 = sbr.rel (%p571) target = $region48
        $region47: #{tpu_custom_call.1} parent=11 // pred_region
          %575 = vsyncadd [#allocation15], 0
          %s576 = sshll.u32 %s13, 4
          %s577 = int_to_ptr.hbm [resolvable:$true] %s576
          %s578 = sshll.u32 [#allocation16], 4
          %s579 = int_to_ptr.vmem [resolvable:$true] %s578
          %584 = dma.hbm_to_vmem [thread:$0]  %s577, 512, %s579, [#allocation15], 128, 128, 8
        $region48: #{tpu_custom_call.1} parent=11 // pred_fallthru
          _
        // Predicated region
        $region49: #{tpu_custom_call.1} parent=11 // pred_check
          %p585 = pneg %p358
        $region50: #{tpu_custom_call.1} parent=11 // pred_check_branch
          %587 = sbr.rel (%p585) target = $region52
        $region51: #{tpu_custom_call.1} parent=11 // pred_region
          _
        $region52: #{tpu_custom_call.1} parent=11 // pred_fallthru
          _
        // Predicated region
        $region53: #{tpu_custom_call.1} parent=11 // pred_check
          %p588 = pneg %p379
        $region54: #{tpu_custom_call.1} parent=11 // pred_check_branch
          %590 = sbr.rel (%p588) target = $region56
        $region55: #{tpu_custom_call.1} parent=11 // pred_region
          %592 = vsyncadd [#allocation18], 0
          %s593 = sshll.u32 %s15, 4
          %s594 = int_to_ptr.hbm [resolvable:$true] %s593
          %s595 = sshll.u32 [#allocation17], 4
          %s596 = int_to_ptr.vmem [resolvable:$true] %s595
          %601 = dma.hbm_to_vmem [thread:$0]  %s594, 512, %s596, [#allocation18], 128, 128, 8
        $region56: #{tpu_custom_call.1} parent=11 // pred_fallthru
          _
        // Predicated region
        $region57: #{tpu_custom_call.1} parent=11 // pred_check
          %p602 = pneg %p400
        $region58: #{tpu_custom_call.1} parent=11 // pred_check_branch
          %604 = sbr.rel (%p602) target = $region60
        $region59: #{tpu_custom_call.1} parent=11 // pred_region
          _
        $region60: #{tpu_custom_call.1} parent=11 // pred_fallthru
          _
        // Predicated region
        $region61: #{tpu_custom_call.1} parent=11 // pred_check
          %p605 = pneg %p421
        $region62: #{tpu_custom_call.1} parent=11 // pred_check_branch
          %607 = sbr.rel (%p605) target = $region64
        $region63: #{tpu_custom_call.1} parent=11 // pred_region
          _
        $region64: #{tpu_custom_call.1} parent=11 // pred_fallthru
          _
        // Predicated region
        $region65: #{tpu_custom_call.1} parent=11 // pred_check
          %p608 = pneg %p442
        $region66: #{tpu_custom_call.1} parent=11 // pred_check_branch
          %610 = sbr.rel (%p608) target = $region68
        $region67: #{tpu_custom_call.1} parent=11 // pred_region
          _
        $region68: #{tpu_custom_call.1} parent=11 // pred_fallthru
          _
      $region12: #{tpu_custom_call.1} parent=5 // pred_fallthru
        _
      %p611 = scmp.lt.s32.totalorder %s44, 2
      // Predicated region
      $region69: #{tpu_custom_call.1} parent=5 // pred_check
        %p612 = pneg %p611
      $region70: #{tpu_custom_call.1} parent=5 // pred_check_branch
        %614 = sbr.rel (%p612) target = $region72
      $region71: #{tpu_custom_call.1} parent=5 // pred_region
        // Predicated region
        $region73: #{tpu_custom_call.1} parent=71 // pred_check
          %p615 = pneg %p64
        $region74: #{tpu_custom_call.1} parent=71 // pred_check_branch
          %617 = sbr.rel (%p615) target = $region76
        $region75: #{tpu_custom_call.1} parent=71 // pred_region
          %p618 = scmp.lt.s32.totalorder %s44, 1
          %s619 = scalar_select %p618, %s44, 1
          %s620 = smul.addr %s619, 2
          %s621 = smul.addr %s620, 8
          %s622 = scalar_lea.vmem %s1, %s621
        $region76: #{tpu_custom_call.1} parent=71 // pred_fallthru
          _
        // Predicated region
        $region77: #{tpu_custom_call.1} parent=71 // pred_check
          %p623 = pneg %p90
        $region78: #{tpu_custom_call.1} parent=71 // pred_check_branch
          %625 = sbr.rel (%p623) target = $region80
        $region79: #{tpu_custom_call.1} parent=71 // pred_region
          %s626 = sand.u32 %s80, 1
          %s627 = scalar_lea.sflag [#allocation7], %s626
          %s628 = sand.u32 %s80, 1
          %s629 = smul.addr %s628, 2
          %s630 = scalar_lea.vmem [#allocation6], %s629
          %632 = vsyncadd %s627, 0
          %s633 = smul.addr %s44, 2
          %s634 = scalar_lea.hbm %s2, %s633
          %s636 = sshll.u32 %s634, 4
          %s637 = int_to_ptr.hbm [resolvable:$true] %s636
          %s638 = sshll.u32 %s630, 4
          %s639 = int_to_ptr.vmem [resolvable:$true] %s638
          %641 = dma.hbm_to_vmem [thread:$0]  %s637, 32, %s639, %s627
        $region80: #{tpu_custom_call.1} parent=71 // pred_fallthru
          _
        // Predicated region
        $region81: #{tpu_custom_call.1} parent=71 // pred_check
          %p642 = pneg %p116
        $region82: #{tpu_custom_call.1} parent=71 // pred_check_branch
          %644 = sbr.rel (%p642) target = $region84
        $region83: #{tpu_custom_call.1} parent=71 // pred_region
          %p645 = scmp.lt.s32.totalorder %s44, 1
          %s646 = scalar_select %p645, %s44, 1
          %s647 = smul.addr %s646, 2
          %s648 = smul.addr %s647, 8
          %s649 = scalar_lea.vmem %s3, %s648
        $region84: #{tpu_custom_call.1} parent=71 // pred_fallthru
          _
        // Predicated region
        $region85: #{tpu_custom_call.1} parent=71 // pred_check
          %p650 = pneg %p142
        $region86: #{tpu_custom_call.1} parent=71 // pred_check_branch
          %652 = sbr.rel (%p650) target = $region88
        $region87: #{tpu_custom_call.1} parent=71 // pred_region
          %s653 = sand.u32 %s44, 1
          %s654 = scalar_lea.sflag [#allocation9], %s653
          %s655 = sand.u32 %s132, 1
          %s656 = scalar_lea.vmem [#allocation8], %s655
          %658 = vsyncadd %s654, 0
          %s659 = scalar_lea.hbm %s4, %s44
          %s661 = sshll.u32 %s659, 4
          %s662 = int_to_ptr.hbm [resolvable:$true] %s661
          %s663 = sshll.u32 %s656, 4
          %s664 = int_to_ptr.vmem [resolvable:$true] %s663
          %666 = dma.hbm_to_vmem [thread:$0]  %s662, 16, %s664, %s654
        $region88: #{tpu_custom_call.1} parent=71 // pred_fallthru
          _
      $region72: #{tpu_custom_call.1} parent=5 // pred_fallthru
        _
      %p667 = scmp.le.s32.totalorder 1, %s44
      %p668 = scmp.lt.s32.totalorder %s44, 3
      %p669 = pnand %p667, %p668
      %p670 = pneg %p669
      // Predicated region
      $region89: #{tpu_custom_call.1} parent=5 // pred_check
        _
      $region90: #{tpu_custom_call.1} parent=5 // pred_check_branch
        %672 = sbr.rel (%p669) target = $region92
      $region91: #{tpu_custom_call.1} parent=5 // pred_region
        %s673 = ssub.s32 %s44, 1
        %s674 = sand.u32 %s83, 1
        %s675 = scalar_lea.sflag [#allocation7], %s674
        %s676 = sand.u32 %s83, 1
        %s677 = smul.addr %s676, 2
        %s678 = scalar_lea.vmem [#allocation6], %s677
        // Predicated region
        $region93: #{tpu_custom_call.1} parent=91 // pred_check
          %p679 = pneg %p96
        $region94: #{tpu_custom_call.1} parent=91 // pred_check_branch
          %681 = sbr.rel (%p679) target = $region96
        $region95: #{tpu_custom_call.1} parent=91 // pred_region
          %683 = dma.done %s675, 32
        $region96: #{tpu_custom_call.1} parent=91 // pred_fallthru
          _
        %s684 = sand.u32 %s49, 1
        %s685 = scalar_lea.sflag [#allocation9], %s684
        %s686 = sand.u32 %s135, 1
        %s687 = scalar_lea.vmem [#allocation8], %s686
        // Predicated region
        $region97: #{tpu_custom_call.1} parent=91 // pred_check
          %p688 = pneg %p148
        $region98: #{tpu_custom_call.1} parent=91 // pred_check_branch
          %690 = sbr.rel (%p688) target = $region100
        $region99: #{tpu_custom_call.1} parent=91 // pred_region
          %692 = dma.done %s685, 16
        $region100: #{tpu_custom_call.1} parent=91 // pred_fallthru
          _
        // Predicated region
        $region101: #{tpu_custom_call.1} parent=91 // pred_check
          %p693 = pneg %p169
        $region102: #{tpu_custom_call.1} parent=91 // pred_check_branch
          %695 = sbr.rel (%p693) target = $region104
        $region103: #{tpu_custom_call.1} parent=91 // pred_region
          %697 = dma.done [#allocation9], 384
        $region104: #{tpu_custom_call.1} parent=91 // pred_fallthru
          _
        // Predicated region
        $region105: #{tpu_custom_call.1} parent=91 // pred_check
          %p698 = pneg %p211
        $region106: #{tpu_custom_call.1} parent=91 // pred_check_branch
          %700 = sbr.rel (%p698) target = $region108
        $region107: #{tpu_custom_call.1} parent=91 // pred_region
          %702 = dma.done [#allocation12], 16
        $region108: #{tpu_custom_call.1} parent=91 // pred_fallthru
          _
        // Predicated region
        $region109: #{tpu_custom_call.1} parent=91 // pred_check
          %p703 = pneg %p232
        $region110: #{tpu_custom_call.1} parent=91 // pred_check_branch
          %705 = sbr.rel (%p703) target = $region112
        $region111: #{tpu_custom_call.1} parent=91 // pred_region
          %707 = dma.done [#allocation12], 16
        $region112: #{tpu_custom_call.1} parent=91 // pred_fallthru
          _
        // Predicated region
        $region113: #{tpu_custom_call.1} parent=91 // pred_check
          %p708 = pneg %p295
        $region114: #{tpu_custom_call.1} parent=91 // pred_check_branch
          %710 = sbr.rel (%p708) target = $region116
        $region115: #{tpu_custom_call.1} parent=91 // pred_region
          %712 = dma.done [#allocation15], 16
        $region116: #{tpu_custom_call.1} parent=91 // pred_fallthru
          _
        // Predicated region
        $region117: #{tpu_custom_call.1} parent=91 // pred_check
          %p713 = pneg %p337
        $region118: #{tpu_custom_call.1} parent=91 // pred_check_branch
          %715 = sbr.rel (%p713) target = $region120
        $region119: #{tpu_custom_call.1} parent=91 // pred_region
          %717 = dma.done [#allocation15], 512
        $region120: #{tpu_custom_call.1} parent=91 // pred_fallthru
          _
        // Predicated region
        $region121: #{tpu_custom_call.1} parent=91 // pred_check
          %p718 = pneg %p379
        $region122: #{tpu_custom_call.1} parent=91 // pred_check_branch
          %720 = sbr.rel (%p718) target = $region124
        $region123: #{tpu_custom_call.1} parent=91 // pred_region
          %722 = dma.done [#allocation18], 512
        $region124: #{tpu_custom_call.1} parent=91 // pred_fallthru
          _
        %p723 = scmp.lt.s32.totalorder %s49, 1
        %s724 = scalar_select %p723, %s49, 1
        %s725 = smul.addr %s724, 2
        %s726 = smul.addr %s725, 8
        %s727 = scalar_lea.vmem %s1, %s726
        %p728 = pneg %p70
        %p729 = pneg %p67
        %s730 = sand.u32 %s83, 1
        %s731 = scalar_lea.sflag [#allocation7], %s730
        %s732 = sand.u32 %s83, 1
        %s733 = smul.addr %s732, 2
        %s734 = scalar_lea.vmem [#allocation6], %s733
        %p735 = pneg %p96
        %p736 = pneg %p93
        %p737 = scmp.lt.s32.totalorder %s49, 1
        %s738 = scalar_select %p737, %s49, 1
        %s739 = smul.addr %s738, 2
        %s740 = smul.addr %s739, 8
        %s741 = scalar_lea.vmem %s3, %s740
        %p742 = pneg %p122
        %p743 = pneg %p119
        %s744 = sand.u32 %s49, 1
        %s745 = scalar_lea.sflag [#allocation9], %s744
        %s746 = sand.u32 %s135, 1
        %s747 = scalar_lea.vmem [#allocation8], %s746
        %p748 = pneg %p148
        %p749 = pneg %p145
        %p750 = pneg %p169
        %p751 = pneg %p166
        %p752 = pneg %p190
        %p753 = pneg %p187
        %p754 = pneg %p211
        %p755 = pneg %p208
        %p756 = pneg %p232
        %p757 = pneg %p229
        %p758 = pneg %p253
        %p759 = pneg %p250
        %p760 = pneg %p274
        %p761 = pneg %p271
        %p762 = pneg %p295
        %p763 = pneg %p292
        %p764 = pneg %p316
        %p765 = pneg %p313
        %p766 = pneg %p337
        %p767 = pneg %p334
        %p768 = pneg %p358
        %p769 = pneg %p355
        %p770 = pneg %p379
        %p771 = pneg %p376
        %p772 = pneg %p400
        %p773 = pneg %p397
        %p774 = pneg %p421
        %p775 = pneg %p418
        %p776 = pneg %p442
        %p777 = pneg %p439
        %p778 = pneg %p468
        %p779 = pneg %p465
        %p780 = scmp.lt.s32.totalorder %s49, 1
        %s781 = scalar_select %p780, %s49, 1
        %s782 = smul.addr %s781, 2
        %s783 = smul.addr %s782, 8
        %s784 = scalar_lea.vmem %s19, %s783
        %p785 = pneg %p494
        %p786 = pneg %p491
        %p787 = scmp.lt.s32.totalorder %s49, 1
        %s788 = scalar_select %p787, %s49, 1
        %s789 = smul.addr %s788, 2
        %s790 = smul.addr %s789, 8
        %s791 = scalar_lea.vmem %s20, %s790
        %p792 = scmp.lt.s32.totalorder %s49, 1
        %s793 = scalar_select %p792, %s49, 1
        %s794 = smul.addr %s793, 2
        %s795 = smul.addr %s794, 8
        %s796 = scalar_lea.vmem %s1, %s795
        %p797 = scmp.lt.s32.totalorder %s49, 1
        %s798 = scalar_select %p797, %s49, 1
        %s799 = smul.addr %s798, 2
        %s800 = smul.addr %s799, 8
        %s801 = scalar_lea.vmem %s3, %s800
        %p802 = scmp.lt.s32.totalorder %s49, 1
        %s803 = scalar_select %p802, %s49, 1
        %s804 = smul.addr %s803, 2
        %s805 = smul.addr %s804, 8
        %s806 = scalar_lea.vmem %s19, %s805
        %p807 = scmp.lt.s32.totalorder %s49, 1
        %s808 = scalar_select %p807, %s49, 1
        %s809 = smul.addr %s808, 2
        %s810 = smul.addr %s809, 8
        %s811 = scalar_lea.vmem %s20, %s810
        %s812 = sld [smem:[#allocation5 + %s49]]
        %v813 = vlaneseq
        %v814 = vshrl.u32 %v813, 7
        %v815 = vadd.s32 %v814, 8
        %v816 = vstv %s812
        %vm817 = vcmp.lt.s32.totalorder %v814, %v816
        %vm818 = vcmp.lt.s32.totalorder %v815, %v816
        %v819 = vsel %vm817, 1, 0
        %v820 = vsel %vm818, 1, 0
        %v821 = vcvt.s32.f32 %v819
        %v822 = vcvt.s32.f32 %v820
        %v823 = vld [vmem:[%s796] sm:$0xff]
        %v824 = vld [vmem:[%s796 + $0x8] sm:$0xf]
        %v825 = vld [vmem:[#allocation10] sm:$0xff]
        %v826 = vld [vmem:[#allocation10 + $0x8] sm:$0xff]
        %v827 = vld [vmem:[#allocation10 + $0x10] sm:$0xff]
        %v828 = vld [vmem:[#allocation11] sm:$0x1]
        %v830 = vperm.slane %v828, 0
        %vm832 = vcmask 195584
        %v834 = vsel %vm832, %v823, 0
        %v837 = vsel %vm832, %v824, 0
        %839 = vmatpush.msra.mxu0 0.0
        %840 = vmatpush.msra.mxu0 0.0
        %841 = vmatpush.msra.mxu0 0.0
        %842 = vmatpush.msra.mxu0 0.0
        %843 = vmatpush.msra.mxu0 0.0
        %844 = vmatpush.msra.mxu0 0.0
        %845 = vmatpush.msra.mxu0 0.0
        %846 = vmatpush.msra.mxu0 0.0
        %847 = vmatpush.msra.mxu0 0.0
        %848 = vmatpush.msra.mxu0 0.0
        %849 = vmatpush.msra.mxu0 0.0
        %850 = vmatpush.msra.mxu0 0.0
        %851 = vmatpush.msra.mxu0 0.0
        %852 = vmatpush.msra.mxu0 %v827
        %853 = vmatpush.msra.mxu0 %v826
        %854 = vmatpush.msra.mxu0 %v825
        %855 = vmatmul.f32.gmra.mxu0 %v834
        %v856 = vpop.f32.mrf.mxu0
        %v857 = vadd.f32 %v830, %v856
        %858 = vmatmul.f32.gmra.mxu0 %v837
        %v859 = vpop.f32.mrf.mxu0
        %v860 = vadd.f32 %v830, %v859
        %861 = vdwg.mxu0
        %v862 = vld [vmem:[%s6] sm:$0xff]
        %v863 = vld [vmem:[%s6 + $0x8] sm:$0xff]
        %v864 = vld [vmem:[%s6 + $0x10] sm:$0xff]
        %v865 = vld [vmem:[%s6 + $0x18] sm:$0xff]
        %v866 = vld [vmem:[#allocation13] sm:$0x1]
        %v867 = vld [vmem:[%s678] sm:$0x1]
        %vm868 = vcmask 261120
        %v870 = vsel %vm868, %v867, 0
        %872 = vmatpush.msra.mxu0 0.0
        %873 = vmatpush.msra.mxu0 0.0
        %874 = vmatpush.msra.mxu0 0.0
        %875 = vmatpush.msra.mxu0 0.0
        %876 = vmatpush.msra.mxu0 0.0
        %877 = vmatpush.msra.mxu0 0.0
        %878 = vmatpush.msra.mxu0 0.0
        %879 = vmatpush.msra.mxu0 0.0
        %880 = vmatpush.msra.mxu0 0.0
        %881 = vmatpush.msra.mxu0 0.0
        %882 = vmatpush.msra.mxu0 0.0
        %883 = vmatpush.msra.mxu0 0.0
        %884 = vmatpush.msra.mxu0 %v865
        %885 = vmatpush.msra.mxu0 %v864
        %886 = vmatpush.msra.mxu0 %v863
        %887 = vmatpush.msra.mxu0 %v862
        %888 = vmatmul.f32.gmra.mxu0 %v870
        %v889 = vpop.f32.mrf.mxu0
        %v890 = vadd.f32 %v866, %v889
        %891 = vdwg.mxu0
        %v892 = vadd.f32 %v857, %v890
        %v893 = vxor.u32 %v892, 2147483648
        %v894 = vmul.f32 %v893, 1.442695
        %v895 = vpow.pop %v894
        %v896 = vadd.f32 %v895, 1.0
        %v897 = vrcp.pop %v896
        %v898 = vmul.f32 %v896, %v897
        %v899 = vsub.f32 1.0, %v898
        %v900 = vmul.f32 %v897, %v899
        %v901 = vadd.f32 %v897, %v900
        %vm902 = vweird.f32 %v896
        %vm903 = vweird.f32 %v897
        %vm904 = vmor %vm902, %vm903
        %v905 = vsel %vm904, %v897, %v901
        %v906 = vand.u32 2147483647, %v896
        %vm907 = vcmp.eq.f32.partialorder %v906, 8.507059e+37
        %v908 = vand.u32 %v896, 2147483648
        %v909 = vor.u32 1.1754944e-38, %v908
        %v910 = vsel %vm907, %v909, %v905
        %v911 = vmul.f32 1.0, %v910
        %913 = vrot.lane.b32.xlu0 %v890, 64
        %v914 = vpop.permute.xlu0 %913
        %v916 = vmul.f32 %v911, %v914
        %918 = vrot.lane.b32.xlu0 %v916, 64
        %v919 = vpop.permute.xlu0 %918
        %v921 = vadd.f32 %v857, %v919
        %v922 = vtanh.pop %v921
        %v923 = vsub.f32 1.0, %v911
        %925 = vrot.lane.b32.xlu0 %v922, 96
        %v926 = vpop.permute.xlu0 %925
        %v928 = vmul.f32 %v923, %v926
        %929 = vrot.lane.b32.xlu0 %v867, 32
        %v930 = vpop.permute.xlu0 %929
        %v932 = vmul.f32 %v911, %v930
        %v933 = vadd.f32 %v928, %v932
        %v934 = vmul.f32 %v821, %v933
        %936 = vrot.lane.b32.xlu0 %v934, 96
        %v937 = vpop.permute.xlu0 %936
        %vm939 = vcmask 253952
        %940 = vst.msk [vmem:[#allocation2] sm:$0x1] %vm939, %v937
        %v941 = vsub.f32 1.0, %v821
        %v942 = vmul.f32 %v941, %v867
        %944 = vrot.lane.b32.xlu0 %v942, 32
        %v945 = vpop.permute.xlu0 %944
        %v947 = vadd.f32 %v934, %v945
        %949 = vrot.lane.b32.xlu0 %v947, 96
        %v950 = vpop.permute.xlu0 %949
        %v951 = vsel %vm868, %v950, 0
        %953 = vmatpush.msra.mxu0 0.0
        %954 = vmatpush.msra.mxu0 0.0
        %955 = vmatpush.msra.mxu0 0.0
        %956 = vmatpush.msra.mxu0 0.0
        %957 = vmatpush.msra.mxu0 0.0
        %958 = vmatpush.msra.mxu0 0.0
        %959 = vmatpush.msra.mxu0 0.0
        %960 = vmatpush.msra.mxu0 0.0
        %961 = vmatpush.msra.mxu0 0.0
        %962 = vmatpush.msra.mxu0 0.0
        %963 = vmatpush.msra.mxu0 0.0
        %964 = vmatpush.msra.mxu0 0.0
        %965 = vmatpush.msra.mxu0 %v865
        %966 = vmatpush.msra.mxu0 %v864
        %967 = vmatpush.msra.mxu0 %v863
        %968 = vmatpush.msra.mxu0 %v862
        %969 = vmatmul.f32.gmra.mxu0 %v951
        %v970 = vpop.f32.mrf.mxu0
        %v971 = vadd.f32 %v866, %v970
        %972 = vdwg.mxu0
        %v974 = vrot.slane %v971, 7
        %v976 = vadd.f32 %v857, %v974
        %v977 = vxor.u32 %v976, 2147483648
        %v978 = vmul.f32 %v977, 1.442695
        %v979 = vpow.pop %v978
        %v980 = vadd.f32 %v979, 1.0
        %v981 = vrcp.pop %v980
        %v982 = vmul.f32 %v980, %v981
        %v983 = vsub.f32 1.0, %v982
        %v984 = vmul.f32 %v981, %v983
        %v985 = vadd.f32 %v981, %v984
        %vm986 = vweird.f32 %v980
        %vm987 = vweird.f32 %v981
        %vm988 = vmor %vm986, %vm987
        %v989 = vsel %vm988, %v981, %v985
        %v990 = vand.u32 2147483647, %v980
        %vm991 = vcmp.eq.f32.partialorder %v990, 8.507059e+37
        %v992 = vand.u32 %v980, 2147483648
        %v993 = vor.u32 1.1754944e-38, %v992
        %v994 = vsel %vm991, %v993, %v989
        %v995 = vmul.f32 1.0, %v994
        %996 = vrot.lane.b32.xlu0 %v974, 64
        %v997 = vpop.permute.xlu0 %996
        %v999 = vmul.f32 %v995, %v997
        %1001 = vrot.lane.b32.xlu0 %v999, 64
        %v1002 = vpop.permute.xlu0 %1001
        %v1004 = vadd.f32 %v857, %v1002
        %v1005 = vtanh.pop %v1004
        %v1006 = vsub.f32 1.0, %v995
        %1008 = vrot.lane.b32.xlu0 %v1005, 96
        %v1009 = vpop.permute.xlu0 %1008
        %v1011 = vmul.f32 %v1006, %v1009
        %v1012 = vrot.slane %v947, 7
        %v1014 = vmul.f32 %v995, %v1012
        %v1015 = vadd.f32 %v1011, %v1014
        %v1016 = vmul.f32 %v821, %v1015
        %1018 = vrot.lane.b32.xlu0 %v1016, 96
        %v1019 = vpop.permute.xlu0 %1018
        %vm1021 = vcmask 254977
        %1022 = vst.msk [vmem:[#allocation2] sm:$0x2] %vm1021, %v1019
        %1023 = vrot.lane.b32.xlu0 %v1012, 96
        %v1024 = vpop.permute.xlu0 %1023
        %v1026 = vmul.f32 %v941, %v1024
        %1028 = vrot.lane.b32.xlu0 %v1026, 32
        %v1029 = vpop.permute.xlu0 %1028
        %v1031 = vadd.f32 %v1016, %v1029
        %v1033 = vrot.slane %v1031, 1
        %1034 = vrot.lane.b32.xlu0 %v1033, 96
        %v1035 = vpop.permute.xlu0 %1034
        %v1036 = vsel %vm868, %v1035, 0
        %1038 = vmatpush.msra.mxu0 0.0
        %1039 = vmatpush.msra.mxu0 0.0
        %1040 = vmatpush.msra.mxu0 0.0
        %1041 = vmatpush.msra.mxu0 0.0
        %1042 = vmatpush.msra.mxu0 0.0
        %1043 = vmatpush.msra.mxu0 0.0
        %1044 = vmatpush.msra.mxu0 0.0
        %1045 = vmatpush.msra.mxu0 0.0
        %1046 = vmatpush.msra.mxu0 0.0
        %1047 = vmatpush.msra.mxu0 0.0
        %1048 = vmatpush.msra.mxu0 0.0
        %1049 = vmatpush.msra.mxu0 0.0
        %1050 = vmatpush.msra.mxu0 %v865
        %1051 = vmatpush.msra.mxu0 %v864
        %1052 = vmatpush.msra.mxu0 %v863
        %1053 = vmatpush.msra.mxu0 %v862
        %1054 = vmatmul.f32.gmra.mxu0 %v1036
        %v1055 = vpop.f32.mrf.mxu0
        %v1056 = vadd.f32 %v866, %v1055
        %1057 = vdwg.mxu0
        %v1059 = vrot.slane %v1056, 6
        %v1061 = vadd.f32 %v857, %v1059
        %v1062 = vxor.u32 %v1061, 2147483648
        %v1063 = vmul.f32 %v1062, 1.442695
        %v1064 = vpow.pop %v1063
        %v1065 = vadd.f32 %v1064, 1.0
        %v1066 = vrcp.pop %v1065
        %v1067 = vmul.f32 %v1065, %v1066
        %v1068 = vsub.f32 1.0, %v1067
        %v1069 = vmul.f32 %v1066, %v1068
        %v1070 = vadd.f32 %v1066, %v1069
        %vm1071 = vweird.f32 %v1065
        %vm1072 = vweird.f32 %v1066
        %vm1073 = vmor %vm1071, %vm1072
        %v1074 = vsel %vm1073, %v1066, %v1070
        %v1075 = vand.u32 2147483647, %v1065
        %vm1076 = vcmp.eq.f32.partialorder %v1075, 8.507059e+37
        %v1077 = vand.u32 %v1065, 2147483648
        %v1078 = vor.u32 1.1754944e-38, %v1077
        %v1079 = vsel %vm1076, %v1078, %v1074
        %v1080 = vmul.f32 1.0, %v1079
        %1081 = vrot.lane.b32.xlu0 %v1059, 64
        %v1082 = vpop.permute.xlu0 %1081
        %v1084 = vmul.f32 %v1080, %v1082
        %1086 = vrot.lane.b32.xlu0 %v1084, 64
        %v1087 = vpop.permute.xlu0 %1086
        %v1089 = vadd.f32 %v857, %v1087
        %v1090 = vtanh.pop %v1089
        %v1091 = vsub.f32 1.0, %v1080
        %1093 = vrot.lane.b32.xlu0 %v1090, 96
        %v1094 = vpop.permute.xlu0 %1093
        %v1096 = vmul.f32 %v1091, %v1094
        %v1097 = vrot.slane %v1031, 7
        %v1099 = vmul.f32 %v1080, %v1097
        %v1100 = vadd.f32 %v1096, %v1099
        %v1101 = vmul.f32 %v821, %v1100
        %1103 = vrot.lane.b32.xlu0 %v1101, 96
        %v1104 = vpop.permute.xlu0 %1103
        %vm1106 = vcmask 256002
        %1107 = vst.msk [vmem:[#allocation2] sm:$0x4] %vm1106, %v1104
        %1108 = vrot.lane.b32.xlu0 %v1097, 96
        %v1109 = vpop.permute.xlu0 %1108
        %v1111 = vmul.f32 %v941, %v1109
        %1113 = vrot.lane.b32.xlu0 %v1111, 32
        %v1114 = vpop.permute.xlu0 %1113
        %v1116 = vadd.f32 %v1101, %v1114
        %v1118 = vrot.slane %v1116, 2
        %1119 = vrot.lane.b32.xlu0 %v1118, 96
        %v1120 = vpop.permute.xlu0 %1119
        %v1121 = vsel %vm868, %v1120, 0
        %1123 = vmatpush.msra.mxu0 0.0
        %1124 = vmatpush.msra.mxu0 0.0
        %1125 = vmatpush.msra.mxu0 0.0
        %1126 = vmatpush.msra.mxu0 0.0
        %1127 = vmatpush.msra.mxu0 0.0
        %1128 = vmatpush.msra.mxu0 0.0
        %1129 = vmatpush.msra.mxu0 0.0
        %1130 = vmatpush.msra.mxu0 0.0
        %1131 = vmatpush.msra.mxu0 0.0
        %1132 = vmatpush.msra.mxu0 0.0
        %1133 = vmatpush.msra.mxu0 0.0
        %1134 = vmatpush.msra.mxu0 0.0
        %1135 = vmatpush.msra.mxu0 %v865
        %1136 = vmatpush.msra.mxu0 %v864
        %1137 = vmatpush.msra.mxu0 %v863
        %1138 = vmatpush.msra.mxu0 %v862
        %1139 = vmatmul.f32.gmra.mxu0 %v1121
        %v1140 = vpop.f32.mrf.mxu0
        %v1141 = vadd.f32 %v866, %v1140
        %1142 = vdwg.mxu0
        %v1144 = vrot.slane %v1141, 5
        %v1146 = vadd.f32 %v857, %v1144
        %v1147 = vxor.u32 %v1146, 2147483648
        %v1148 = vmul.f32 %v1147, 1.442695
        %v1149 = vpow.pop %v1148
        %v1150 = vadd.f32 %v1149, 1.0
        %v1151 = vrcp.pop %v1150
        %v1152 = vmul.f32 %v1150, %v1151
        %v1153 = vsub.f32 1.0, %v1152
        %v1154 = vmul.f32 %v1151, %v1153
        %v1155 = vadd.f32 %v1151, %v1154
        %vm1156 = vweird.f32 %v1150
        %vm1157 = vweird.f32 %v1151
        %vm1158 = vmor %vm1156, %vm1157
        %v1159 = vsel %vm1158, %v1151, %v1155
        %v1160 = vand.u32 2147483647, %v1150
        %vm1161 = vcmp.eq.f32.partialorder %v1160, 8.507059e+37
        %v1162 = vand.u32 %v1150, 2147483648
        %v1163 = vor.u32 1.1754944e-38, %v1162
        %v1164 = vsel %vm1161, %v1163, %v1159
        %v1165 = vmul.f32 1.0, %v1164
        %1166 = vrot.lane.b32.xlu0 %v1144, 64
        %v1167 = vpop.permute.xlu0 %1166
        %v1169 = vmul.f32 %v1165, %v1167
        %1171 = vrot.lane.b32.xlu0 %v1169, 64
        %v1172 = vpop.permute.xlu0 %1171
        %v1174 = vadd.f32 %v857, %v1172
        %v1175 = vtanh.pop %v1174
        %v1176 = vsub.f32 1.0, %v1165
        %1178 = vrot.lane.b32.xlu0 %v1175, 96
        %v1179 = vpop.permute.xlu0 %1178
        %v1181 = vmul.f32 %v1176, %v1179
        %v1182 = vrot.slane %v1116, 7
        %v1184 = vmul.f32 %v1165, %v1182
        %v1185 = vadd.f32 %v1181, %v1184
        %v1186 = vmul.f32 %v821, %v1185
        %1188 = vrot.lane.b32.xlu0 %v1186, 96
        %v1189 = vpop.permute.xlu0 %1188
        %vm1191 = vcmask 257027
        %1192 = vst.msk [vmem:[#allocation2] sm:$0x8] %vm1191, %v1189
        %1193 = vrot.lane.b32.xlu0 %v1182, 96
        %v1194 = vpop.permute.xlu0 %1193
        %v1196 = vmul.f32 %v941, %v1194
        %1198 = vrot.lane.b32.xlu0 %v1196, 32
        %v1199 = vpop.permute.xlu0 %1198
        %v1201 = vadd.f32 %v1186, %v1199
        %v1203 = vrot.slane %v1201, 3
        %1204 = vrot.lane.b32.xlu0 %v1203, 96
        %v1205 = vpop.permute.xlu0 %1204
        %v1206 = vsel %vm868, %v1205, 0
        %1208 = vmatpush.msra.mxu0 0.0
        %1209 = vmatpush.msra.mxu0 0.0
        %1210 = vmatpush.msra.mxu0 0.0
        %1211 = vmatpush.msra.mxu0 0.0
        %1212 = vmatpush.msra.mxu0 0.0
        %1213 = vmatpush.msra.mxu0 0.0
        %1214 = vmatpush.msra.mxu0 0.0
        %1215 = vmatpush.msra.mxu0 0.0
        %1216 = vmatpush.msra.mxu0 0.0
        %1217 = vmatpush.msra.mxu0 0.0
        %1218 = vmatpush.msra.mxu0 0.0
        %1219 = vmatpush.msra.mxu0 0.0
        %1220 = vmatpush.msra.mxu0 %v865
        %1221 = vmatpush.msra.mxu0 %v864
        %1222 = vmatpush.msra.mxu0 %v863
        %1223 = vmatpush.msra.mxu0 %v862
        %1224 = vmatmul.f32.gmra.mxu0 %v1206
        %v1225 = vpop.f32.mrf.mxu0
        %v1226 = vadd.f32 %v866, %v1225
        %1227 = vdwg.mxu0
        %v1229 = vrot.slane %v1226, 4
        %v1231 = vadd.f32 %v857, %v1229
        %v1232 = vxor.u32 %v1231, 2147483648
        %v1233 = vmul.f32 %v1232, 1.442695
        %v1234 = vpow.pop %v1233
        %v1235 = vadd.f32 %v1234, 1.0
        %v1236 = vrcp.pop %v1235
        %v1237 = vmul.f32 %v1235, %v1236
        %v1238 = vsub.f32 1.0, %v1237
        %v1239 = vmul.f32 %v1236, %v1238
        %v1240 = vadd.f32 %v1236, %v1239
        %vm1241 = vweird.f32 %v1235
        %vm1242 = vweird.f32 %v1236
        %vm1243 = vmor %vm1241, %vm1242
        %v1244 = vsel %vm1243, %v1236, %v1240
        %v1245 = vand.u32 2147483647, %v1235
        %vm1246 = vcmp.eq.f32.partialorder %v1245, 8.507059e+37
        %v1247 = vand.u32 %v1235, 2147483648
        %v1248 = vor.u32 1.1754944e-38, %v1247
        %v1249 = vsel %vm1246, %v1248, %v1244
        %v1250 = vmul.f32 1.0, %v1249
        %1251 = vrot.lane.b32.xlu0 %v1229, 64
        %v1252 = vpop.permute.xlu0 %1251
        %v1254 = vmul.f32 %v1250, %v1252
        %1256 = vrot.lane.b32.xlu0 %v1254, 64
        %v1257 = vpop.permute.xlu0 %1256
        %v1259 = vadd.f32 %v857, %v1257
        %v1260 = vtanh.pop %v1259
        %v1261 = vsub.f32 1.0, %v1250
        %1263 = vrot.lane.b32.xlu0 %v1260, 96
        %v1264 = vpop.permute.xlu0 %1263
        %v1266 = vmul.f32 %v1261, %v1264
        %v1267 = vrot.slane %v1201, 7
        %v1269 = vmul.f32 %v1250, %v1267
        %v1270 = vadd.f32 %v1266, %v1269
        %v1271 = vmul.f32 %v821, %v1270
        %1273 = vrot.lane.b32.xlu0 %v1271, 96
        %v1274 = vpop.permute.xlu0 %1273
        %vm1276 = vcmask 258052
        %1277 = vst.msk [vmem:[#allocation2] sm:$0x10] %vm1276, %v1274
        %1278 = vrot.lane.b32.xlu0 %v1267, 96
        %v1279 = vpop.permute.xlu0 %1278
        %v1281 = vmul.f32 %v941, %v1279
        %1283 = vrot.lane.b32.xlu0 %v1281, 32
        %v1284 = vpop.permute.xlu0 %1283
        %v1286 = vadd.f32 %v1271, %v1284
        %v1288 = vrot.slane %v1286, 4
        %1289 = vrot.lane.b32.xlu0 %v1288, 96
        %v1290 = vpop.permute.xlu0 %1289
        %v1291 = vsel %vm868, %v1290, 0
        %1293 = vmatpush.msra.mxu0 0.0
        %1294 = vmatpush.msra.mxu0 0.0
        %1295 = vmatpush.msra.mxu0 0.0
        %1296 = vmatpush.msra.mxu0 0.0
        %1297 = vmatpush.msra.mxu0 0.0
        %1298 = vmatpush.msra.mxu0 0.0
        %1299 = vmatpush.msra.mxu0 0.0
        %1300 = vmatpush.msra.mxu0 0.0
        %1301 = vmatpush.msra.mxu0 0.0
        %1302 = vmatpush.msra.mxu0 0.0
        %1303 = vmatpush.msra.mxu0 0.0
        %1304 = vmatpush.msra.mxu0 0.0
        %1305 = vmatpush.msra.mxu0 %v865
        %1306 = vmatpush.msra.mxu0 %v864
        %1307 = vmatpush.msra.mxu0 %v863
        %1308 = vmatpush.msra.mxu0 %v862
        %1309 = vmatmul.f32.gmra.mxu0 %v1291
        %v1310 = vpop.f32.mrf.mxu0
        %v1311 = vadd.f32 %v866, %v1310
        %1312 = vdwg.mxu0
        %v1314 = vrot.slane %v1311, 3
        %v1316 = vadd.f32 %v857, %v1314
        %v1317 = vxor.u32 %v1316, 2147483648
        %v1318 = vmul.f32 %v1317, 1.442695
        %v1319 = vpow.pop %v1318
        %v1320 = vadd.f32 %v1319, 1.0
        %v1321 = vrcp.pop %v1320
        %v1322 = vmul.f32 %v1320, %v1321
        %v1323 = vsub.f32 1.0, %v1322
        %v1324 = vmul.f32 %v1321, %v1323
        %v1325 = vadd.f32 %v1321, %v1324
        %vm1326 = vweird.f32 %v1320
        %vm1327 = vweird.f32 %v1321
        %vm1328 = vmor %vm1326, %vm1327
        %v1329 = vsel %vm1328, %v1321, %v1325
        %v1330 = vand.u32 2147483647, %v1320
        %vm1331 = vcmp.eq.f32.partialorder %v1330, 8.507059e+37
        %v1332 = vand.u32 %v1320, 2147483648
        %v1333 = vor.u32 1.1754944e-38, %v1332
        %v1334 = vsel %vm1331, %v1333, %v1329
        %v1335 = vmul.f32 1.0, %v1334
        %1336 = vrot.lane.b32.xlu0 %v1314, 64
        %v1337 = vpop.permute.xlu0 %1336
        %v1339 = vmul.f32 %v1335, %v1337
        %1341 = vrot.lane.b32.xlu0 %v1339, 64
        %v1342 = vpop.permute.xlu0 %1341
        %v1344 = vadd.f32 %v857, %v1342
        %v1345 = vtanh.pop %v1344
        %v1346 = vsub.f32 1.0, %v1335
        %1348 = vrot.lane.b32.xlu0 %v1345, 96
        %v1349 = vpop.permute.xlu0 %1348
        %v1351 = vmul.f32 %v1346, %v1349
        %v1352 = vrot.slane %v1286, 7
        %v1354 = vmul.f32 %v1335, %v1352
        %v1355 = vadd.f32 %v1351, %v1354
        %v1356 = vmul.f32 %v821, %v1355
        %1358 = vrot.lane.b32.xlu0 %v1356, 96
        %v1359 = vpop.permute.xlu0 %1358
        %vm1361 = vcmask 259077
        %1362 = vst.msk [vmem:[#allocation2] sm:$0x20] %vm1361, %v1359
        %1363 = vrot.lane.b32.xlu0 %v1352, 96
        %v1364 = vpop.permute.xlu0 %1363
        %v1366 = vmul.f32 %v941, %v1364
        %1368 = vrot.lane.b32.xlu0 %v1366, 32
        %v1369 = vpop.permute.xlu0 %1368
        %v1371 = vadd.f32 %v1356, %v1369
        %v1373 = vrot.slane %v1371, 5
        %1374 = vrot.lane.b32.xlu0 %v1373, 96
        %v1375 = vpop.permute.xlu0 %1374
        %v1376 = vsel %vm868, %v1375, 0
        %1378 = vmatpush.msra.mxu0 0.0
        %1379 = vmatpush.msra.mxu0 0.0
        %1380 = vmatpush.msra.mxu0 0.0
        %1381 = vmatpush.msra.mxu0 0.0
        %1382 = vmatpush.msra.mxu0 0.0
        %1383 = vmatpush.msra.mxu0 0.0
        %1384 = vmatpush.msra.mxu0 0.0
        %1385 = vmatpush.msra.mxu0 0.0
        %1386 = vmatpush.msra.mxu0 0.0
        %1387 = vmatpush.msra.mxu0 0.0
        %1388 = vmatpush.msra.mxu0 0.0
        %1389 = vmatpush.msra.mxu0 0.0
        %1390 = vmatpush.msra.mxu0 %v865
        %1391 = vmatpush.msra.mxu0 %v864
        %1392 = vmatpush.msra.mxu0 %v863
        %1393 = vmatpush.msra.mxu0 %v862
        %1394 = vmatmul.f32.gmra.mxu0 %v1376
        %v1395 = vpop.f32.mrf.mxu0
        %v1396 = vadd.f32 %v866, %v1395
        %1397 = vdwg.mxu0
        %v1399 = vrot.slane %v1396, 2
        %v1401 = vadd.f32 %v857, %v1399
        %v1402 = vxor.u32 %v1401, 2147483648
        %v1403 = vmul.f32 %v1402, 1.442695
        %v1404 = vpow.pop %v1403
        %v1405 = vadd.f32 %v1404, 1.0
        %v1406 = vrcp.pop %v1405
        %v1407 = vmul.f32 %v1405, %v1406
        %v1408 = vsub.f32 1.0, %v1407
        %v1409 = vmul.f32 %v1406, %v1408
        %v1410 = vadd.f32 %v1406, %v1409
        %vm1411 = vweird.f32 %v1405
        %vm1412 = vweird.f32 %v1406
        %vm1413 = vmor %vm1411, %vm1412
        %v1414 = vsel %vm1413, %v1406, %v1410
        %v1415 = vand.u32 2147483647, %v1405
        %vm1416 = vcmp.eq.f32.partialorder %v1415, 8.507059e+37
        %v1417 = vand.u32 %v1405, 2147483648
        %v1418 = vor.u32 1.1754944e-38, %v1417
        %v1419 = vsel %vm1416, %v1418, %v1414
        %v1420 = vmul.f32 1.0, %v1419
        %1421 = vrot.lane.b32.xlu0 %v1399, 64
        %v1422 = vpop.permute.xlu0 %1421
        %v1424 = vmul.f32 %v1420, %v1422
        %1426 = vrot.lane.b32.xlu0 %v1424, 64
        %v1427 = vpop.permute.xlu0 %1426
        %v1429 = vadd.f32 %v857, %v1427
        %v1430 = vtanh.pop %v1429
        %v1431 = vsub.f32 1.0, %v1420
        %1433 = vrot.lane.b32.xlu0 %v1430, 96
        %v1434 = vpop.permute.xlu0 %1433
        %v1436 = vmul.f32 %v1431, %v1434
        %v1437 = vrot.slane %v1371, 7
        %v1439 = vmul.f32 %v1420, %v1437
        %v1440 = vadd.f32 %v1436, %v1439
        %v1441 = vmul.f32 %v821, %v1440
        %1443 = vrot.lane.b32.xlu0 %v1441, 96
        %v1444 = vpop.permute.xlu0 %1443
        %vm1446 = vcmask 260102
        %1447 = vst.msk [vmem:[#allocation2] sm:$0x40] %vm1446, %v1444
        %1448 = vrot.lane.b32.xlu0 %v1437, 96
        %v1449 = vpop.permute.xlu0 %1448
        %v1451 = vmul.f32 %v941, %v1449
        %1453 = vrot.lane.b32.xlu0 %v1451, 32
        %v1454 = vpop.permute.xlu0 %1453
        %v1456 = vadd.f32 %v1441, %v1454
        %v1458 = vrot.slane %v1456, 6
        %1459 = vrot.lane.b32.xlu0 %v1458, 96
        %v1460 = vpop.permute.xlu0 %1459
        %v1461 = vsel %vm868, %v1460, 0
        %1463 = vmatpush.msra.mxu0 0.0
        %1464 = vmatpush.msra.mxu0 0.0
        %1465 = vmatpush.msra.mxu0 0.0
        %1466 = vmatpush.msra.mxu0 0.0
        %1467 = vmatpush.msra.mxu0 0.0
        %1468 = vmatpush.msra.mxu0 0.0
        %1469 = vmatpush.msra.mxu0 0.0
        %1470 = vmatpush.msra.mxu0 0.0
        %1471 = vmatpush.msra.mxu0 0.0
        %1472 = vmatpush.msra.mxu0 0.0
        %1473 = vmatpush.msra.mxu0 0.0
        %1474 = vmatpush.msra.mxu0 0.0
        %1475 = vmatpush.msra.mxu0 %v865
        %1476 = vmatpush.msra.mxu0 %v864
        %1477 = vmatpush.msra.mxu0 %v863
        %1478 = vmatpush.msra.mxu0 %v862
        %1479 = vmatmul.f32.gmra.mxu0 %v1461
        %v1480 = vpop.f32.mrf.mxu0
        %v1481 = vadd.f32 %v866, %v1480
        %1482 = vdwg.mxu0
        %v1484 = vrot.slane %v1481, 1
        %v1486 = vadd.f32 %v857, %v1484
        %v1487 = vxor.u32 %v1486, 2147483648
        %v1488 = vmul.f32 %v1487, 1.442695
        %v1489 = vpow.pop %v1488
        %v1490 = vadd.f32 %v1489, 1.0
        %v1491 = vrcp.pop %v1490
        %v1492 = vmul.f32 %v1490, %v1491
        %v1493 = vsub.f32 1.0, %v1492
        %v1494 = vmul.f32 %v1491, %v1493
        %v1495 = vadd.f32 %v1491, %v1494
        %vm1496 = vweird.f32 %v1490
        %vm1497 = vweird.f32 %v1491
        %vm1498 = vmor %vm1496, %vm1497
        %v1499 = vsel %vm1498, %v1491, %v1495
        %v1500 = vand.u32 2147483647, %v1490
        %vm1501 = vcmp.eq.f32.partialorder %v1500, 8.507059e+37
        %v1502 = vand.u32 %v1490, 2147483648
        %v1503 = vor.u32 1.1754944e-38, %v1502
        %v1504 = vsel %vm1501, %v1503, %v1499
        %v1505 = vmul.f32 1.0, %v1504
        %1506 = vrot.lane.b32.xlu0 %v1484, 64
        %v1507 = vpop.permute.xlu0 %1506
        %v1509 = vmul.f32 %v1505, %v1507
        %1511 = vrot.lane.b32.xlu0 %v1509, 64
        %v1512 = vpop.permute.xlu0 %1511
        %v1514 = vadd.f32 %v857, %v1512
        %v1515 = vtanh.pop %v1514
        %v1516 = vsub.f32 1.0, %v1505
        %1518 = vrot.lane.b32.xlu0 %v1515, 96
        %v1519 = vpop.permute.xlu0 %1518
        %v1521 = vmul.f32 %v1516, %v1519
        %v1522 = vrot.slane %v1456, 7
        %v1524 = vmul.f32 %v1505, %v1522
        %v1525 = vadd.f32 %v1521, %v1524
        %v1526 = vmul.f32 %v821, %v1525
        %1528 = vrot.lane.b32.xlu0 %v1526, 96
        %v1529 = vpop.permute.xlu0 %1528
        %vm1531 = vcmask 261127
        %1532 = vst.msk [vmem:[#allocation2] sm:$0x80] %vm1531, %v1529
        %1533 = vrot.lane.b32.xlu0 %v1522, 96
        %v1534 = vpop.permute.xlu0 %1533
        %v1536 = vmul.f32 %v941, %v1534
        %1538 = vrot.lane.b32.xlu0 %v1536, 32
        %v1539 = vpop.permute.xlu0 %1538
        %v1541 = vadd.f32 %v1526, %v1539
        %v1543 = vrot.slane %v1541, 7
        %1544 = vrot.lane.b32.xlu0 %v1543, 96
        %v1545 = vpop.permute.xlu0 %1544
        %v1546 = vsel %vm868, %v1545, 0
        %1548 = vmatpush.msra.mxu0 0.0
        %1549 = vmatpush.msra.mxu0 0.0
        %1550 = vmatpush.msra.mxu0 0.0
        %1551 = vmatpush.msra.mxu0 0.0
        %1552 = vmatpush.msra.mxu0 0.0
        %1553 = vmatpush.msra.mxu0 0.0
        %1554 = vmatpush.msra.mxu0 0.0
        %1555 = vmatpush.msra.mxu0 0.0
        %1556 = vmatpush.msra.mxu0 0.0
        %1557 = vmatpush.msra.mxu0 0.0
        %1558 = vmatpush.msra.mxu0 0.0
        %1559 = vmatpush.msra.mxu0 0.0
        %1560 = vmatpush.msra.mxu0 %v865
        %1561 = vmatpush.msra.mxu0 %v864
        %1562 = vmatpush.msra.mxu0 %v863
        %1563 = vmatpush.msra.mxu0 %v862
        %1564 = vmatmul.f32.gmra.mxu0 %v1546
        %v1565 = vpop.f32.mrf.mxu0
        %v1566 = vadd.f32 %v866, %v1565
        %1567 = vdwg.mxu0
        %v1568 = vadd.f32 %v860, %v1566
        %v1569 = vxor.u32 %v1568, 2147483648
        %v1570 = vmul.f32 %v1569, 1.442695
        %v1571 = vpow.pop %v1570
        %v1572 = vadd.f32 %v1571, 1.0
        %v1573 = vrcp.pop %v1572
        %v1574 = vmul.f32 %v1572, %v1573
        %v1575 = vsub.f32 1.0, %v1574
        %v1576 = vmul.f32 %v1573, %v1575
        %v1577 = vadd.f32 %v1573, %v1576
        %vm1578 = vweird.f32 %v1572
        %vm1579 = vweird.f32 %v1573
        %vm1580 = vmor %vm1578, %vm1579
        %v1581 = vsel %vm1580, %v1573, %v1577
        %v1582 = vand.u32 2147483647, %v1572
        %vm1583 = vcmp.eq.f32.partialorder %v1582, 8.507059e+37
        %v1584 = vand.u32 %v1572, 2147483648
        %v1585 = vor.u32 1.1754944e-38, %v1584
        %v1586 = vsel %vm1583, %v1585, %v1581
        %v1587 = vmul.f32 1.0, %v1586
        %1589 = vrot.lane.b32.xlu0 %v1566, 64
        %v1590 = vpop.permute.xlu0 %1589
        %v1592 = vmul.f32 %v1587, %v1590
        %1594 = vrot.lane.b32.xlu0 %v1592, 64
        %v1595 = vpop.permute.xlu0 %1594
        %v1597 = vadd.f32 %v860, %v1595
        %v1598 = vtanh.pop %v1597
        %v1599 = vsub.f32 1.0, %v1587
        %1601 = vrot.lane.b32.xlu0 %v1598, 96
        %v1602 = vpop.permute.xlu0 %1601
        %v1604 = vmul.f32 %v1599, %v1602
        %v1606 = vmul.f32 %v1587, %v1543
        %v1607 = vadd.f32 %v1604, %v1606
        %v1608 = vmul.f32 %v822, %v1607
        %1610 = vrot.lane.b32.xlu0 %v1608, 96
        %v1611 = vpop.permute.xlu0 %1610
        %1613 = vst.msk [vmem:[#allocation2 + $0x8] sm:$0x1] %vm939, %v1611
        %v1614 = vsub.f32 1.0, %v822
        %v1616 = vmul.f32 %v1614, %v1545
        %1618 = vrot.lane.b32.xlu0 %v1616, 32
        %v1619 = vpop.permute.xlu0 %1618
        %v1621 = vadd.f32 %v1608, %v1619
        %1623 = vrot.lane.b32.xlu0 %v1621, 96
        %v1624 = vpop.permute.xlu0 %1623
        %v1625 = vsel %vm868, %v1624, 0
        %1627 = vmatpush.msra.mxu0 0.0
        %1628 = vmatpush.msra.mxu0 0.0
        %1629 = vmatpush.msra.mxu0 0.0
        %1630 = vmatpush.msra.mxu0 0.0
        %1631 = vmatpush.msra.mxu0 0.0
        %1632 = vmatpush.msra.mxu0 0.0
        %1633 = vmatpush.msra.mxu0 0.0
        %1634 = vmatpush.msra.mxu0 0.0
        %1635 = vmatpush.msra.mxu0 0.0
        %1636 = vmatpush.msra.mxu0 0.0
        %1637 = vmatpush.msra.mxu0 0.0
        %1638 = vmatpush.msra.mxu0 0.0
        %1639 = vmatpush.msra.mxu0 %v865
        %1640 = vmatpush.msra.mxu0 %v864
        %1641 = vmatpush.msra.mxu0 %v863
        %1642 = vmatpush.msra.mxu0 %v862
        %1643 = vmatmul.f32.gmra.mxu0 %v1625
        %v1644 = vpop.f32.mrf.mxu0
        %v1645 = vadd.f32 %v866, %v1644
        %1646 = vdwg.mxu0
        %v1648 = vrot.slane %v1645, 7
        %v1650 = vadd.f32 %v860, %v1648
        %v1651 = vxor.u32 %v1650, 2147483648
        %v1652 = vmul.f32 %v1651, 1.442695
        %v1653 = vpow.pop %v1652
        %v1654 = vadd.f32 %v1653, 1.0
        %v1655 = vrcp.pop %v1654
        %v1656 = vmul.f32 %v1654, %v1655
        %v1657 = vsub.f32 1.0, %v1656
        %v1658 = vmul.f32 %v1655, %v1657
        %v1659 = vadd.f32 %v1655, %v1658
        %vm1660 = vweird.f32 %v1654
        %vm1661 = vweird.f32 %v1655
        %vm1662 = vmor %vm1660, %vm1661
        %v1663 = vsel %vm1662, %v1655, %v1659
        %v1664 = vand.u32 2147483647, %v1654
        %vm1665 = vcmp.eq.f32.partialorder %v1664, 8.507059e+37
        %v1666 = vand.u32 %v1654, 2147483648
        %v1667 = vor.u32 1.1754944e-38, %v1666
        %v1668 = vsel %vm1665, %v1667, %v1663
        %v1669 = vmul.f32 1.0, %v1668
        %1670 = vrot.lane.b32.xlu0 %v1648, 64
        %v1671 = vpop.permute.xlu0 %1670
        %v1673 = vmul.f32 %v1669, %v1671
        %1675 = vrot.lane.b32.xlu0 %v1673, 64
        %v1676 = vpop.permute.xlu0 %1675
        %v1678 = vadd.f32 %v860, %v1676
        %v1679 = vtanh.pop %v1678
        %v1680 = vsub.f32 1.0, %v1669
        %1682 = vrot.lane.b32.xlu0 %v1679, 96
        %v1683 = vpop.permute.xlu0 %1682
        %v1685 = vmul.f32 %v1680, %v1683
        %v1686 = vrot.slane %v1621, 7
        %v1688 = vmul.f32 %v1669, %v1686
        %v1689 = vadd.f32 %v1685, %v1688
        %v1690 = vmul.f32 %v822, %v1689
        %1692 = vrot.lane.b32.xlu0 %v1690, 96
        %v1693 = vpop.permute.xlu0 %1692
        %1695 = vst.msk [vmem:[#allocation2 + $0x8] sm:$0x2] %vm1021, %v1693
        %1696 = vrot.lane.b32.xlu0 %v1686, 96
        %v1697 = vpop.permute.xlu0 %1696
        %v1699 = vmul.f32 %v1614, %v1697
        %1701 = vrot.lane.b32.xlu0 %v1699, 32
        %v1702 = vpop.permute.xlu0 %1701
        %v1704 = vadd.f32 %v1690, %v1702
        %v1706 = vrot.slane %v1704, 1
        %1707 = vrot.lane.b32.xlu0 %v1706, 96
        %v1708 = vpop.permute.xlu0 %1707
        %v1709 = vsel %vm868, %v1708, 0
        %1711 = vmatpush.msra.mxu0 0.0
        %1712 = vmatpush.msra.mxu0 0.0
        %1713 = vmatpush.msra.mxu0 0.0
        %1714 = vmatpush.msra.mxu0 0.0
        %1715 = vmatpush.msra.mxu0 0.0
        %1716 = vmatpush.msra.mxu0 0.0
        %1717 = vmatpush.msra.mxu0 0.0
        %1718 = vmatpush.msra.mxu0 0.0
        %1719 = vmatpush.msra.mxu0 0.0
        %1720 = vmatpush.msra.mxu0 0.0
        %1721 = vmatpush.msra.mxu0 0.0
        %1722 = vmatpush.msra.mxu0 0.0
        %1723 = vmatpush.msra.mxu0 %v865
        %1724 = vmatpush.msra.mxu0 %v864
        %1725 = vmatpush.msra.mxu0 %v863
        %1726 = vmatpush.msra.mxu0 %v862
        %1727 = vmatmul.f32.gmra.mxu0 %v1709
        %v1728 = vpop.f32.mrf.mxu0
        %v1729 = vadd.f32 %v866, %v1728
        %1730 = vdwg.mxu0
        %v1732 = vrot.slane %v1729, 6
        %v1734 = vadd.f32 %v860, %v1732
        %v1735 = vxor.u32 %v1734, 2147483648
        %v1736 = vmul.f32 %v1735, 1.442695
        %v1737 = vpow.pop %v1736
        %v1738 = vadd.f32 %v1737, 1.0
        %v1739 = vrcp.pop %v1738
        %v1740 = vmul.f32 %v1738, %v1739
        %v1741 = vsub.f32 1.0, %v1740
        %v1742 = vmul.f32 %v1739, %v1741
        %v1743 = vadd.f32 %v1739, %v1742
        %vm1744 = vweird.f32 %v1738
        %vm1745 = vweird.f32 %v1739
        %vm1746 = vmor %vm1744, %vm1745
        %v1747 = vsel %vm1746, %v1739, %v1743
        %v1748 = vand.u32 2147483647, %v1738
        %vm1749 = vcmp.eq.f32.partialorder %v1748, 8.507059e+37
        %v1750 = vand.u32 %v1738, 2147483648
        %v1751 = vor.u32 1.1754944e-38, %v1750
        %v1752 = vsel %vm1749, %v1751, %v1747
        %v1753 = vmul.f32 1.0, %v1752
        %1754 = vrot.lane.b32.xlu0 %v1732, 64
        %v1755 = vpop.permute.xlu0 %1754
        %v1757 = vmul.f32 %v1753, %v1755
        %1759 = vrot.lane.b32.xlu0 %v1757, 64
        %v1760 = vpop.permute.xlu0 %1759
        %v1762 = vadd.f32 %v860, %v1760
        %v1763 = vtanh.pop %v1762
        %v1764 = vsub.f32 1.0, %v1753
        %1766 = vrot.lane.b32.xlu0 %v1763, 96
        %v1767 = vpop.permute.xlu0 %1766
        %v1769 = vmul.f32 %v1764, %v1767
        %v1770 = vrot.slane %v1704, 7
        %v1772 = vmul.f32 %v1753, %v1770
        %v1773 = vadd.f32 %v1769, %v1772
        %v1774 = vmul.f32 %v822, %v1773
        %1776 = vrot.lane.b32.xlu0 %v1774, 96
        %v1777 = vpop.permute.xlu0 %1776
        %1779 = vst.msk [vmem:[#allocation2 + $0x8] sm:$0x4] %vm1106, %v1777
        %1780 = vrot.lane.b32.xlu0 %v1770, 96
        %v1781 = vpop.permute.xlu0 %1780
        %v1783 = vmul.f32 %v1614, %v1781
        %1785 = vrot.lane.b32.xlu0 %v1783, 32
        %v1786 = vpop.permute.xlu0 %1785
        %v1788 = vadd.f32 %v1774, %v1786
        %v1790 = vrot.slane %v1788, 2
        %1791 = vrot.lane.b32.xlu0 %v1790, 96
        %v1792 = vpop.permute.xlu0 %1791
        %v1793 = vsel %vm868, %v1792, 0
        %1795 = vmatpush.msra.mxu0 0.0
        %1796 = vmatpush.msra.mxu0 0.0
        %1797 = vmatpush.msra.mxu0 0.0
        %1798 = vmatpush.msra.mxu0 0.0
        %1799 = vmatpush.msra.mxu0 0.0
        %1800 = vmatpush.msra.mxu0 0.0
        %1801 = vmatpush.msra.mxu0 0.0
        %1802 = vmatpush.msra.mxu0 0.0
        %1803 = vmatpush.msra.mxu0 0.0
        %1804 = vmatpush.msra.mxu0 0.0
        %1805 = vmatpush.msra.mxu0 0.0
        %1806 = vmatpush.msra.mxu0 0.0
        %1807 = vmatpush.msra.mxu0 %v865
        %1808 = vmatpush.msra.mxu0 %v864
        %1809 = vmatpush.msra.mxu0 %v863
        %1810 = vmatpush.msra.mxu0 %v862
        %1811 = vmatmul.f32.gmra.mxu0 %v1793
        %v1812 = vpop.f32.mrf.mxu0
        %v1813 = vadd.f32 %v866, %v1812
        %1814 = vdwg.mxu0
        %v1816 = vrot.slane %v1813, 5
        %v1818 = vadd.f32 %v860, %v1816
        %v1819 = vxor.u32 %v1818, 2147483648
        %v1820 = vmul.f32 %v1819, 1.442695
        %v1821 = vpow.pop %v1820
        %v1822 = vadd.f32 %v1821, 1.0
        %v1823 = vrcp.pop %v1822
        %v1824 = vmul.f32 %v1822, %v1823
        %v1825 = vsub.f32 1.0, %v1824
        %v1826 = vmul.f32 %v1823, %v1825
        %v1827 = vadd.f32 %v1823, %v1826
        %vm1828 = vweird.f32 %v1822
        %vm1829 = vweird.f32 %v1823
        %vm1830 = vmor %vm1828, %vm1829
        %v1831 = vsel %vm1830, %v1823, %v1827
        %v1832 = vand.u32 2147483647, %v1822
        %vm1833 = vcmp.eq.f32.partialorder %v1832, 8.507059e+37
        %v1834 = vand.u32 %v1822, 2147483648
        %v1835 = vor.u32 1.1754944e-38, %v1834
        %v1836 = vsel %vm1833, %v1835, %v1831
        %v1837 = vmul.f32 1.0, %v1836
        %1838 = vrot.lane.b32.xlu0 %v1816, 64
        %v1839 = vpop.permute.xlu0 %1838
        %v1841 = vmul.f32 %v1837, %v1839
        %1843 = vrot.lane.b32.xlu0 %v1841, 64
        %v1844 = vpop.permute.xlu0 %1843
        %v1846 = vadd.f32 %v860, %v1844
        %v1847 = vtanh.pop %v1846
        %v1848 = vsub.f32 1.0, %v1837
        %1850 = vrot.lane.b32.xlu0 %v1847, 96
        %v1851 = vpop.permute.xlu0 %1850
        %v1853 = vmul.f32 %v1848, %v1851
        %v1854 = vrot.slane %v1788, 7
        %v1856 = vmul.f32 %v1837, %v1854
        %v1857 = vadd.f32 %v1853, %v1856
        %v1858 = vmul.f32 %v822, %v1857
        %1860 = vrot.lane.b32.xlu0 %v1858, 96
        %v1861 = vpop.permute.xlu0 %1860
        %1863 = vst.msk [vmem:[#allocation2 + $0x8] sm:$0x8] %vm1191, %v1861
        %v1864 = vld [vmem:[#allocation2] sm:$0xff]
        %v1865 = vld [vmem:[#allocation2 + $0x8] sm:$0xf]
        %v1866 = vld [vmem:[%s9] sm:$0xff]
        %v1867 = vld [vmem:[%s9 + $0x8] sm:$0xff]
        %v1868 = vld [vmem:[%s9 + $0x10] sm:$0xff]
        %v1869 = vld [vmem:[%s9 + $0x18] sm:$0xff]
        %v1870 = vld [vmem:[#allocation14] sm:$0x1]
        %v1872 = vperm.slane %v1870, 0
        %v1875 = vsel %vm868, %v1864, 0
        %v1878 = vsel %vm868, %v1865, 0
        %1880 = vmatpush.msra.mxu0 0.0
        %1881 = vmatpush.msra.mxu0 0.0
        %1882 = vmatpush.msra.mxu0 0.0
        %1883 = vmatpush.msra.mxu0 0.0
        %1884 = vmatpush.msra.mxu0 0.0
        %1885 = vmatpush.msra.mxu0 0.0
        %1886 = vmatpush.msra.mxu0 0.0
        %1887 = vmatpush.msra.mxu0 0.0
        %1888 = vmatpush.msra.mxu0 0.0
        %1889 = vmatpush.msra.mxu0 0.0
        %1890 = vmatpush.msra.mxu0 0.0
        %1891 = vmatpush.msra.mxu0 0.0
        %1892 = vmatpush.msra.mxu0 %v1869
        %1893 = vmatpush.msra.mxu0 %v1868
        %1894 = vmatpush.msra.mxu0 %v1867
        %1895 = vmatpush.msra.mxu0 %v1866
        %1896 = vmatmul.f32.gmra.mxu0 %v1875
        %v1897 = vpop.f32.mrf.mxu0
        %v1898 = vadd.f32 %v1872, %v1897
        %1899 = vmatmul.f32.gmra.mxu0 %v1878
        %v1900 = vpop.f32.mrf.mxu0
        %v1901 = vadd.f32 %v1872, %v1900
        %1902 = vdwg.mxu0
        %v1903 = vld [vmem:[%s10] sm:$0xff]
        %v1904 = vld [vmem:[%s10 + $0x8] sm:$0xff]
        %v1905 = vld [vmem:[%s10 + $0x10] sm:$0xff]
        %v1906 = vld [vmem:[%s10 + $0x18] sm:$0xff]
        %v1907 = vld [vmem:[%s12] sm:$0x1]
        %v1908 = vld [vmem:[%s678 + $0x1] sm:$0x1]
        %v1910 = vsel %vm868, %v1908, 0
        %1912 = vmatpush.msra.mxu0 0.0
        %1913 = vmatpush.msra.mxu0 0.0
        %1914 = vmatpush.msra.mxu0 0.0
        %1915 = vmatpush.msra.mxu0 0.0
        %1916 = vmatpush.msra.mxu0 0.0
        %1917 = vmatpush.msra.mxu0 0.0
        %1918 = vmatpush.msra.mxu0 0.0
        %1919 = vmatpush.msra.mxu0 0.0
        %1920 = vmatpush.msra.mxu0 0.0
        %1921 = vmatpush.msra.mxu0 0.0
        %1922 = vmatpush.msra.mxu0 0.0
        %1923 = vmatpush.msra.mxu0 0.0
        %1924 = vmatpush.msra.mxu0 %v1906
        %1925 = vmatpush.msra.mxu0 %v1905
        %1926 = vmatpush.msra.mxu0 %v1904
        %1927 = vmatpush.msra.mxu0 %v1903
        %1928 = vmatmul.f32.gmra.mxu0 %v1910
        %v1929 = vpop.f32.mrf.mxu0
        %v1930 = vadd.f32 %v1907, %v1929
        %1931 = vdwg.mxu0
        %v1932 = vadd.f32 %v1898, %v1930
        %v1933 = vxor.u32 %v1932, 2147483648
        %v1934 = vmul.f32 %v1933, 1.442695
        %v1935 = vpow.pop %v1934
        %v1936 = vadd.f32 %v1935, 1.0
        %v1937 = vrcp.pop %v1936
        %v1938 = vmul.f32 %v1936, %v1937
        %v1939 = vsub.f32 1.0, %v1938
        %v1940 = vmul.f32 %v1937, %v1939
        %v1941 = vadd.f32 %v1937, %v1940
        %vm1942 = vweird.f32 %v1936
        %vm1943 = vweird.f32 %v1937
        %vm1944 = vmor %vm1942, %vm1943
        %v1945 = vsel %vm1944, %v1937, %v1941
        %v1946 = vand.u32 2147483647, %v1936
        %vm1947 = vcmp.eq.f32.partialorder %v1946, 8.507059e+37
        %v1948 = vand.u32 %v1936, 2147483648
        %v1949 = vor.u32 1.1754944e-38, %v1948
        %v1950 = vsel %vm1947, %v1949, %v1945
        %v1951 = vmul.f32 1.0, %v1950
        %1953 = vrot.lane.b32.xlu0 %v1930, 64
        %v1954 = vpop.permute.xlu0 %1953
        %v1956 = vmul.f32 %v1951, %v1954
        %1958 = vrot.lane.b32.xlu0 %v1956, 64
        %v1959 = vpop.permute.xlu0 %1958
        %v1961 = vadd.f32 %v1898, %v1959
        %v1962 = vtanh.pop %v1961
        %v1963 = vsub.f32 1.0, %v1951
        %1965 = vrot.lane.b32.xlu0 %v1962, 96
        %v1966 = vpop.permute.xlu0 %1965
        %v1968 = vmul.f32 %v1963, %v1966
        %1969 = vrot.lane.b32.xlu0 %v1908, 32
        %v1970 = vpop.permute.xlu0 %1969
        %v1972 = vmul.f32 %v1951, %v1970
        %v1973 = vadd.f32 %v1968, %v1972
        %v1974 = vmul.f32 %v821, %v1973
        %1976 = vrot.lane.b32.xlu0 %v1974, 96
        %v1977 = vpop.permute.xlu0 %1976
        %1979 = vst.msk [vmem:[#allocation3] sm:$0x1] %vm939, %v1977
        %v1980 = vmul.f32 %v941, %v1908
        %1982 = vrot.lane.b32.xlu0 %v1980, 32
        %v1983 = vpop.permute.xlu0 %1982
        %v1985 = vadd.f32 %v1974, %v1983
        %1987 = vrot.lane.b32.xlu0 %v1985, 96
        %v1988 = vpop.permute.xlu0 %1987
        %v1989 = vsel %vm868, %v1988, 0
        %1991 = vmatpush.msra.mxu0 0.0
        %1992 = vmatpush.msra.mxu0 0.0
        %1993 = vmatpush.msra.mxu0 0.0
        %1994 = vmatpush.msra.mxu0 0.0
        %1995 = vmatpush.msra.mxu0 0.0
        %1996 = vmatpush.msra.mxu0 0.0
        %1997 = vmatpush.msra.mxu0 0.0
        %1998 = vmatpush.msra.mxu0 0.0
        %1999 = vmatpush.msra.mxu0 0.0
        %2000 = vmatpush.msra.mxu0 0.0
        %2001 = vmatpush.msra.mxu0 0.0
        %2002 = vmatpush.msra.mxu0 0.0
        %2003 = vmatpush.msra.mxu0 %v1906
        %2004 = vmatpush.msra.mxu0 %v1905
        %2005 = vmatpush.msra.mxu0 %v1904
        %2006 = vmatpush.msra.mxu0 %v1903
        %2007 = vmatmul.f32.gmra.mxu0 %v1989
        %v2008 = vpop.f32.mrf.mxu0
        %v2009 = vadd.f32 %v1907, %v2008
        %2010 = vdwg.mxu0
        %v2012 = vrot.slane %v2009, 7
        %v2014 = vadd.f32 %v1898, %v2012
        %v2015 = vxor.u32 %v2014, 2147483648
        %v2016 = vmul.f32 %v2015, 1.442695
        %v2017 = vpow.pop %v2016
        %v2018 = vadd.f32 %v2017, 1.0
        %v2019 = vrcp.pop %v2018
        %v2020 = vmul.f32 %v2018, %v2019
        %v2021 = vsub.f32 1.0, %v2020
        %v2022 = vmul.f32 %v2019, %v2021
        %v2023 = vadd.f32 %v2019, %v2022
        %vm2024 = vweird.f32 %v2018
        %vm2025 = vweird.f32 %v2019
        %vm2026 = vmor %vm2024, %vm2025
        %v2027 = vsel %vm2026, %v2019, %v2023
        %v2028 = vand.u32 2147483647, %v2018
        %vm2029 = vcmp.eq.f32.partialorder %v2028, 8.507059e+37
        %v2030 = vand.u32 %v2018, 2147483648
        %v2031 = vor.u32 1.1754944e-38, %v2030
        %v2032 = vsel %vm2029, %v2031, %v2027
        %v2033 = vmul.f32 1.0, %v2032
        %2034 = vrot.lane.b32.xlu0 %v2012, 64
        %v2035 = vpop.permute.xlu0 %2034
        %v2037 = vmul.f32 %v2033, %v2035
        %2039 = vrot.lane.b32.xlu0 %v2037, 64
        %v2040 = vpop.permute.xlu0 %2039
        %v2042 = vadd.f32 %v1898, %v2040
        %v2043 = vtanh.pop %v2042
        %v2044 = vsub.f32 1.0, %v2033
        %2046 = vrot.lane.b32.xlu0 %v2043, 96
        %v2047 = vpop.permute.xlu0 %2046
        %v2049 = vmul.f32 %v2044, %v2047
        %v2050 = vrot.slane %v1985, 7
        %v2052 = vmul.f32 %v2033, %v2050
        %v2053 = vadd.f32 %v2049, %v2052
        %v2054 = vmul.f32 %v821, %v2053
        %2056 = vrot.lane.b32.xlu0 %v2054, 96
        %v2057 = vpop.permute.xlu0 %2056
        %2059 = vst.msk [vmem:[#allocation3] sm:$0x2] %vm1021, %v2057
        %2060 = vrot.lane.b32.xlu0 %v2050, 96
        %v2061 = vpop.permute.xlu0 %2060
        %v2063 = vmul.f32 %v941, %v2061
        %2065 = vrot.lane.b32.xlu0 %v2063, 32
        %v2066 = vpop.permute.xlu0 %2065
        %v2068 = vadd.f32 %v2054, %v2066
        %v2070 = vrot.slane %v2068, 1
        %2071 = vrot.lane.b32.xlu0 %v2070, 96
        %v2072 = vpop.permute.xlu0 %2071
        %v2073 = vsel %vm868, %v2072, 0
        %2075 = vmatpush.msra.mxu0 0.0
        %2076 = vmatpush.msra.mxu0 0.0
        %2077 = vmatpush.msra.mxu0 0.0
        %2078 = vmatpush.msra.mxu0 0.0
        %2079 = vmatpush.msra.mxu0 0.0
        %2080 = vmatpush.msra.mxu0 0.0
        %2081 = vmatpush.msra.mxu0 0.0
        %2082 = vmatpush.msra.mxu0 0.0
        %2083 = vmatpush.msra.mxu0 0.0
        %2084 = vmatpush.msra.mxu0 0.0
        %2085 = vmatpush.msra.mxu0 0.0
        %2086 = vmatpush.msra.mxu0 0.0
        %2087 = vmatpush.msra.mxu0 %v1906
        %2088 = vmatpush.msra.mxu0 %v1905
        %2089 = vmatpush.msra.mxu0 %v1904
        %2090 = vmatpush.msra.mxu0 %v1903
        %2091 = vmatmul.f32.gmra.mxu0 %v2073
        %v2092 = vpop.f32.mrf.mxu0
        %v2093 = vadd.f32 %v1907, %v2092
        %2094 = vdwg.mxu0
        %v2096 = vrot.slane %v2093, 6
        %v2098 = vadd.f32 %v1898, %v2096
        %v2099 = vxor.u32 %v2098, 2147483648
        %v2100 = vmul.f32 %v2099, 1.442695
        %v2101 = vpow.pop %v2100
        %v2102 = vadd.f32 %v2101, 1.0
        %v2103 = vrcp.pop %v2102
        %v2104 = vmul.f32 %v2102, %v2103
        %v2105 = vsub.f32 1.0, %v2104
        %v2106 = vmul.f32 %v2103, %v2105
        %v2107 = vadd.f32 %v2103, %v2106
        %vm2108 = vweird.f32 %v2102
        %vm2109 = vweird.f32 %v2103
        %vm2110 = vmor %vm2108, %vm2109
        %v2111 = vsel %vm2110, %v2103, %v2107
        %v2112 = vand.u32 2147483647, %v2102
        %vm2113 = vcmp.eq.f32.partialorder %v2112, 8.507059e+37
        %v2114 = vand.u32 %v2102, 2147483648
        %v2115 = vor.u32 1.1754944e-38, %v2114
        %v2116 = vsel %vm2113, %v2115, %v2111
        %v2117 = vmul.f32 1.0, %v2116
        %2118 = vrot.lane.b32.xlu0 %v2096, 64
        %v2119 = vpop.permute.xlu0 %2118
        %v2121 = vmul.f32 %v2117, %v2119
        %2123 = vrot.lane.b32.xlu0 %v2121, 64
        %v2124 = vpop.permute.xlu0 %2123
        %v2126 = vadd.f32 %v1898, %v2124
        %v2127 = vtanh.pop %v2126
        %v2128 = vsub.f32 1.0, %v2117
        %2130 = vrot.lane.b32.xlu0 %v2127, 96
        %v2131 = vpop.permute.xlu0 %2130
        %v2133 = vmul.f32 %v2128, %v2131
        %v2134 = vrot.slane %v2068, 7
        %v2136 = vmul.f32 %v2117, %v2134
        %v2137 = vadd.f32 %v2133, %v2136
        %v2138 = vmul.f32 %v821, %v2137
        %2140 = vrot.lane.b32.xlu0 %v2138, 96
        %v2141 = vpop.permute.xlu0 %2140
        %2143 = vst.msk [vmem:[#allocation3] sm:$0x4] %vm1106, %v2141
        %2144 = vrot.lane.b32.xlu0 %v2134, 96
        %v2145 = vpop.permute.xlu0 %2144
        %v2147 = vmul.f32 %v941, %v2145
        %2149 = vrot.lane.b32.xlu0 %v2147, 32
        %v2150 = vpop.permute.xlu0 %2149
        %v2152 = vadd.f32 %v2138, %v2150
        %v2154 = vrot.slane %v2152, 2
        %2155 = vrot.lane.b32.xlu0 %v2154, 96
        %v2156 = vpop.permute.xlu0 %2155
        %v2157 = vsel %vm868, %v2156, 0
        %2159 = vmatpush.msra.mxu0 0.0
        %2160 = vmatpush.msra.mxu0 0.0
        %2161 = vmatpush.msra.mxu0 0.0
        %2162 = vmatpush.msra.mxu0 0.0
        %2163 = vmatpush.msra.mxu0 0.0
        %2164 = vmatpush.msra.mxu0 0.0
        %2165 = vmatpush.msra.mxu0 0.0
        %2166 = vmatpush.msra.mxu0 0.0
        %2167 = vmatpush.msra.mxu0 0.0
        %2168 = vmatpush.msra.mxu0 0.0
        %2169 = vmatpush.msra.mxu0 0.0
        %2170 = vmatpush.msra.mxu0 0.0
        %2171 = vmatpush.msra.mxu0 %v1906
        %2172 = vmatpush.msra.mxu0 %v1905
        %2173 = vmatpush.msra.mxu0 %v1904
        %2174 = vmatpush.msra.mxu0 %v1903
        %2175 = vmatmul.f32.gmra.mxu0 %v2157
        %v2176 = vpop.f32.mrf.mxu0
        %v2177 = vadd.f32 %v1907, %v2176
        %2178 = vdwg.mxu0
        %v2180 = vrot.slane %v2177, 5
        %v2182 = vadd.f32 %v1898, %v2180
        %v2183 = vxor.u32 %v2182, 2147483648
        %v2184 = vmul.f32 %v2183, 1.442695
        %v2185 = vpow.pop %v2184
        %v2186 = vadd.f32 %v2185, 1.0
        %v2187 = vrcp.pop %v2186
        %v2188 = vmul.f32 %v2186, %v2187
        %v2189 = vsub.f32 1.0, %v2188
        %v2190 = vmul.f32 %v2187, %v2189
        %v2191 = vadd.f32 %v2187, %v2190
        %vm2192 = vweird.f32 %v2186
        %vm2193 = vweird.f32 %v2187
        %vm2194 = vmor %vm2192, %vm2193
        %v2195 = vsel %vm2194, %v2187, %v2191
        %v2196 = vand.u32 2147483647, %v2186
        %vm2197 = vcmp.eq.f32.partialorder %v2196, 8.507059e+37
        %v2198 = vand.u32 %v2186, 2147483648
        %v2199 = vor.u32 1.1754944e-38, %v2198
        %v2200 = vsel %vm2197, %v2199, %v2195
        %v2201 = vmul.f32 1.0, %v2200
        %2202 = vrot.lane.b32.xlu0 %v2180, 64
        %v2203 = vpop.permute.xlu0 %2202
        %v2205 = vmul.f32 %v2201, %v2203
        %2207 = vrot.lane.b32.xlu0 %v2205, 64
        %v2208 = vpop.permute.xlu0 %2207
        %v2210 = vadd.f32 %v1898, %v2208
        %v2211 = vtanh.pop %v2210
        %v2212 = vsub.f32 1.0, %v2201
        %2214 = vrot.lane.b32.xlu0 %v2211, 96
        %v2215 = vpop.permute.xlu0 %2214
        %v2217 = vmul.f32 %v2212, %v2215
        %v2218 = vrot.slane %v2152, 7
        %v2220 = vmul.f32 %v2201, %v2218
        %v2221 = vadd.f32 %v2217, %v2220
        %v2222 = vmul.f32 %v821, %v2221
        %2224 = vrot.lane.b32.xlu0 %v2222, 96
        %v2225 = vpop.permute.xlu0 %2224
        %2227 = vst.msk [vmem:[#allocation3] sm:$0x8] %vm1191, %v2225
        %2228 = vrot.lane.b32.xlu0 %v2218, 96
        %v2229 = vpop.permute.xlu0 %2228
        %v2231 = vmul.f32 %v941, %v2229
        %2233 = vrot.lane.b32.xlu0 %v2231, 32
        %v2234 = vpop.permute.xlu0 %2233
        %v2236 = vadd.f32 %v2222, %v2234
        %v2238 = vrot.slane %v2236, 3
        %2239 = vrot.lane.b32.xlu0 %v2238, 96
        %v2240 = vpop.permute.xlu0 %2239
        %v2241 = vsel %vm868, %v2240, 0
        %2243 = vmatpush.msra.mxu0 0.0
        %2244 = vmatpush.msra.mxu0 0.0
        %2245 = vmatpush.msra.mxu0 0.0
        %2246 = vmatpush.msra.mxu0 0.0
        %2247 = vmatpush.msra.mxu0 0.0
        %2248 = vmatpush.msra.mxu0 0.0
        %2249 = vmatpush.msra.mxu0 0.0
        %2250 = vmatpush.msra.mxu0 0.0
        %2251 = vmatpush.msra.mxu0 0.0
        %2252 = vmatpush.msra.mxu0 0.0
        %2253 = vmatpush.msra.mxu0 0.0
        %2254 = vmatpush.msra.mxu0 0.0
        %2255 = vmatpush.msra.mxu0 %v1906
        %2256 = vmatpush.msra.mxu0 %v1905
        %2257 = vmatpush.msra.mxu0 %v1904
        %2258 = vmatpush.msra.mxu0 %v1903
        %2259 = vmatmul.f32.gmra.mxu0 %v2241
        %v2260 = vpop.f32.mrf.mxu0
        %v2261 = vadd.f32 %v1907, %v2260
        %2262 = vdwg.mxu0
        %v2264 = vrot.slane %v2261, 4
        %v2266 = vadd.f32 %v1898, %v2264
        %v2267 = vxor.u32 %v2266, 2147483648
        %v2268 = vmul.f32 %v2267, 1.442695
        %v2269 = vpow.pop %v2268
        %v2270 = vadd.f32 %v2269, 1.0
        %v2271 = vrcp.pop %v2270
        %v2272 = vmul.f32 %v2270, %v2271
        %v2273 = vsub.f32 1.0, %v2272
        %v2274 = vmul.f32 %v2271, %v2273
        %v2275 = vadd.f32 %v2271, %v2274
        %vm2276 = vweird.f32 %v2270
        %vm2277 = vweird.f32 %v2271
        %vm2278 = vmor %vm2276, %vm2277
        %v2279 = vsel %vm2278, %v2271, %v2275
        %v2280 = vand.u32 2147483647, %v2270
        %vm2281 = vcmp.eq.f32.partialorder %v2280, 8.507059e+37
        %v2282 = vand.u32 %v2270, 2147483648
        %v2283 = vor.u32 1.1754944e-38, %v2282
        %v2284 = vsel %vm2281, %v2283, %v2279
        %v2285 = vmul.f32 1.0, %v2284
        %2286 = vrot.lane.b32.xlu0 %v2264, 64
        %v2287 = vpop.permute.xlu0 %2286
        %v2289 = vmul.f32 %v2285, %v2287
        %2291 = vrot.lane.b32.xlu0 %v2289, 64
        %v2292 = vpop.permute.xlu0 %2291
        %v2294 = vadd.f32 %v1898, %v2292
        %v2295 = vtanh.pop %v2294
        %v2296 = vsub.f32 1.0, %v2285
        %2298 = vrot.lane.b32.xlu0 %v2295, 96
        %v2299 = vpop.permute.xlu0 %2298
        %v2301 = vmul.f32 %v2296, %v2299
        %v2302 = vrot.slane %v2236, 7
        %v2304 = vmul.f32 %v2285, %v2302
        %v2305 = vadd.f32 %v2301, %v2304
        %v2306 = vmul.f32 %v821, %v2305
        %2308 = vrot.lane.b32.xlu0 %v2306, 96
        %v2309 = vpop.permute.xlu0 %2308
        %2311 = vst.msk [vmem:[#allocation3] sm:$0x10] %vm1276, %v2309
        %2312 = vrot.lane.b32.xlu0 %v2302, 96
        %v2313 = vpop.permute.xlu0 %2312
        %v2315 = vmul.f32 %v941, %v2313
        %2317 = vrot.lane.b32.xlu0 %v2315, 32
        %v2318 = vpop.permute.xlu0 %2317
        %v2320 = vadd.f32 %v2306, %v2318
        %v2322 = vrot.slane %v2320, 4
        %2323 = vrot.lane.b32.xlu0 %v2322, 96
        %v2324 = vpop.permute.xlu0 %2323
        %v2325 = vsel %vm868, %v2324, 0
        %2327 = vmatpush.msra.mxu0 0.0
        %2328 = vmatpush.msra.mxu0 0.0
        %2329 = vmatpush.msra.mxu0 0.0
        %2330 = vmatpush.msra.mxu0 0.0
        %2331 = vmatpush.msra.mxu0 0.0
        %2332 = vmatpush.msra.mxu0 0.0
        %2333 = vmatpush.msra.mxu0 0.0
        %2334 = vmatpush.msra.mxu0 0.0
        %2335 = vmatpush.msra.mxu0 0.0
        %2336 = vmatpush.msra.mxu0 0.0
        %2337 = vmatpush.msra.mxu0 0.0
        %2338 = vmatpush.msra.mxu0 0.0
        %2339 = vmatpush.msra.mxu0 %v1906
        %2340 = vmatpush.msra.mxu0 %v1905
        %2341 = vmatpush.msra.mxu0 %v1904
        %2342 = vmatpush.msra.mxu0 %v1903
        %2343 = vmatmul.f32.gmra.mxu0 %v2325
        %v2344 = vpop.f32.mrf.mxu0
        %v2345 = vadd.f32 %v1907, %v2344
        %2346 = vdwg.mxu0
        %v2348 = vrot.slane %v2345, 3
        %v2350 = vadd.f32 %v1898, %v2348
        %v2351 = vxor.u32 %v2350, 2147483648
        %v2352 = vmul.f32 %v2351, 1.442695
        %v2353 = vpow.pop %v2352
        %v2354 = vadd.f32 %v2353, 1.0
        %v2355 = vrcp.pop %v2354
        %v2356 = vmul.f32 %v2354, %v2355
        %v2357 = vsub.f32 1.0, %v2356
        %v2358 = vmul.f32 %v2355, %v2357
        %v2359 = vadd.f32 %v2355, %v2358
        %vm2360 = vweird.f32 %v2354
        %vm2361 = vweird.f32 %v2355
        %vm2362 = vmor %vm2360, %vm2361
        %v2363 = vsel %vm2362, %v2355, %v2359
        %v2364 = vand.u32 2147483647, %v2354
        %vm2365 = vcmp.eq.f32.partialorder %v2364, 8.507059e+37
        %v2366 = vand.u32 %v2354, 2147483648
        %v2367 = vor.u32 1.1754944e-38, %v2366
        %v2368 = vsel %vm2365, %v2367, %v2363
        %v2369 = vmul.f32 1.0, %v2368
        %2370 = vrot.lane.b32.xlu0 %v2348, 64
        %v2371 = vpop.permute.xlu0 %2370
        %v2373 = vmul.f32 %v2369, %v2371
        %2375 = vrot.lane.b32.xlu0 %v2373, 64
        %v2376 = vpop.permute.xlu0 %2375
        %v2378 = vadd.f32 %v1898, %v2376
        %v2379 = vtanh.pop %v2378
        %v2380 = vsub.f32 1.0, %v2369
        %2382 = vrot.lane.b32.xlu0 %v2379, 96
        %v2383 = vpop.permute.xlu0 %2382
        %v2385 = vmul.f32 %v2380, %v2383
        %v2386 = vrot.slane %v2320, 7
        %v2388 = vmul.f32 %v2369, %v2386
        %v2389 = vadd.f32 %v2385, %v2388
        %v2390 = vmul.f32 %v821, %v2389
        %2392 = vrot.lane.b32.xlu0 %v2390, 96
        %v2393 = vpop.permute.xlu0 %2392
        %2395 = vst.msk [vmem:[#allocation3] sm:$0x20] %vm1361, %v2393
        %2396 = vrot.lane.b32.xlu0 %v2386, 96
        %v2397 = vpop.permute.xlu0 %2396
        %v2399 = vmul.f32 %v941, %v2397
        %2401 = vrot.lane.b32.xlu0 %v2399, 32
        %v2402 = vpop.permute.xlu0 %2401
        %v2404 = vadd.f32 %v2390, %v2402
        %v2406 = vrot.slane %v2404, 5
        %2407 = vrot.lane.b32.xlu0 %v2406, 96
        %v2408 = vpop.permute.xlu0 %2407
        %v2409 = vsel %vm868, %v2408, 0
        %2411 = vmatpush.msra.mxu0 0.0
        %2412 = vmatpush.msra.mxu0 0.0
        %2413 = vmatpush.msra.mxu0 0.0
        %2414 = vmatpush.msra.mxu0 0.0
        %2415 = vmatpush.msra.mxu0 0.0
        %2416 = vmatpush.msra.mxu0 0.0
        %2417 = vmatpush.msra.mxu0 0.0
        %2418 = vmatpush.msra.mxu0 0.0
        %2419 = vmatpush.msra.mxu0 0.0
        %2420 = vmatpush.msra.mxu0 0.0
        %2421 = vmatpush.msra.mxu0 0.0
        %2422 = vmatpush.msra.mxu0 0.0
        %2423 = vmatpush.msra.mxu0 %v1906
        %2424 = vmatpush.msra.mxu0 %v1905
        %2425 = vmatpush.msra.mxu0 %v1904
        %2426 = vmatpush.msra.mxu0 %v1903
        %2427 = vmatmul.f32.gmra.mxu0 %v2409
        %v2428 = vpop.f32.mrf.mxu0
        %v2429 = vadd.f32 %v1907, %v2428
        %2430 = vdwg.mxu0
        %v2432 = vrot.slane %v2429, 2
        %v2434 = vadd.f32 %v1898, %v2432
        %v2435 = vxor.u32 %v2434, 2147483648
        %v2436 = vmul.f32 %v2435, 1.442695
        %v2437 = vpow.pop %v2436
        %v2438 = vadd.f32 %v2437, 1.0
        %v2439 = vrcp.pop %v2438
        %v2440 = vmul.f32 %v2438, %v2439
        %v2441 = vsub.f32 1.0, %v2440
        %v2442 = vmul.f32 %v2439, %v2441
        %v2443 = vadd.f32 %v2439, %v2442
        %vm2444 = vweird.f32 %v2438
        %vm2445 = vweird.f32 %v2439
        %vm2446 = vmor %vm2444, %vm2445
        %v2447 = vsel %vm2446, %v2439, %v2443
        %v2448 = vand.u32 2147483647, %v2438
        %vm2449 = vcmp.eq.f32.partialorder %v2448, 8.507059e+37
        %v2450 = vand.u32 %v2438, 2147483648
        %v2451 = vor.u32 1.1754944e-38, %v2450
        %v2452 = vsel %vm2449, %v2451, %v2447
        %v2453 = vmul.f32 1.0, %v2452
        %2454 = vrot.lane.b32.xlu0 %v2432, 64
        %v2455 = vpop.permute.xlu0 %2454
        %v2457 = vmul.f32 %v2453, %v2455
        %2459 = vrot.lane.b32.xlu0 %v2457, 64
        %v2460 = vpop.permute.xlu0 %2459
        %v2462 = vadd.f32 %v1898, %v2460
        %v2463 = vtanh.pop %v2462
        %v2464 = vsub.f32 1.0, %v2453
        %2466 = vrot.lane.b32.xlu0 %v2463, 96
        %v2467 = vpop.permute.xlu0 %2466
        %v2469 = vmul.f32 %v2464, %v2467
        %v2470 = vrot.slane %v2404, 7
        %v2472 = vmul.f32 %v2453, %v2470
        %v2473 = vadd.f32 %v2469, %v2472
        %v2474 = vmul.f32 %v821, %v2473
        %2476 = vrot.lane.b32.xlu0 %v2474, 96
        %v2477 = vpop.permute.xlu0 %2476
        %2479 = vst.msk [vmem:[#allocation3] sm:$0x40] %vm1446, %v2477
        %2480 = vrot.lane.b32.xlu0 %v2470, 96
        %v2481 = vpop.permute.xlu0 %2480
        %v2483 = vmul.f32 %v941, %v2481
        %2485 = vrot.lane.b32.xlu0 %v2483, 32
        %v2486 = vpop.permute.xlu0 %2485
        %v2488 = vadd.f32 %v2474, %v2486
        %v2490 = vrot.slane %v2488, 6
        %2491 = vrot.lane.b32.xlu0 %v2490, 96
        %v2492 = vpop.permute.xlu0 %2491
        %v2493 = vsel %vm868, %v2492, 0
        %2495 = vmatpush.msra.mxu0 0.0
        %2496 = vmatpush.msra.mxu0 0.0
        %2497 = vmatpush.msra.mxu0 0.0
        %2498 = vmatpush.msra.mxu0 0.0
        %2499 = vmatpush.msra.mxu0 0.0
        %2500 = vmatpush.msra.mxu0 0.0
        %2501 = vmatpush.msra.mxu0 0.0
        %2502 = vmatpush.msra.mxu0 0.0
        %2503 = vmatpush.msra.mxu0 0.0
        %2504 = vmatpush.msra.mxu0 0.0
        %2505 = vmatpush.msra.mxu0 0.0
        %2506 = vmatpush.msra.mxu0 0.0
        %2507 = vmatpush.msra.mxu0 %v1906
        %2508 = vmatpush.msra.mxu0 %v1905
        %2509 = vmatpush.msra.mxu0 %v1904
        %2510 = vmatpush.msra.mxu0 %v1903
        %2511 = vmatmul.f32.gmra.mxu0 %v2493
        %v2512 = vpop.f32.mrf.mxu0
        %v2513 = vadd.f32 %v1907, %v2512
        %2514 = vdwg.mxu0
        %v2516 = vrot.slane %v2513, 1
        %v2518 = vadd.f32 %v1898, %v2516
        %v2519 = vxor.u32 %v2518, 2147483648
        %v2520 = vmul.f32 %v2519, 1.442695
        %v2521 = vpow.pop %v2520
        %v2522 = vadd.f32 %v2521, 1.0
        %v2523 = vrcp.pop %v2522
        %v2524 = vmul.f32 %v2522, %v2523
        %v2525 = vsub.f32 1.0, %v2524
        %v2526 = vmul.f32 %v2523, %v2525
        %v2527 = vadd.f32 %v2523, %v2526
        %vm2528 = vweird.f32 %v2522
        %vm2529 = vweird.f32 %v2523
        %vm2530 = vmor %vm2528, %vm2529
        %v2531 = vsel %vm2530, %v2523, %v2527
        %v2532 = vand.u32 2147483647, %v2522
        %vm2533 = vcmp.eq.f32.partialorder %v2532, 8.507059e+37
        %v2534 = vand.u32 %v2522, 2147483648
        %v2535 = vor.u32 1.1754944e-38, %v2534
        %v2536 = vsel %vm2533, %v2535, %v2531
        %v2537 = vmul.f32 1.0, %v2536
        %2538 = vrot.lane.b32.xlu0 %v2516, 64
        %v2539 = vpop.permute.xlu0 %2538
        %v2541 = vmul.f32 %v2537, %v2539
        %2543 = vrot.lane.b32.xlu0 %v2541, 64
        %v2544 = vpop.permute.xlu0 %2543
        %v2546 = vadd.f32 %v1898, %v2544
        %v2547 = vtanh.pop %v2546
        %v2548 = vsub.f32 1.0, %v2537
        %2550 = vrot.lane.b32.xlu0 %v2547, 96
        %v2551 = vpop.permute.xlu0 %2550
        %v2553 = vmul.f32 %v2548, %v2551
        %v2554 = vrot.slane %v2488, 7
        %v2556 = vmul.f32 %v2537, %v2554
        %v2557 = vadd.f32 %v2553, %v2556
        %v2558 = vmul.f32 %v821, %v2557
        %2560 = vrot.lane.b32.xlu0 %v2558, 96
        %v2561 = vpop.permute.xlu0 %2560
        %2563 = vst.msk [vmem:[#allocation3] sm:$0x80] %vm1531, %v2561
        %2564 = vrot.lane.b32.xlu0 %v2554, 96
        %v2565 = vpop.permute.xlu0 %2564
        %v2567 = vmul.f32 %v941, %v2565
        %2569 = vrot.lane.b32.xlu0 %v2567, 32
        %v2570 = vpop.permute.xlu0 %2569
        %v2572 = vadd.f32 %v2558, %v2570
        %v2574 = vrot.slane %v2572, 7
        %2575 = vrot.lane.b32.xlu0 %v2574, 96
        %v2576 = vpop.permute.xlu0 %2575
        %v2577 = vsel %vm868, %v2576, 0
        %2579 = vmatpush.msra.mxu0 0.0
        %2580 = vmatpush.msra.mxu0 0.0
        %2581 = vmatpush.msra.mxu0 0.0
        %2582 = vmatpush.msra.mxu0 0.0
        %2583 = vmatpush.msra.mxu0 0.0
        %2584 = vmatpush.msra.mxu0 0.0
        %2585 = vmatpush.msra.mxu0 0.0
        %2586 = vmatpush.msra.mxu0 0.0
        %2587 = vmatpush.msra.mxu0 0.0
        %2588 = vmatpush.msra.mxu0 0.0
        %2589 = vmatpush.msra.mxu0 0.0
        %2590 = vmatpush.msra.mxu0 0.0
        %2591 = vmatpush.msra.mxu0 %v1906
        %2592 = vmatpush.msra.mxu0 %v1905
        %2593 = vmatpush.msra.mxu0 %v1904
        %2594 = vmatpush.msra.mxu0 %v1903
        %2595 = vmatmul.f32.gmra.mxu0 %v2577
        %v2596 = vpop.f32.mrf.mxu0
        %v2597 = vadd.f32 %v1907, %v2596
        %2598 = vdwg.mxu0
        %v2599 = vadd.f32 %v1901, %v2597
        %v2600 = vxor.u32 %v2599, 2147483648
        %v2601 = vmul.f32 %v2600, 1.442695
        %v2602 = vpow.pop %v2601
        %v2603 = vadd.f32 %v2602, 1.0
        %v2604 = vrcp.pop %v2603
        %v2605 = vmul.f32 %v2603, %v2604
        %v2606 = vsub.f32 1.0, %v2605
        %v2607 = vmul.f32 %v2604, %v2606
        %v2608 = vadd.f32 %v2604, %v2607
        %vm2609 = vweird.f32 %v2603
        %vm2610 = vweird.f32 %v2604
        %vm2611 = vmor %vm2609, %vm2610
        %v2612 = vsel %vm2611, %v2604, %v2608
        %v2613 = vand.u32 2147483647, %v2603
        %vm2614 = vcmp.eq.f32.partialorder %v2613, 8.507059e+37
        %v2615 = vand.u32 %v2603, 2147483648
        %v2616 = vor.u32 1.1754944e-38, %v2615
        %v2617 = vsel %vm2614, %v2616, %v2612
        %v2618 = vmul.f32 1.0, %v2617
        %2620 = vrot.lane.b32.xlu0 %v2597, 64
        %v2621 = vpop.permute.xlu0 %2620
        %v2623 = vmul.f32 %v2618, %v2621
        %2625 = vrot.lane.b32.xlu0 %v2623, 64
        %v2626 = vpop.permute.xlu0 %2625
        %v2628 = vadd.f32 %v1901, %v2626
        %v2629 = vtanh.pop %v2628
        %v2630 = vsub.f32 1.0, %v2618
        %2632 = vrot.lane.b32.xlu0 %v2629, 96
        %v2633 = vpop.permute.xlu0 %2632
        %v2635 = vmul.f32 %v2630, %v2633
        %v2637 = vmul.f32 %v2618, %v2574
        %v2638 = vadd.f32 %v2635, %v2637
        %v2639 = vmul.f32 %v822, %v2638
        %2641 = vrot.lane.b32.xlu0 %v2639, 96
        %v2642 = vpop.permute.xlu0 %2641
        %2644 = vst.msk [vmem:[#allocation3 + $0x8] sm:$0x1] %vm939, %v2642
        %v2646 = vmul.f32 %v1614, %v2576
        %2648 = vrot.lane.b32.xlu0 %v2646, 32
        %v2649 = vpop.permute.xlu0 %2648
        %v2651 = vadd.f32 %v2639, %v2649
        %2653 = vrot.lane.b32.xlu0 %v2651, 96
        %v2654 = vpop.permute.xlu0 %2653
        %v2655 = vsel %vm868, %v2654, 0
        %2657 = vmatpush.msra.mxu0 0.0
        %2658 = vmatpush.msra.mxu0 0.0
        %2659 = vmatpush.msra.mxu0 0.0
        %2660 = vmatpush.msra.mxu0 0.0
        %2661 = vmatpush.msra.mxu0 0.0
        %2662 = vmatpush.msra.mxu0 0.0
        %2663 = vmatpush.msra.mxu0 0.0
        %2664 = vmatpush.msra.mxu0 0.0
        %2665 = vmatpush.msra.mxu0 0.0
        %2666 = vmatpush.msra.mxu0 0.0
        %2667 = vmatpush.msra.mxu0 0.0
        %2668 = vmatpush.msra.mxu0 0.0
        %2669 = vmatpush.msra.mxu0 %v1906
        %2670 = vmatpush.msra.mxu0 %v1905
        %2671 = vmatpush.msra.mxu0 %v1904
        %2672 = vmatpush.msra.mxu0 %v1903
        %2673 = vmatmul.f32.gmra.mxu0 %v2655
        %v2674 = vpop.f32.mrf.mxu0
        %v2675 = vadd.f32 %v1907, %v2674
        %2676 = vdwg.mxu0
        %v2678 = vrot.slane %v2675, 7
        %v2680 = vadd.f32 %v1901, %v2678
        %v2681 = vxor.u32 %v2680, 2147483648
        %v2682 = vmul.f32 %v2681, 1.442695
        %v2683 = vpow.pop %v2682
        %v2684 = vadd.f32 %v2683, 1.0
        %v2685 = vrcp.pop %v2684
        %v2686 = vmul.f32 %v2684, %v2685
        %v2687 = vsub.f32 1.0, %v2686
        %v2688 = vmul.f32 %v2685, %v2687
        %v2689 = vadd.f32 %v2685, %v2688
        %vm2690 = vweird.f32 %v2684
        %vm2691 = vweird.f32 %v2685
        %vm2692 = vmor %vm2690, %vm2691
        %v2693 = vsel %vm2692, %v2685, %v2689
        %v2694 = vand.u32 2147483647, %v2684
        %vm2695 = vcmp.eq.f32.partialorder %v2694, 8.507059e+37
        %v2696 = vand.u32 %v2684, 2147483648
        %v2697 = vor.u32 1.1754944e-38, %v2696
        %v2698 = vsel %vm2695, %v2697, %v2693
        %v2699 = vmul.f32 1.0, %v2698
        %2700 = vrot.lane.b32.xlu0 %v2678, 64
        %v2701 = vpop.permute.xlu0 %2700
        %v2703 = vmul.f32 %v2699, %v2701
        %2705 = vrot.lane.b32.xlu0 %v2703, 64
        %v2706 = vpop.permute.xlu0 %2705
        %v2708 = vadd.f32 %v1901, %v2706
        %v2709 = vtanh.pop %v2708
        %v2710 = vsub.f32 1.0, %v2699
        %2712 = vrot.lane.b32.xlu0 %v2709, 96
        %v2713 = vpop.permute.xlu0 %2712
        %v2715 = vmul.f32 %v2710, %v2713
        %v2716 = vrot.slane %v2651, 7
        %v2718 = vmul.f32 %v2699, %v2716
        %v2719 = vadd.f32 %v2715, %v2718
        %v2720 = vmul.f32 %v822, %v2719
        %2722 = vrot.lane.b32.xlu0 %v2720, 96
        %v2723 = vpop.permute.xlu0 %2722
        %2725 = vst.msk [vmem:[#allocation3 + $0x8] sm:$0x2] %vm1021, %v2723
        %2726 = vrot.lane.b32.xlu0 %v2716, 96
        %v2727 = vpop.permute.xlu0 %2726
        %v2729 = vmul.f32 %v1614, %v2727
        %2731 = vrot.lane.b32.xlu0 %v2729, 32
        %v2732 = vpop.permute.xlu0 %2731
        %v2734 = vadd.f32 %v2720, %v2732
        %v2736 = vrot.slane %v2734, 1
        %2737 = vrot.lane.b32.xlu0 %v2736, 96
        %v2738 = vpop.permute.xlu0 %2737
        %v2739 = vsel %vm868, %v2738, 0
        %2741 = vmatpush.msra.mxu0 0.0
        %2742 = vmatpush.msra.mxu0 0.0
        %2743 = vmatpush.msra.mxu0 0.0
        %2744 = vmatpush.msra.mxu0 0.0
        %2745 = vmatpush.msra.mxu0 0.0
        %2746 = vmatpush.msra.mxu0 0.0
        %2747 = vmatpush.msra.mxu0 0.0
        %2748 = vmatpush.msra.mxu0 0.0
        %2749 = vmatpush.msra.mxu0 0.0
        %2750 = vmatpush.msra.mxu0 0.0
        %2751 = vmatpush.msra.mxu0 0.0
        %2752 = vmatpush.msra.mxu0 0.0
        %2753 = vmatpush.msra.mxu0 %v1906
        %2754 = vmatpush.msra.mxu0 %v1905
        %2755 = vmatpush.msra.mxu0 %v1904
        %2756 = vmatpush.msra.mxu0 %v1903
        %2757 = vmatmul.f32.gmra.mxu0 %v2739
        %v2758 = vpop.f32.mrf.mxu0
        %v2759 = vadd.f32 %v1907, %v2758
        %2760 = vdwg.mxu0
        %v2762 = vrot.slane %v2759, 6
        %v2764 = vadd.f32 %v1901, %v2762
        %v2765 = vxor.u32 %v2764, 2147483648
        %v2766 = vmul.f32 %v2765, 1.442695
        %v2767 = vpow.pop %v2766
        %v2768 = vadd.f32 %v2767, 1.0
        %v2769 = vrcp.pop %v2768
        %v2770 = vmul.f32 %v2768, %v2769
        %v2771 = vsub.f32 1.0, %v2770
        %v2772 = vmul.f32 %v2769, %v2771
        %v2773 = vadd.f32 %v2769, %v2772
        %vm2774 = vweird.f32 %v2768
        %vm2775 = vweird.f32 %v2769
        %vm2776 = vmor %vm2774, %vm2775
        %v2777 = vsel %vm2776, %v2769, %v2773
        %v2778 = vand.u32 2147483647, %v2768
        %vm2779 = vcmp.eq.f32.partialorder %v2778, 8.507059e+37
        %v2780 = vand.u32 %v2768, 2147483648
        %v2781 = vor.u32 1.1754944e-38, %v2780
        %v2782 = vsel %vm2779, %v2781, %v2777
        %v2783 = vmul.f32 1.0, %v2782
        %2784 = vrot.lane.b32.xlu0 %v2762, 64
        %v2785 = vpop.permute.xlu0 %2784
        %v2787 = vmul.f32 %v2783, %v2785
        %2789 = vrot.lane.b32.xlu0 %v2787, 64
        %v2790 = vpop.permute.xlu0 %2789
        %v2792 = vadd.f32 %v1901, %v2790
        %v2793 = vtanh.pop %v2792
        %v2794 = vsub.f32 1.0, %v2783
        %2796 = vrot.lane.b32.xlu0 %v2793, 96
        %v2797 = vpop.permute.xlu0 %2796
        %v2799 = vmul.f32 %v2794, %v2797
        %v2800 = vrot.slane %v2734, 7
        %v2802 = vmul.f32 %v2783, %v2800
        %v2803 = vadd.f32 %v2799, %v2802
        %v2804 = vmul.f32 %v822, %v2803
        %2806 = vrot.lane.b32.xlu0 %v2804, 96
        %v2807 = vpop.permute.xlu0 %2806
        %2809 = vst.msk [vmem:[#allocation3 + $0x8] sm:$0x4] %vm1106, %v2807
        %2810 = vrot.lane.b32.xlu0 %v2800, 96
        %v2811 = vpop.permute.xlu0 %2810
        %v2813 = vmul.f32 %v1614, %v2811
        %2815 = vrot.lane.b32.xlu0 %v2813, 32
        %v2816 = vpop.permute.xlu0 %2815
        %v2818 = vadd.f32 %v2804, %v2816
        %v2820 = vrot.slane %v2818, 2
        %2821 = vrot.lane.b32.xlu0 %v2820, 96
        %v2822 = vpop.permute.xlu0 %2821
        %v2823 = vsel %vm868, %v2822, 0
        %2825 = vmatpush.msra.mxu0 0.0
        %2826 = vmatpush.msra.mxu0 0.0
        %2827 = vmatpush.msra.mxu0 0.0
        %2828 = vmatpush.msra.mxu0 0.0
        %2829 = vmatpush.msra.mxu0 0.0
        %2830 = vmatpush.msra.mxu0 0.0
        %2831 = vmatpush.msra.mxu0 0.0
        %2832 = vmatpush.msra.mxu0 0.0
        %2833 = vmatpush.msra.mxu0 0.0
        %2834 = vmatpush.msra.mxu0 0.0
        %2835 = vmatpush.msra.mxu0 0.0
        %2836 = vmatpush.msra.mxu0 0.0
        %2837 = vmatpush.msra.mxu0 %v1906
        %2838 = vmatpush.msra.mxu0 %v1905
        %2839 = vmatpush.msra.mxu0 %v1904
        %2840 = vmatpush.msra.mxu0 %v1903
        %2841 = vmatmul.f32.gmra.mxu0 %v2823
        %v2842 = vpop.f32.mrf.mxu0
        %v2843 = vadd.f32 %v1907, %v2842
        %2844 = vdwg.mxu0
        %v2846 = vrot.slane %v2843, 5
        %v2848 = vadd.f32 %v1901, %v2846
        %v2849 = vxor.u32 %v2848, 2147483648
        %v2850 = vmul.f32 %v2849, 1.442695
        %v2851 = vpow.pop %v2850
        %v2852 = vadd.f32 %v2851, 1.0
        %v2853 = vrcp.pop %v2852
        %v2854 = vmul.f32 %v2852, %v2853
        %v2855 = vsub.f32 1.0, %v2854
        %v2856 = vmul.f32 %v2853, %v2855
        %v2857 = vadd.f32 %v2853, %v2856
        %vm2858 = vweird.f32 %v2852
        %vm2859 = vweird.f32 %v2853
        %vm2860 = vmor %vm2858, %vm2859
        %v2861 = vsel %vm2860, %v2853, %v2857
        %v2862 = vand.u32 2147483647, %v2852
        %vm2863 = vcmp.eq.f32.partialorder %v2862, 8.507059e+37
        %v2864 = vand.u32 %v2852, 2147483648
        %v2865 = vor.u32 1.1754944e-38, %v2864
        %v2866 = vsel %vm2863, %v2865, %v2861
        %v2867 = vmul.f32 1.0, %v2866
        %2868 = vrot.lane.b32.xlu0 %v2846, 64
        %v2869 = vpop.permute.xlu0 %2868
        %v2871 = vmul.f32 %v2867, %v2869
        %2873 = vrot.lane.b32.xlu0 %v2871, 64
        %v2874 = vpop.permute.xlu0 %2873
        %v2876 = vadd.f32 %v1901, %v2874
        %v2877 = vtanh.pop %v2876
        %v2878 = vsub.f32 1.0, %v2867
        %2880 = vrot.lane.b32.xlu0 %v2877, 96
        %v2881 = vpop.permute.xlu0 %2880
        %v2883 = vmul.f32 %v2878, %v2881
        %v2884 = vrot.slane %v2818, 7
        %v2886 = vmul.f32 %v2867, %v2884
        %v2887 = vadd.f32 %v2883, %v2886
        %v2888 = vmul.f32 %v822, %v2887
        %2890 = vrot.lane.b32.xlu0 %v2888, 96
        %v2891 = vpop.permute.xlu0 %2890
        %2893 = vst.msk [vmem:[#allocation3 + $0x8] sm:$0x8] %vm1191, %v2891
        %v2894 = vld [vmem:[#allocation3] sm:$0xff]
        %v2895 = vld [vmem:[#allocation3 + $0x8] sm:$0xf]
        %v2896 = vld [vmem:[%s801] sm:$0xff]
        %v2897 = vld [vmem:[%s801 + $0x8] sm:$0xff]
        %v2898 = vld [vmem:[#allocation16] sm:$0xff]
        %v2899 = vld [vmem:[#allocation16 + $0x8] sm:$0xff]
        %v2900 = vld [vmem:[#allocation16 + $0x10] sm:$0xff]
        %v2901 = vld [vmem:[#allocation16 + $0x18] sm:$0xff]
        %v2902 = vld [vmem:[%s14] sm:$0x1]
        %v2904 = vperm.slane %v2902, 0
        %v2907 = vsel %vm868, %v2894, 0
        %v2910 = vsel %vm868, %v2895, 0
        %2912 = vmatpush.msra.mxu0 0.0
        %2913 = vmatpush.msra.mxu0 0.0
        %2914 = vmatpush.msra.mxu0 0.0
        %2915 = vmatpush.msra.mxu0 0.0
        %2916 = vmatpush.msra.mxu0 0.0
        %2917 = vmatpush.msra.mxu0 0.0
        %2918 = vmatpush.msra.mxu0 0.0
        %2919 = vmatpush.msra.mxu0 0.0
        %2920 = vmatpush.msra.mxu0 0.0
        %2921 = vmatpush.msra.mxu0 0.0
        %2922 = vmatpush.msra.mxu0 0.0
        %2923 = vmatpush.msra.mxu0 0.0
        %2924 = vmatpush.msra.mxu0 %v2901
        %2925 = vmatpush.msra.mxu0 %v2900
        %2926 = vmatpush.msra.mxu0 %v2899
        %2927 = vmatpush.msra.mxu0 %v2898
        %2928 = vmatmul.f32.gmra.mxu0 %v2907
        %v2929 = vpop.f32.mrf.mxu0
        %v2930 = vadd.f32 %v2904, %v2929
        %2931 = vmatmul.f32.gmra.mxu0 %v2910
        %v2932 = vpop.f32.mrf.mxu0
        %v2933 = vadd.f32 %v2904, %v2932
        %2934 = vdwg.mxu0
        %v2935 = vld [vmem:[#allocation17] sm:$0xff]
        %v2936 = vld [vmem:[#allocation17 + $0x8] sm:$0xff]
        %v2937 = vld [vmem:[#allocation17 + $0x10] sm:$0xff]
        %v2938 = vld [vmem:[#allocation17 + $0x18] sm:$0xff]
        %v2939 = vld [vmem:[%s16] sm:$0x1]
        %v2941 = vperm.slane %v2939, 0
        %v2944 = vsel %vm868, %v2896, 0
        %v2947 = vsel %vm868, %v2897, 0
        %2949 = vmatpush.msra.mxu0 0.0
        %2950 = vmatpush.msra.mxu0 0.0
        %2951 = vmatpush.msra.mxu0 0.0
        %2952 = vmatpush.msra.mxu0 0.0
        %2953 = vmatpush.msra.mxu0 0.0
        %2954 = vmatpush.msra.mxu0 0.0
        %2955 = vmatpush.msra.mxu0 0.0
        %2956 = vmatpush.msra.mxu0 0.0
        %2957 = vmatpush.msra.mxu0 0.0
        %2958 = vmatpush.msra.mxu0 0.0
        %2959 = vmatpush.msra.mxu0 0.0
        %2960 = vmatpush.msra.mxu0 0.0
        %2961 = vmatpush.msra.mxu0 %v2938
        %2962 = vmatpush.msra.mxu0 %v2937
        %2963 = vmatpush.msra.mxu0 %v2936
        %2964 = vmatpush.msra.mxu0 %v2935
        %2965 = vmatmul.f32.gmra.mxu0 %v2944
        %v2966 = vpop.f32.mrf.mxu0
        %v2967 = vadd.f32 %v2941, %v2966
        %2968 = vmatmul.f32.gmra.mxu0 %v2947
        %v2969 = vpop.f32.mrf.mxu0
        %v2970 = vadd.f32 %v2941, %v2969
        %2971 = vdwg.mxu0
        %v2973 = vsel %vm868, %v2930, 0
        %v2976 = vsel %vm868, %v2933, 0
        %v2979 = vsel %vm868, %v2967, 0
        %v2982 = vsel %vm868, %v2970, 0
        %2984 = vmatpush.xpose.msra.mxu0 0.0
        %2985 = vmatpush.xpose.msra.mxu0 0.0
        %2986 = vmatpush.xpose.msra.mxu0 0.0
        %2987 = vmatpush.xpose.msra.mxu0 0.0
        %2988 = vmatpush.xpose.msra.mxu0 0.0
        %2989 = vmatpush.xpose.msra.mxu0 0.0
        %2990 = vmatpush.xpose.msra.mxu0 0.0
        %2991 = vmatpush.xpose.msra.mxu0 0.0
        %2992 = vmatpush.xpose.msra.mxu0 0.0
        %2993 = vmatpush.xpose.msra.mxu0 0.0
        %2994 = vmatpush.xpose.msra.mxu0 0.0
        %2995 = vmatpush.xpose.msra.mxu0 0.0
        %2996 = vmatpush.xpose.msra.mxu0 0.0
        %2997 = vmatpush.xpose.msra.mxu0 0.0
        %2998 = vmatpush.xpose.msra.mxu0 %v2982
        %2999 = vmatpush.xpose.msra.mxu0 %v2979
        %3000 = vmatmul.f32.gmra.mxu0 %v2973
        %v3001 = vpop.f32.mrf.mxu0
        %v3002 = vadd.f32 0.0, %v3001
        %3003 = vmatmul.f32.gmra.mxu0 %v2976
        %v3004 = vpop.f32.mrf.mxu0
        %v3005 = vadd.f32 0.0, %v3004
        %3006 = vdwg.mxu0
        %v3007 = vld [vmem:[%s687] sm:$0x1]
        %vm3008 = vcmp.gt.f32.partialorder %v3007, 0.0
        %v3009 = vsel %vm3008, 1, 0
        %v3010 = vperm.slane %v3009, 0
        %vm3011 = vcmp.eq.s32.totalorder %v3010, 1
        %v3012 = vsel %vm3011, %v3002, -1e+30
        %v3013 = vsel %vm3011, %v3005, -1e+30
        %vm3014 = vcmask 130048
        %v3015 = vsel %vm3014, %v3012, -inf
        %3016 = vmax.xlane.f32.xlu0 %v3015
        %v3017 = vpop.xlane.xlu0 %3016
        %vm3018 = vcmask 125952
        %v3019 = vsel %vm3018, %v3013, -inf
        %3020 = vmax.xlane.f32.xlu0 %v3019
        %v3021 = vpop.xlane.xlu0 %3020
        %v3022 = vsub.f32 %v3012, %v3017
        %v3023 = vsub.f32 %v3013, %v3021
        %v3024 = vmul.f32 %v3022, 1.442695
        %v3025 = vpow.pop %v3024
        %v3026 = vmul.f32 %v3023, 1.442695
        %v3027 = vpow.pop %v3026
        %v3028 = vsel %vm3014, %v3025, 0.0
        %3029 = vadd.xlane.f32.xlu0 %v3028
        %v3030 = vpop.xlane.xlu0 %3029
        %v3031 = vsel %vm3018, %v3027, 0.0
        %3032 = vadd.xlane.f32.xlu0 %v3031
        %v3033 = vpop.xlane.xlu0 %3032
        %v3034 = vrcp.pop %v3030
        %v3035 = vrcp.pop %v3033
        %v3036 = vmul.f32 %v3025, %v3034
        %v3037 = vmul.f32 %v3027, %v3035
        %3038 = vst.msk [vmem:[%s811] sm:$0xff] %vm3014, %v3036
        %3039 = vst.msk [vmem:[%s811 + $0x8] sm:$0xf] %vm3018, %v3037
        %3040 = vrot.lane.b32.xlu0 %v2967, 96
        %v3041 = vpop.permute.xlu0 %3040
        %3042 = vrot.lane.b32.xlu0 %v2970, 96
        %v3043 = vpop.permute.xlu0 %3042
        %v3047 = vsel %vm3014, %v3036, 0
        %v3050 = vsel %vm3014, %v3037, 0
        %3052 = vmatpush.msra.mxu0 0.0
        %3053 = vmatpush.msra.mxu0 0.0
        %3054 = vmatpush.msra.mxu0 0.0
        %3055 = vmatpush.msra.mxu0 0.0
        %3056 = vmatpush.msra.mxu0 0.0
        %3057 = vmatpush.msra.mxu0 0.0
        %3058 = vmatpush.msra.mxu0 0.0
        %3059 = vmatpush.msra.mxu0 0.0
        %3060 = vmatpush.msra.mxu0 0.0
        %3061 = vmatpush.msra.mxu0 0.0
        %3062 = vmatpush.msra.mxu0 0.0
        %3063 = vmatpush.msra.mxu0 0.0
        %3064 = vmatpush.msra.mxu0 0.0
        %3065 = vmatpush.msra.mxu0 0.0
        %3066 = vmatpush.msra.mxu0 %v3043
        %3067 = vmatpush.msra.mxu0 %v3041
        %3068 = vmatmul.f32.gmra.mxu0 %v3047
        %v3069 = vpop.f32.mrf.mxu0
        %v3070 = vadd.f32 0.0, %v3069
        %3071 = vmatmul.f32.gmra.mxu0 %v3050
        %v3072 = vpop.f32.mrf.mxu0
        %v3073 = vadd.f32 0.0, %v3072
        %3074 = vdwg.mxu0
        %3077 = vrot.lane.b32.xlu0 %v3070, 32
        %v3078 = vpop.permute.xlu0 %3077
        %3079 = vrot.lane.b32.xlu0 %v3073, 32
        %v3080 = vpop.permute.xlu0 %3079
        %v3083 = vsel %vm868, %v2894, %v3078
        %v3084 = vsel %vm868, %v2895, %v3080
        %v3085 = vld [vmem:[%s17] sm:$0xff]
        %v3086 = vld [vmem:[%s17 + $0x8] sm:$0xff]
        %v3087 = vld [vmem:[%s17 + $0x10] sm:$0xff]
        %v3088 = vld [vmem:[%s17 + $0x18] sm:$0xff]
        %v3089 = vld [vmem:[%s17 + $0x20] sm:$0xff]
        %v3090 = vld [vmem:[%s17 + $0x28] sm:$0xff]
        %v3091 = vld [vmem:[%s17 + $0x30] sm:$0xff]
        %v3092 = vld [vmem:[%s17 + $0x38] sm:$0xff]
        %v3093 = vld [vmem:[%s18] sm:$0x1]
        %v3095 = vperm.slane %v3093, 0
        %vm3097 = vcmask 523264
        %v3099 = vsel %vm3097, %v3083, 0
        %v3102 = vsel %vm3097, %v3084, 0
        %3104 = vmatpush.msra.mxu0 0.0
        %3105 = vmatpush.msra.mxu0 0.0
        %3106 = vmatpush.msra.mxu0 0.0
        %3107 = vmatpush.msra.mxu0 0.0
        %3108 = vmatpush.msra.mxu0 0.0
        %3109 = vmatpush.msra.mxu0 0.0
        %3110 = vmatpush.msra.mxu0 0.0
        %3111 = vmatpush.msra.mxu0 0.0
        %3112 = vmatpush.msra.mxu0 %v3092
        %3113 = vmatpush.msra.mxu0 %v3091
        %3114 = vmatpush.msra.mxu0 %v3090
        %3115 = vmatpush.msra.mxu0 %v3089
        %3116 = vmatpush.msra.mxu0 %v3088
        %3117 = vmatpush.msra.mxu0 %v3087
        %3118 = vmatpush.msra.mxu0 %v3086
        %3119 = vmatpush.msra.mxu0 %v3085
        %3120 = vmatmul.f32.gmra.mxu0 %v3099
        %v3121 = vpop.f32.mrf.mxu0
        %v3122 = vadd.f32 %v3095, %v3121
        %3123 = vmatmul.f32.gmra.mxu0 %v3102
        %v3124 = vpop.f32.mrf.mxu0
        %v3125 = vadd.f32 %v3095, %v3124
        %3126 = vdwg.mxu0
        %v3127 = vlaneseq
        %v3128 = vand.u32 %v3127, 127
        %vm3129 = vcmp.ge.s32.totalorder %v3128, 16
        %v3130 = vsel %vm3129, -1e+30, %v3122
        %v3131 = vsel %vm3129, -1e+30, %v3125
        %vm3132 = vcmask 228352
        %v3133 = vsel %vm3132, %v3130, -inf
        %3134 = vmax.xlane.f32.xlu0 %v3133
        %v3135 = vpop.xlane.xlu0 %3134
        %vm3136 = vcmask 224256
        %v3137 = vsel %vm3136, %v3131, -inf
        %3138 = vmax.xlane.f32.xlu0 %v3137
        %v3139 = vpop.xlane.xlu0 %3138
        %v3140 = vsel %vm3129, %v3122, -1e+30
        %v3141 = vsel %vm3129, %v3125, -1e+30
        %v3142 = vsel %vm3132, %v3140, -inf
        %3143 = vmax.xlane.f32.xlu0 %v3142
        %v3144 = vpop.xlane.xlu0 %3143
        %v3145 = vsel %vm3136, %v3141, -inf
        %3146 = vmax.xlane.f32.xlu0 %v3145
        %v3147 = vpop.xlane.xlu0 %3146
        %v3148 = vsel %vm3129, %v3144, %v3135
        %v3149 = vsel %vm3129, %v3147, %v3139
        %v3150 = vsub.f32 %v3122, %v3148
        %v3151 = vsub.f32 %v3125, %v3149
        %v3152 = vmul.f32 %v3150, 1.442695
        %v3153 = vpow.pop %v3152
        %v3154 = vmul.f32 %v3151, 1.442695
        %v3155 = vpow.pop %v3154
        %v3156 = vsel %vm3129, 0.0, %v3153
        %v3157 = vsel %vm3129, 0.0, %v3155
        %v3158 = vsel %vm3132, %v3156, 0.0
        %3159 = vadd.xlane.f32.xlu0 %v3158
        %v3160 = vpop.xlane.xlu0 %3159
        %v3161 = vsel %vm3136, %v3157, 0.0
        %3162 = vadd.xlane.f32.xlu0 %v3161
        %v3163 = vpop.xlane.xlu0 %3162
        %v3164 = vsel %vm3129, %v3153, 0.0
        %v3165 = vsel %vm3129, %v3155, 0.0
        %v3166 = vsel %vm3132, %v3164, 0.0
        %3167 = vadd.xlane.f32.xlu0 %v3166
        %v3168 = vpop.xlane.xlu0 %3167
        %v3169 = vsel %vm3136, %v3165, 0.0
        %3170 = vadd.xlane.f32.xlu0 %v3169
        %v3171 = vpop.xlane.xlu0 %3170
        %v3172 = vsel %vm3129, %v3168, %v3160
        %v3173 = vsel %vm3129, %v3171, %v3163
        %v3174 = vrcp.pop %v3172
        %v3175 = vrcp.pop %v3173
        %v3176 = vmul.f32 %v3153, %v3174
        %v3177 = vmul.f32 %v3155, %v3175
        %3178 = vst.msk [vmem:[%s806] sm:$0xff] %vm3132, %v3176
        %3179 = vst.msk [vmem:[%s806 + $0x8] sm:$0xf] %vm3136, %v3177
        %p3180 = scmp.lt.s32.totalorder %s49, 1
        %s3181 = scalar_select %p3180, %s49, 1
        %s3182 = smul.addr %s3181, 2
        %s3183 = smul.addr %s3182, 8
        %s3184 = scalar_lea.vmem %s19, %s3183
        %p3185 = scmp.lt.s32.totalorder %s49, 1
        %s3186 = scalar_select %p3185, %s49, 1
        %s3187 = smul.addr %s3186, 2
        %s3188 = smul.addr %s3187, 8
        %s3189 = scalar_lea.vmem %s20, %s3188
        // Predicated region
        $region125: #{tpu_custom_call.1} parent=91 // pred_check
          %p3190 = pneg %p465
        $region126: #{tpu_custom_call.1} parent=91 // pred_check_branch
          %3192 = sbr.rel (%p3190) target = $region128
        $region127: #{tpu_custom_call.1} parent=91 // pred_region
          _
        $region128: #{tpu_custom_call.1} parent=91 // pred_fallthru
          _
        // Predicated region
        $region129: #{tpu_custom_call.1} parent=91 // pred_check
          %p3193 = pneg %p491
        $region130: #{tpu_custom_call.1} parent=91 // pred_check_branch
          %3195 = sbr.rel (%p3193) target = $region132
        $region131: #{tpu_custom_call.1} parent=91 // pred_region
          _
        $region132: #{tpu_custom_call.1} parent=91 // pred_fallthru
          _
      $region92: #{tpu_custom_call.1} parent=5 // pred_fallthru
        _
      %p3196 = scmp.le.s32.totalorder 2, %s44
      // Predicated region
      $region133: #{tpu_custom_call.1} parent=5 // pred_check
        %p3197 = pneg %p3196
      $region134: #{tpu_custom_call.1} parent=5 // pred_check_branch
        %3199 = sbr.rel (%p3197) target = $region136
      $region135: #{tpu_custom_call.1} parent=5 // pred_region
        %s3200 = ssub.s32 %s44, 2
        // Predicated region
        $region137: #{tpu_custom_call.1} parent=135 // pred_check
          %p3201 = pneg %p471
        $region138: #{tpu_custom_call.1} parent=135 // pred_check_branch
          %3203 = sbr.rel (%p3201) target = $region140
        $region139: #{tpu_custom_call.1} parent=135 // pred_region
          %p3204 = scmp.lt.s32.totalorder %s50, 1
          %s3205 = scalar_select %p3204, %s50, 1
          %s3206 = smul.addr %s3205, 2
          %s3207 = smul.addr %s3206, 8
          %s3208 = scalar_lea.vmem %s19, %s3207
        $region140: #{tpu_custom_call.1} parent=135 // pred_fallthru
          _
        // Predicated region
        $region141: #{tpu_custom_call.1} parent=135 // pred_check
          %p3209 = pneg %p497
        $region142: #{tpu_custom_call.1} parent=135 // pred_check_branch
          %3211 = sbr.rel (%p3209) target = $region144
        $region143: #{tpu_custom_call.1} parent=135 // pred_region
          %p3212 = scmp.lt.s32.totalorder %s50, 1
          %s3213 = scalar_select %p3212, %s50, 1
          %s3214 = smul.addr %s3213, 2
          %s3215 = smul.addr %s3214, 8
          %s3216 = scalar_lea.vmem %s20, %s3215
        $region144: #{tpu_custom_call.1} parent=135 // pred_fallthru
          _
      $region136: #{tpu_custom_call.1} parent=5 // pred_fallthru
        _
    $region6: #{tpu_custom_call.1} parent=1 // loop_footer
      %s48 = sadd.s32 1, %s44
    $region7: #{tpu_custom_call.1} parent=1 // loop_footer_branch
      %43 = sbr.rel target = $region3
    $region8: #{tpu_custom_call.1} parent=1 // loop_exit
      _
    %3217 = vsyncpa [#allocation7], 1
    %s3218 = scalar_lea.sflag [#allocation7], 1
    %3219 = vsyncpa %s3218, 1
    %3220 = vsyncpa [#allocation9], 1
    %s3221 = scalar_lea.sflag [#allocation9], 1
    %3222 = vsyncpa %s3221, 1
    %3223 = vsyncpa [#allocation12], 1
    %3224 = vsyncpa [#allocation15], 1
    %3225 = vsyncpa [#allocation18], 1

</llo_original>
